<compile_context>
chip_gen: v6e
topology: v6e:2x2x1
jax: 0.10.0
libtpu: 0.0.40
codegen_flags: <defaults>
</compile_context>

<pallas_src>
import functools

import jax
import jax.numpy as jnp
from jax import lax
from jax.experimental import pallas as pl
from jax.experimental.pallas import tpu as pltpu


_EPS = 1e-20


# ----------------------------------------------------------------------------
# Closest-point-on-triangle (Ericson) barycentric math.
# The region-select chain is shared by the kernel, the plain-JAX glue and the
# brute-force reference; only the reciprocal sourcing differs.
# ----------------------------------------------------------------------------
def _select_vw(d1, d2, d3, d4, d5, d6, va, vb, vc, v_ab, w_ac, w_bc, v_in, w_in):
    cond_a = (d1 <= 0.0) & (d2 <= 0.0)
    cond_b = (d3 >= 0.0) & (d4 <= d3)
    cond_ab = (vc <= 0.0) & (d1 >= 0.0) & (d3 <= 0.0)
    cond_c = (d6 >= 0.0) & (d5 <= d6)
    cond_ac = (vb <= 0.0) & (d2 >= 0.0) & (d6 <= 0.0)
    cond_bc = (va <= 0.0) & ((d4 - d3) >= 0.0) & ((d5 - d6) >= 0.0)

    zero = jnp.zeros_like(v_in)
    one = jnp.ones_like(v_in)
    v = jnp.where(cond_a, zero,
        jnp.where(cond_b, one,
        jnp.where(cond_ab, v_ab,
        jnp.where(cond_c, zero,
        jnp.where(cond_ac, zero,
        jnp.where(cond_bc, 1.0 - w_bc, v_in))))))
    w = jnp.where(cond_a, zero,
        jnp.where(cond_b, zero,
        jnp.where(cond_ab, zero,
        jnp.where(cond_c, one,
        jnp.where(cond_ac, w_ac,
        jnp.where(cond_bc, w_bc, w_in))))))
    return v, w


def _tri_barycentric(d1, d2, d3, d4, d5, d6):
    """Exact (division-based) version, used by glue code and the reference."""
    vc = d1 * d4 - d3 * d2
    vb = d5 * d2 - d1 * d6
    va = d3 * d6 - d5 * d4
    v_ab = d1 / jnp.maximum(d1 - d3, _EPS)
    w_ac = d2 / jnp.maximum(d2 - d6, _EPS)
    w_bc = (d4 - d3) / jnp.maximum((d4 - d3) + (d5 - d6), _EPS)
    denom = va + vb + vc
    inv_denom = 1.0 / jnp.where(jnp.abs(denom) > _EPS, denom, _EPS)
    v_in = vb * inv_denom
    w_in = vc * inv_denom
    return _select_vw(d1, d2, d3, d4, d5, d6, va, vb, vc,
                      v_ab, w_ac, w_bc, v_in, w_in)


def _tri_vw_precomputed(d1, d2, d3, d4, d5, d6, r_ab, r_ac, r_bc, r_den):
    """Kernel version: all reciprocals are per-face constants (broadcast muls)."""
    vc = d1 * d4 - d3 * d2
    vb = d5 * d2 - d1 * d6
    va = d3 * d6 - d5 * d4
    v_ab = d1 * r_ab
    w_ac = d2 * r_ac
    w_bc = (d4 - d3) * r_bc
    v_in = vb * r_den
    w_in = vc * r_den
    return _select_vw(d1, d2, d3, d4, d5, d6, va, vb, vc,
                      v_ab, w_ac, w_bc, v_in, w_in)


# ----------------------------------------------------------------------------
# Kernel 1: closest face index (running argmin over strip-mined face tiles)
#
# Packed face tensor layout, coordinate-major (32, F):
#   rows  0..2  : ab           row  3 : -ab.a     rows 4..7  : 0   (MXU rhs #1)
#   rows  8..10 : ac           row 11 : -ac.a     rows 12..15: 0   (MXU rhs #2)
#   rows 16..18 : a (= f1)
#   row 19: |ab|^2   row 20: ab.ac   row 21: |ac|^2
#   row 22: 1/max(|ab|^2,eps)   row 23: 1/max(|ac|^2,eps)
#   row 24: 1/max(|bc|^2,eps)   row 25: 1/denom (guarded)
#   rows 26..31: 0 (pad)
# Query tensor: (tq, 8): cols 0..2 = xyz, col 3 = 1.0, cols 4..7 = 0.
# ----------------------------------------------------------------------------
def _cps_kernel(q_ref, face_ref, idx_ref, best_ref, *, tc):
    j = pl.program_id(1)
    tf = face_ref.shape[1]
    n_chunks = tf // tc
    tq = q_ref.shape[0]

    @pl.when(j == 0)
    def _():
        best_ref[...] = jnp.full(best_ref.shape, jnp.inf, best_ref.dtype)
        idx_ref[...] = jnp.zeros(idx_ref.shape, idx_ref.dtype)

    q = q_ref[...]                                      # (tq, 8), col 3 == 1.0
    qx = q[:, 0:1]
    qy = q[:, 1:2]
    qz = q[:, 2:3]

    def chunk_body(c, carry):
        run_min, run_arg = carry
        off = c * tc
        dsl = pl.ds(pl.multiple_of(off, tc), tc)

        ab8 = face_ref[0:8, dsl]                        # (8, tc)
        ac8 = face_ref[8:16, dsl]                       # (8, tc)
        # d1 = ab.(p-a), d2 = ac.(p-a) straight off the (otherwise idle) MXU.
        d1 = jnp.dot(q, ab8, preferred_element_type=jnp.float32)   # (tq, tc)
        d2 = jnp.dot(q, ac8, preferred_element_type=jnp.float32)

        u = face_ref[19:20, dsl]        # |ab|^2
        m = face_ref[20:21, dsl]        # ab.ac
        vv = face_ref[21:22, dsl]       # |ac|^2
        r_ab = face_ref[22:23, dsl]
        r_ac = face_ref[23:24, dsl]
        r_bc = face_ref[24:25, dsl]
        r_den = face_ref[25:26, dsl]

        # d3..d6 differ from d1/d2 only by per-face constants.
        d3 = d1 - u
        d5 = d1 - m
        d4 = d2 - m
        d6 = d2 - vv

        v, w = _tri_vw_precomputed(d1, d2, d3, d4, d5, d6,
                                   r_ab, r_ac, r_bc, r_den)

        ax = face_ref[16:17, dsl]
        ay = face_ref[17:18, dsl]
        az = face_ref[18:19, dsl]
        abx = ab8[0:1, :]; aby = ab8[1:2, :]; abz = ab8[2:3, :]
        acx = ac8[0:1, :]; acy = ac8[1:2, :]; acz = ac8[2:3, :]

        # Exact closest-point distance (robust against cancellation).
        dxv = (qx - ax) - v * abx - w * acx
        dyv = (qy - ay) - v * aby - w * acy
        dzv = (qz - az) - v * abz - w * acz
        dist2 = dxv * dxv + dyv * dyv + dzv * dzv       # (tq, tc)

        loc_min = jnp.min(dist2, axis=-1, keepdims=True)            # (tq, 1)
        col = lax.broadcasted_iota(jnp.int32, dist2.shape, 1)
        loc_arg = jnp.min(jnp.where(dist2 <= loc_min, col, tc),
                          axis=-1, keepdims=True) + off             # (tq, 1)

        upd = loc_min < run_min
        run_min = jnp.where(upd, loc_min, run_min)
        run_arg = jnp.where(upd, loc_arg, run_arg)
        return run_min, run_arg

    init = (jnp.full((tq, 1), jnp.inf, jnp.float32),
            jnp.zeros((tq, 1), jnp.int32))
    run_min, run_arg = lax.fori_loop(0, n_chunks, chunk_body, init)

    prev = best_ref[...]
    upd = run_min < prev
    best_ref[...] = jnp.where(upd, run_min, prev)
    g_idx = (j * tf + run_arg).astype(jnp.int32)
    idx_ref[...] = jnp.where(upd, g_idx, idx_ref[...])


def closest_point_on_surface(query_points, f1, f2, f3, *, tq=128, tf=2048, tc=128):
    """Index of the closest triangle for every query point (Pallas kernel)."""
    Q = query_points.shape[0]
    F = f1.shape[0]
    Qp = ((Q + tq - 1) // tq) * tq

    # Adaptive face tiling: strip-mine chunk tc, grid tile tf (multiple of tc),
    # total face count padded to a multiple of tf.
    Fc = ((F + tc - 1) // tc) * tc
    tf = max(tc, min((tf // tc) * tc, Fc))
    Fp = ((Fc + tf - 1) // tf) * tf

    q_pad = jnp.zeros((Qp, 8), jnp.float32)
    q_pad = q_pad.at[:, 3].set(1.0)                    # constant column for MXU
    q_pad = q_pad.at[:Q, :3].set(query_points.astype(jnp.float32))

    f1 = f1.astype(jnp.float32)
    f2 = f2.astype(jnp.float32)
    f3 = f3.astype(jnp.float32)
    ab = f2 - f1
    ac = f3 - f1
    s1 = jnp.sum(ab * f1, axis=-1)                     # ab . a
    s2 = jnp.sum(ac * f1, axis=-1)                     # ac . a
    u = jnp.sum(ab * ab, axis=-1)                      # |ab|^2 = d1 - d3
    m = jnp.sum(ab * ac, axis=-1)                      # ab . ac
    vv = jnp.sum(ac * ac, axis=-1)                     # |ac|^2 = d2 - d6
    r_ab = 1.0 / jnp.maximum(u, _EPS)
    r_ac = 1.0 / jnp.maximum(vv, _EPS)
    r_bc = 1.0 / jnp.maximum(u - 2.0 * m + vv, _EPS)   # 1 / |bc|^2
    den = u * vv - m * m                               # == va + vb + vc
    r_den = 1.0 / jnp.where(jnp.abs(den) > _EPS, den, _EPS)

    z4 = jnp.zeros((4, F), jnp.float32)
    packed = jnp.concatenate([
        ab.T, -s1[None, :], z4,                        # rows 0..7   (MXU rhs #1)
        ac.T, -s2[None, :], z4,                        # rows 8..15  (MXU rhs #2)
        f1.T,                                          # rows 16..18 (a)
        u[None, :], m[None, :], vv[None, :],           # rows 19..21
        r_ab[None, :], r_ac[None, :],                  # rows 22..23
        r_bc[None, :], r_den[None, :],                 # rows 24..25
        jnp.zeros((6, F), jnp.float32),                # rows 26..31 (pad)
    ], axis=0)                                         # (32, F)
    if Fp > F:
        # Pad by repeating face 0: strict-< running min keeps the real face.
        fill = jnp.broadcast_to(packed[:, :1], (32, Fp - F))
        packed = jnp.concatenate([packed, fill], axis=1)

    idx = pl.pallas_call(
        functools.partial(_cps_kernel, tc=tc),
        out_shape=jax.ShapeDtypeStruct((Qp, 1), jnp.int32),
        grid_spec=pltpu.PrefetchScalarGridSpec(
            num_scalar_prefetch=0,
            grid=(Qp // tq, Fp // tf),
            in_specs=[
                pl.BlockSpec((tq, 8), lambda qi, fj: (qi, 0)),
                pl.BlockSpec((32, tf), lambda qi, fj: (0, fj)),
            ],
            out_specs=pl.BlockSpec((tq, 1), lambda qi, fj: (qi, 0)),
            scratch_shapes=[pltpu.VMEM((tq, 1), jnp.float32)],
        ),
        compiler_params=pltpu.CompilerParams(
            dimension_semantics=("parallel", "arbitrary"),
            vmem_limit_bytes=16 * 1024 * 1024),
    )(q_pad, packed)
    # Padded columns never win (strict-< + bit-identical replicas), but a
    # clamped index is cheap insurance for the downstream gathers.
    return jnp.minimum(idx[:Q, 0], F - 1)


# ----------------------------------------------------------------------------
# Kernel 2: K nearest target points (strip-mined point axis, carried top-K)
# ----------------------------------------------------------------------------
def _knn_kernel(q_ref, p_ref, d_ref, i_ref, *, K, tc):
    Np = p_ref.shape[1]
    n_chunks = Np // tc
    tq = q_ref.shape[0]

    q = q_ref[...]                                      # (tq, 3)
    qx = q[:, 0:1]
    qy = q[:, 1:2]
    qz = q[:, 2:3]

    BIG = jnp.int32(2 ** 30)

    def chunk_body(c, carry):
        best_d, best_i = carry                          # (tq, K) f32 / i32
        off = c * tc
        dsl = pl.ds(pl.multiple_of(off, tc), tc)
        px = p_ref[0:1, dsl]
        py = p_ref[1:2, dsl]
        pz = p_ref[2:3, dsl]
        d2 = (qx - px) ** 2
        d2 = d2 + (qy - py) ** 2
        d2 = d2 + (qz - pz) ** 2                        # (tq, tc)
        col = lax.broadcasted_iota(jnp.int32, d2.shape, 1) + off

        # Select the K smallest of (chunk U carried top-K).  The carried
        # candidates sit in the lane-aligned tail, so the concat is 2 copies.
        work = jnp.concatenate([d2, best_d], axis=1)    # (tq, tc + K)
        idxb = jnp.concatenate([col, best_i], axis=1)
        new_d = []
        new_i = []
        for _ in range(K):                              # static unrolled
            wmin = jnp.min(work, axis=-1, keepdims=True)             # (tq, 1)
            widx = jnp.min(jnp.where(work <= wmin, idxb, BIG),
                           axis=-1, keepdims=True)                   # (tq, 1)
            new_d.append(wmin)
            new_i.append(widx)
            # Mask by (unique) global index so ties never drop a candidate.
            work = jnp.where(idxb == widx, jnp.inf, work)
        return (jnp.concatenate(new_d, axis=1),
                jnp.concatenate(new_i, axis=1))

    init = (jnp.full((tq, K), jnp.inf, jnp.float32),
            jnp.zeros((tq, K), jnp.int32))
    best_d, best_i = lax.fori_loop(0, n_chunks, chunk_body, init)
    d_ref[...] = best_d
    i_ref[...] = best_i


def knn_topk(query_points, tgt_points, *, K=5, tq=128, tc=512):
    """Squared distances + indices of the K nearest target points."""
    Q = query_points.shape[0]
    N = tgt_points.shape[0]
    Qp = ((Q + tq - 1) // tq) * tq
    tc = max(128, min(tc, ((N + 127) // 128) * 128))
    Np = ((N + tc - 1) // tc) * tc

    q_pad = jnp.zeros((Qp, 3), jnp.float32).at[:Q].set(
        query_points.astype(jnp.float32))
    # Pad target points with a large *finite* sentinel coordinate: padded
    # columns get huge-but-finite distances, so no in-kernel validity mask
    # (and no inf arithmetic) is needed.
    p_cm = jnp.full((3, Np), 1e8, jnp.float32).at[:, :N].set(
        tgt_points.astype(jnp.float32).T)

    knn_d, knn_i = pl.pallas_call(
        functools.partial(_knn_kernel, K=K, tc=tc),
        out_shape=(jax.ShapeDtypeStruct((Qp, K), jnp.float32),
                   jax.ShapeDtypeStruct((Qp, K), jnp.int32)),
        grid_spec=pltpu.PrefetchScalarGridSpec(
            num_scalar_prefetch=0,
            grid=(Qp // tq,),
            in_specs=[
                pl.BlockSpec((tq, 3), lambda qi: (qi, 0)),
                pl.BlockSpec((3, Np), lambda qi: (0, 0)),
            ],
            out_specs=[pl.BlockSpec((tq, K), lambda qi: (qi, 0)),
                       pl.BlockSpec((tq, K), lambda qi: (qi, 0))],
        ),
        compiler_params=pltpu.CompilerParams(
            dimension_semantics=("parallel",),
            vmem_limit_bytes=16 * 1024 * 1024),
    )(q_pad, p_cm)
    return knn_d[:Q], jnp.minimum(knn_i[:Q], N - 1)


# ----------------------------------------------------------------------------
# DDM_M2P forward (Pallas kernels + plain-JAX glue)
# ----------------------------------------------------------------------------
def _barycentric_weights_for_faces(query_points, a, b, c):
    """Exact O(Q) re-derivation of (w1, w2, w3) for the selected faces."""
    ab = b - a
    ac = c - a
    ap = query_points - a
    bp = query_points - b
    cp = query_points - c
    d1 = jnp.sum(ab * ap, -1); d2 = jnp.sum(ac * ap, -1)
    d3 = jnp.sum(ab * bp, -1); d4 = jnp.sum(ac * bp, -1)
    d5 = jnp.sum(ab * cp, -1); d6 = jnp.sum(ac * cp, -1)
    v, w = _tri_barycentric(d1, d2, d3, d4, d5, d6)
    return 1.0 - v - w, v, w


def ddm_m2p_forward(src_v, src_f, tgt_points, noise, *, beta=0.0, K=5, std=0.05):
    src_f1 = src_v[src_f[:, 0]]
    src_f2 = src_v[src_f[:, 1]]
    src_f3 = src_v[src_f[:, 2]]
    src_center = (src_f1 + src_f2 + src_f3) / 3.0

    qp = (tgt_points[:, None, :] + std * noise).reshape(-1, 3)
    query_points = jnp.concatenate([qp, src_center], axis=0)

    # --- closest point on the source surface (kernel 1 + exact glue) -------
    idx = closest_point_on_surface(query_points, src_f1, src_f2, src_f3)
    sel1 = src_f1[idx]; sel2 = src_f2[idx]; sel3 = src_f3[idx]
    w1, w2, w3 = _barycentric_weights_for_faces(query_points, sel1, sel2, sel3)
    closest_src = w1[:, None] * sel1 + w2[:, None] * sel2 + w3[:, None] * sel3
    dir_src = query_points - closest_src
    udf_src = jnp.linalg.norm(dir_src + 1e-10, axis=-1, keepdims=True)
    geo_src = jnp.concatenate([dir_src, udf_src], axis=1)

    # --- K-NN inverse-distance direction to the target cloud (kernel 2) ----
    knn_d, knn_i = knn_topk(query_points, tgt_points, K=K)
    knn_pc = tgt_points[knn_i]                           # (Q, K, 3)
    inv = 1.0 / (knn_d + 1e-8)
    weights = inv / jnp.sum(inv, axis=-1, keepdims=True)
    dir_tgt = jnp.sum((query_points[:, None, :] - knn_pc) * weights[..., None],
                      axis=1)
    udf_tgt = jnp.linalg.norm(dir_tgt + 1e-10, axis=1)
    geo_tgt = jnp.concatenate([dir_tgt, udf_tgt[:, None]], axis=-1)

    errors = jnp.sum(jnp.abs(geo_src - geo_tgt), axis=-1)
    query_weights = jnp.exp(-errors * beta)
    return jnp.mean(errors * query_weights)


# ----------------------------------------------------------------------------
# Pure-JAX reference (brute force) for correctness check
# ----------------------------------------------------------------------------
def ddm_m2p_reference(src_v, src_f, tgt_points, noise, *, beta=0.0, K=5, std=0.05):
    src_f1 = src_v[src_f[:, 0]]
    src_f2 = src_v[src_f[:, 1]]
    src_f3 = src_v[src_f[:, 2]]
    src_center = (src_f1 + src_f2 + src_f3) / 3.0
    qp = (tgt_points[:, None, :] + std * noise).reshape(-1, 3)
    query_points = jnp.concatenate([qp, src_center], axis=0)

    a = src_f1[None]; b = src_f2[None]; c = src_f3[None]
    p = query_points[:, None, :]
    ab = b - a; ac = c - a
    ap = p - a; bp = p - b; cp = p - c
    d1 = jnp.sum(ab * ap, -1); d2 = jnp.sum(ac * ap, -1)
    d3 = jnp.sum(ab * bp, -1); d4 = jnp.sum(ac * bp, -1)
    d5 = jnp.sum(ab * cp, -1); d6 = jnp.sum(ac * cp, -1)
    v, w = _tri_barycentric(d1, d2, d3, d4, d5, d6)
    cl = a + v[..., None] * ab + w[..., None] * ac
    dist2 = jnp.sum((p - cl) ** 2, -1)
    idx = jnp.argmin(dist2, axis=-1)
    rows = jnp.arange(query_points.shape[0])
    w2_ = v[rows, idx]; w3_ = w[rows, idx]; w1_ = 1.0 - w2_ - w3_
    sel1 = src_f1[idx]; sel2 = src_f2[idx]; sel3 = src_f3[idx]
    closest_src = w1_[:, None] * sel1 + w2_[:, None] * sel2 + w3_[:, None] * sel3
    dir_src = query_points - closest_src
    udf_src = jnp.linalg.norm(dir_src + 1e-10, axis=-1, keepdims=True)
    geo_src = jnp.concatenate([dir_src, udf_src], axis=1)

    d2n = jnp.sum((query_points[:, None, :] - tgt_points[None]) ** 2, -1)
    neg, kidx = lax.top_k(-d2n, K)
    dists = -neg
    knn_pc = tgt_points[kidx]
    inv = 1.0 / (dists + 1e-8)
    weights = inv / jnp.sum(inv, axis=-1, keepdims=True)
    dirk = query_points[:, None, :] - knn_pc
    dir_tgt = jnp.sum(dirk * weights[..., None], axis=1)
    udf_tgt = jnp.linalg.norm(dir_tgt + 1e-10, axis=1)
    geo_tgt = jnp.concatenate([dir_tgt, udf_tgt[:, None]], axis=-1)

    errors = jnp.sum(jnp.abs(geo_src - geo_tgt), axis=-1)
    query_weights = jnp.exp(-errors * beta)
    return jnp.mean(errors * query_weights)


if __name__ == "__main__":
    key = jax.random.PRNGKey(0)
    kv, kf, kt, kn = jax.random.split(key, 4)

    V, F, Nt = 80, 200, 64
    up_ratio, beta, K, std = 3, 0.0, 5, 0.05

    src_v = jax.random.normal(kv, (V, 3), jnp.float32)
    base = jax.random.randint(kf, (F,), 0, V)
    src_f = jnp.stack([base, (base + 7) % V, (base + 23) % V], axis=1).astype(jnp.int32)
    tgt_points = 0.8 * jax.random.normal(kt, (Nt, 3), jnp.float32)
    noise = jax.random.normal(kn, (Nt, up_ratio, 3), jnp.float32)

    fwd = jax.jit(functools.partial(ddm_m2p_forward, beta=beta, K=K, std=std))
    out = jax.block_until_ready(fwd(src_v, src_f, tgt_points, noise))

    ref = ddm_m2p_reference(src_v, src_f, tgt_points, noise, beta=beta, K=K, std=std)
    assert bool(jnp.isfinite(out)), out
    assert bool(jnp.allclose(out, ref, rtol=1e-3, atol=1e-5)), (float(out), float(ref))
    print("KERNEL_OK")
</pallas_src>

<mosaic_0001>
module attributes {stable_mosaic.version = 11 : i64} {
  func.func @_cps_kernel(%arg0: i32, %arg1: i32, %arg2: memref<128x8xf32, #tpu.memory_space<vmem>>, %arg3: memref<32x256xf32, #tpu.memory_space<vmem>>, %arg4: memref<128x1xi32, #tpu.memory_space<vmem>>, %arg5: memref<128x1xf32, #tpu.memory_space<vmem>>) attributes {dimension_semantics = [#tpu.dimension_semantics<parallel>, #tpu.dimension_semantics<arbitrary>], iteration_bounds = array<i64: 4, 1>, scalar_prefetch = 0 : i64, scratch_operands = 1 : i64, tpu.core_type = #tpu.core_type<tc>, window_params = [{transform_indices = @transform_0, window_bounds = array<i64: 128, 8>}, {transform_indices = @transform_1, window_bounds = array<i64: 32, 256>}, {transform_indices = @transform_2, window_bounds = array<i64: 128, 1>}]} {
    %c0_i32 = arith.constant 0 : i32
    %0 = arith.cmpi eq, %arg1, %c0_i32 : i32
    %1 = arith.extui %0 : i1 to i32
    %c0_i32_0 = arith.constant 0 : i32
    %2 = arith.cmpi ne, %1, %c0_i32_0 : i32
    scf.if %2 {
      %cst_13 = arith.constant 0x7F800000 : f32
      %21 = vector.broadcast %cst_13 : f32 to vector<128x1xf32>
      %c0_14 = arith.constant 0 : index
      %c0_15 = arith.constant 0 : index
      %22 = vector.load %arg5[%c0_14, %c0_15] : memref<128x1xf32, #tpu.memory_space<vmem>>, vector<128x1xf32>
      tpu.vector_store %arg5[%c0_14, %c0_15], %21 {strides = array<i32>} : memref<128x1xf32, #tpu.memory_space<vmem>>, vector<128x1xf32>,
      %c0_i32_16 = arith.constant 0 : i32
      %23 = vector.broadcast %c0_i32_16 : i32 to vector<128x1xi32>
      %c0_17 = arith.constant 0 : index
      %c0_18 = arith.constant 0 : index
      %24 = vector.load %arg4[%c0_17, %c0_18] : memref<128x1xi32, #tpu.memory_space<vmem>>, vector<128x1xi32>
      tpu.vector_store %arg4[%c0_17, %c0_18], %23 {strides = array<i32>} : memref<128x1xi32, #tpu.memory_space<vmem>>, vector<128x1xi32>,
    } else {
    }
    %c0 = arith.constant 0 : index
    %c0_1 = arith.constant 0 : index
    %3 = vector.load %arg2[%c0, %c0_1] : memref<128x8xf32, #tpu.memory_space<vmem>>, vector<128x8xf32>
    %4 = vector.extract_strided_slice %3 {offsets = [0, 0], sizes = [128, 1], strides = [1, 1]} : vector<128x8xf32> to vector<128x1xf32>
    %5 = vector.extract_strided_slice %3 {offsets = [0, 1], sizes = [128, 1], strides = [1, 1]} : vector<128x8xf32> to vector<128x1xf32>
    %6 = vector.extract_strided_slice %3 {offsets = [0, 2], sizes = [128, 1], strides = [1, 1]} : vector<128x8xf32> to vector<128x1xf32>
    %cst = arith.constant 0x7F800000 : f32
    %7 = vector.broadcast %cst : f32 to vector<128x1xf32>
    %c0_i32_2 = arith.constant 0 : i32
    %8 = vector.broadcast %c0_i32_2 : i32 to vector<128x1xi32>
    %c0_i32_3 = arith.constant 0 : i32
    %c2_i32 = arith.constant 2 : i32
    %9 = arith.addi %c0_i32_3, %c2_i32 : i32
    %c1_i32 = arith.constant 1 : i32
    %10:2 = scf.for %arg6 = %c0_i32_3 to %9 step %c1_i32 iter_args(%arg7 = %7, %arg8 = %8) -> (vector<128x1xf32>, vector<128x1xi32>)  : i32 {
      %c128_i32 = arith.constant 128 : i32
      %21 = arith.muli %arg6, %c128_i32 : i32
      %22 = tpu.assume_multiple %21, 128 : i32
      %c0_13 = arith.constant 0 : index
      %23 = arith.index_cast %22 : i32 to index
      %24 = vector.load %arg3[%c0_13, %23] : memref<32x256xf32, #tpu.memory_space<vmem>>, vector<8x128xf32>
      %c8 = arith.constant 8 : index
      %25 = arith.index_cast %22 : i32 to index
      %26 = vector.load %arg3[%c8, %25] : memref<32x256xf32, #tpu.memory_space<vmem>>, vector<8x128xf32>
      %cst_14 = arith.constant dense<0.000000e+00> : vector<128x128xf32>
      %27 = tpu.matmul %3, %24, %cst_14 {dimension_numbers = #tpu.dot_dimension_numbers<[1], [0], [0], [1], [0, 0, 1, 1], [], []>} : vector<128x8xf32>, vector<8x128xf32>, vector<128x128xf32> -> vector<128x128xf32>
      %cst_15 = arith.constant dense<0.000000e+00> : vector<128x128xf32>
      %28 = tpu.matmul %3, %26, %cst_15 {dimension_numbers = #tpu.dot_dimension_numbers<[1], [0], [0], [1], [0, 0, 1, 1], [], []>} : vector<128x8xf32>, vector<8x128xf32>, vector<128x128xf32> -> vector<128x128xf32>
      %c19 = arith.constant 19 : index
      %29 = arith.index_cast %22 : i32 to index
      %30 = vector.load %arg3[%c19, %29] : memref<32x256xf32, #tpu.memory_space<vmem>>, vector<1x128xf32>
      %c20 = arith.constant 20 : index
      %31 = arith.index_cast %22 : i32 to index
      %32 = vector.load %arg3[%c20, %31] : memref<32x256xf32, #tpu.memory_space<vmem>>, vector<1x128xf32>
      %c21 = arith.constant 21 : index
      %33 = arith.index_cast %22 : i32 to index
      %34 = vector.load %arg3[%c21, %33] : memref<32x256xf32, #tpu.memory_space<vmem>>, vector<1x128xf32>
      %c22 = arith.constant 22 : index
      %35 = arith.index_cast %22 : i32 to index
      %36 = vector.load %arg3[%c22, %35] : memref<32x256xf32, #tpu.memory_space<vmem>>, vector<1x128xf32>
      %c23 = arith.constant 23 : index
      %37 = arith.index_cast %22 : i32 to index
      %38 = vector.load %arg3[%c23, %37] : memref<32x256xf32, #tpu.memory_space<vmem>>, vector<1x128xf32>
      %c24 = arith.constant 24 : index
      %39 = arith.index_cast %22 : i32 to index
      %40 = vector.load %arg3[%c24, %39] : memref<32x256xf32, #tpu.memory_space<vmem>>, vector<1x128xf32>
      %c25 = arith.constant 25 : index
      %41 = arith.index_cast %22 : i32 to index
      %42 = vector.load %arg3[%c25, %41] : memref<32x256xf32, #tpu.memory_space<vmem>>, vector<1x128xf32>
      %43 = vector.broadcast %30 : vector<1x128xf32> to vector<128x128xf32>
      %44 = arith.subf %27, %43 : vector<128x128xf32>
      %45 = vector.broadcast %32 : vector<1x128xf32> to vector<128x128xf32>
      %46 = arith.subf %27, %45 : vector<128x128xf32>
      %47 = vector.broadcast %32 : vector<1x128xf32> to vector<128x128xf32>
      %48 = arith.subf %28, %47 : vector<128x128xf32>
      %49 = vector.broadcast %34 : vector<1x128xf32> to vector<128x128xf32>
      %50 = arith.subf %28, %49 : vector<128x128xf32>
      %51 = arith.mulf %27, %48 : vector<128x128xf32>
      %52 = arith.mulf %44, %28 : vector<128x128xf32>
      %53 = arith.subf %51, %52 : vector<128x128xf32>
      %54 = arith.mulf %46, %28 : vector<128x128xf32>
      %55 = arith.mulf %27, %50 : vector<128x128xf32>
      %56 = arith.subf %54, %55 : vector<128x128xf32>
      %57 = arith.mulf %44, %50 : vector<128x128xf32>
      %58 = arith.mulf %46, %48 : vector<128x128xf32>
      %59 = arith.subf %57, %58 : vector<128x128xf32>
      %60 = vector.broadcast %36 : vector<1x128xf32> to vector<128x128xf32>
      %61 = arith.mulf %27, %60 : vector<128x128xf32>
      %62 = vector.broadcast %38 : vector<1x128xf32> to vector<128x128xf32>
      %63 = arith.mulf %28, %62 : vector<128x128xf32>
      %64 = arith.subf %48, %44 : vector<128x128xf32>
      %65 = vector.broadcast %40 : vector<1x128xf32> to vector<128x128xf32>
      %66 = arith.mulf %64, %65 : vector<128x128xf32>
      %67 = vector.broadcast %42 : vector<1x128xf32> to vector<128x128xf32>
      %68 = arith.mulf %56, %67 : vector<128x128xf32>
      %69 = vector.broadcast %42 : vector<1x128xf32> to vector<128x128xf32>
      %70 = arith.mulf %53, %69 : vector<128x128xf32>
      %cst_16 = arith.constant 0.000000e+00 : f32
      %71 = vector.broadcast %cst_16 : f32 to vector<128x128xf32>
      %72 = arith.cmpf ole, %27, %71 : vector<128x128xf32>
      %cst_17 = arith.constant 0.000000e+00 : f32
      %73 = vector.broadcast %cst_17 : f32 to vector<128x128xf32>
      %74 = arith.cmpf ole, %28, %73 : vector<128x128xf32>
      %75 = arith.andi %72, %74 : vector<128x128xi1>
      %cst_18 = arith.constant 0.000000e+00 : f32
      %76 = vector.broadcast %cst_18 : f32 to vector<128x128xf32>
      %77 = arith.cmpf oge, %44, %76 : vector<128x128xf32>
      %78 = arith.cmpf ole, %48, %44 : vector<128x128xf32>
      %79 = arith.andi %77, %78 : vector<128x128xi1>
      %cst_19 = arith.constant 0.000000e+00 : f32
      %80 = vector.broadcast %cst_19 : f32 to vector<128x128xf32>
      %81 = arith.cmpf ole, %53, %80 : vector<128x128xf32>
      %cst_20 = arith.constant 0.000000e+00 : f32
      %82 = vector.broadcast %cst_20 : f32 to vector<128x128xf32>
      %83 = arith.cmpf oge, %27, %82 : vector<128x128xf32>
      %84 = arith.andi %81, %83 : vector<128x128xi1>
      %cst_21 = arith.constant 0.000000e+00 : f32
      %85 = vector.broadcast %cst_21 : f32 to vector<128x128xf32>
      %86 = arith.cmpf ole, %44, %85 : vector<128x128xf32>
      %87 = arith.andi %84, %86 : vector<128x128xi1>
      %cst_22 = arith.constant 0.000000e+00 : f32
      %88 = vector.broadcast %cst_22 : f32 to vector<128x128xf32>
      %89 = arith.cmpf oge, %50, %88 : vector<128x128xf32>
      %90 = arith.cmpf ole, %46, %50 : vector<128x128xf32>
      %91 = arith.andi %89, %90 : vector<128x128xi1>
      %cst_23 = arith.constant 0.000000e+00 : f32
      %92 = vector.broadcast %cst_23 : f32 to vector<128x128xf32>
      %93 = arith.cmpf ole, %56, %92 : vector<128x128xf32>
      %cst_24 = arith.constant 0.000000e+00 : f32
      %94 = vector.broadcast %cst_24 : f32 to vector<128x128xf32>
      %95 = arith.cmpf oge, %28, %94 : vector<128x128xf32>
      %96 = arith.andi %93, %95 : vector<128x128xi1>
      %cst_25 = arith.constant 0.000000e+00 : f32
      %97 = vector.broadcast %cst_25 : f32 to vector<128x128xf32>
      %98 = arith.cmpf ole, %50, %97 : vector<128x128xf32>
      %99 = arith.andi %96, %98 : vector<128x128xi1>
      %cst_26 = arith.constant 0.000000e+00 : f32
      %100 = vector.broadcast %cst_26 : f32 to vector<128x128xf32>
      %101 = arith.cmpf ole, %59, %100 : vector<128x128xf32>
      %102 = arith.subf %48, %44 : vector<128x128xf32>
      %cst_27 = arith.constant 0.000000e+00 : f32
      %103 = vector.broadcast %cst_27 : f32 to vector<128x128xf32>
      %104 = arith.cmpf oge, %102, %103 : vector<128x128xf32>
      %105 = arith.andi %101, %104 : vector<128x128xi1>
      %106 = arith.subf %46, %50 : vector<128x128xf32>
      %cst_28 = arith.constant 0.000000e+00 : f32
      %107 = vector.broadcast %cst_28 : f32 to vector<128x128xf32>
      %108 = arith.cmpf oge, %106, %107 : vector<128x128xf32>
      %109 = arith.andi %105, %108 : vector<128x128xi1>
      %cst_29 = arith.constant 0.000000e+00 : f32
      %110 = vector.broadcast %cst_29 : f32 to vector<128x128xf32>
      %cst_30 = arith.constant 1.000000e+00 : f32
      %111 = vector.broadcast %cst_30 : f32 to vector<128x128xf32>
      %cst_31 = arith.constant 1.000000e+00 : f32
      %112 = vector.broadcast %cst_31 : f32 to vector<128x128xf32>
      %113 = arith.subf %112, %66 : vector<128x128xf32>
      %114 = arith.select %109, %113, %68 : vector<128x128xi1>, vector<128x128xf32>
      %115 = arith.select %99, %110, %114 : vector<128x128xi1>, vector<128x128xf32>
      %116 = arith.select %91, %110, %115 : vector<128x128xi1>, vector<128x128xf32>
      %117 = arith.select %87, %61, %116 : vector<128x128xi1>, vector<128x128xf32>
      %118 = arith.select %79, %111, %117 : vector<128x128xi1>, vector<128x128xf32>
      %119 = arith.select %75, %110, %118 : vector<128x128xi1>, vector<128x128xf32>
      %120 = arith.select %109, %66, %70 : vector<128x128xi1>, vector<128x128xf32>
      %121 = arith.select %99, %63, %120 : vector<128x128xi1>, vector<128x128xf32>
      %122 = arith.select %91, %111, %121 : vector<128x128xi1>, vector<128x128xf32>
      %123 = arith.select %87, %110, %122 : vector<128x128xi1>, vector<128x128xf32>
      %124 = arith.select %79, %110, %123 : vector<128x128xi1>, vector<128x128xf32>
      %125 = arith.select %75, %110, %124 : vector<128x128xi1>, vector<128x128xf32>
      %c16 = arith.constant 16 : index
      %126 = arith.index_cast %22 : i32 to index
      %127 = vector.load %arg3[%c16, %126] : memref<32x256xf32, #tpu.memory_space<vmem>>, vector<1x128xf32>
      %c17 = arith.constant 17 : index
      %128 = arith.index_cast %22 : i32 to index
      %129 = vector.load %arg3[%c17, %128] : memref<32x256xf32, #tpu.memory_space<vmem>>, vector<1x128xf32>
      %c18 = arith.constant 18 : index
      %130 = arith.index_cast %22 : i32 to index
      %131 = vector.load %arg3[%c18, %130] : memref<32x256xf32, #tpu.memory_space<vmem>>, vector<1x128xf32>
      %132 = vector.extract_strided_slice %24 {offsets = [0, 0], sizes = [1, 128], strides = [1, 1]} : vector<8x128xf32> to vector<1x128xf32>
      %133 = vector.extract_strided_slice %24 {offsets = [1, 0], sizes = [1, 128], strides = [1, 1]} : vector<8x128xf32> to vector<1x128xf32>
      %134 = vector.extract_strided_slice %24 {offsets = [2, 0], sizes = [1, 128], strides = [1, 1]} : vector<8x128xf32> to vector<1x128xf32>
      %135 = vector.extract_strided_slice %26 {offsets = [0, 0], sizes = [1, 128], strides = [1, 1]} : vector<8x128xf32> to vector<1x128xf32>
      %136 = vector.extract_strided_slice %26 {offsets = [1, 0], sizes = [1, 128], strides = [1, 1]} : vector<8x128xf32> to vector<1x128xf32>
      %137 = vector.extract_strided_slice %26 {offsets = [2, 0], sizes = [1, 128], strides = [1, 1]} : vector<8x128xf32> to vector<1x128xf32>
      %138 = vector.broadcast %4 : vector<128x1xf32> to vector<128x128xf32>
      %139 = vector.broadcast %127 : vector<1x128xf32> to vector<128x128xf32>
      %140 = arith.subf %138, %139 : vector<128x128xf32>
      %141 = vector.broadcast %132 : vector<1x128xf32> to vector<128x128xf32>
      %142 = arith.mulf %119, %141 : vector<128x128xf32>
      %143 = arith.subf %140, %142 : vector<128x128xf32>
      %144 = vector.broadcast %135 : vector<1x128xf32> to vector<128x128xf32>
      %145 = arith.mulf %125, %144 : vector<128x128xf32>
      %146 = arith.subf %143, %145 : vector<128x128xf32>
      %147 = vector.broadcast %5 : vector<128x1xf32> to vector<128x128xf32>
      %148 = vector.broadcast %129 : vector<1x128xf32> to vector<128x128xf32>
      %149 = arith.subf %147, %148 : vector<128x128xf32>
      %150 = vector.broadcast %133 : vector<1x128xf32> to vector<128x128xf32>
      %151 = arith.mulf %119, %150 : vector<128x128xf32>
      %152 = arith.subf %149, %151 : vector<128x128xf32>
      %153 = vector.broadcast %136 : vector<1x128xf32> to vector<128x128xf32>
      %154 = arith.mulf %125, %153 : vector<128x128xf32>
      %155 = arith.subf %152, %154 : vector<128x128xf32>
      %156 = vector.broadcast %6 : vector<128x1xf32> to vector<128x128xf32>
      %157 = vector.broadcast %131 : vector<1x128xf32> to vector<128x128xf32>
      %158 = arith.subf %156, %157 : vector<128x128xf32>
      %159 = vector.broadcast %134 : vector<1x128xf32> to vector<128x128xf32>
      %160 = arith.mulf %119, %159 : vector<128x128xf32>
      %161 = arith.subf %158, %160 : vector<128x128xf32>
      %162 = vector.broadcast %137 : vector<1x128xf32> to vector<128x128xf32>
      %163 = arith.mulf %125, %162 : vector<128x128xf32>
      %164 = arith.subf %161, %163 : vector<128x128xf32>
      %165 = arith.mulf %146, %146 : vector<128x128xf32>
      %166 = arith.mulf %155, %155 : vector<128x128xf32>
      %167 = arith.addf %165, %166 : vector<128x128xf32>
      %168 = arith.mulf %164, %164 : vector<128x128xf32>
      %169 = arith.addf %167, %168 : vector<128x128xf32>
      %cst_32 = arith.constant dense<0x7F800000> : vector<128xf32>
      %170 = vector.multi_reduction <minimumf>, %169, %cst_32 [1] : vector<128x128xf32> to vector<128xf32>
      %171 = vector.shape_cast %170 : vector<128xf32> to vector<128x1xf32>
      %172 = tpu.iota {dimensions = array<i32: 1>} : vector<128x128xi32>
      %173 = vector.broadcast %171 : vector<128x1xf32> to vector<128x128xf32>
      %174 = arith.cmpf ole, %169, %173 : vector<128x128xf32>
      %c128_i32_33 = arith.constant 128 : i32
      %175 = vector.broadcast %c128_i32_33 : i32 to vector<128x128xi32>
      %176 = arith.select %174, %172, %175 : vector<128x128xi1>, vector<128x128xi32>
      %cst_34 = arith.constant dense<2147483647> : vector<128xi32>
      %177 = vector.multi_reduction <minsi>, %176, %cst_34 [1] : vector<128x128xi32> to vector<128xi32>
      %178 = vector.shape_cast %177 : vector<128xi32> to vector<128x1xi32>
      %179 = vector.broadcast %21 : i32 to vector<128x1xi32>
      %180 = arith.addi %178, %179 : vector<128x1xi32>
      %181 = arith.cmpf olt, %171, %arg7 : vector<128x1xf32>
      %182 = arith.select %181, %171, %arg7 : vector<128x1xi1>, vector<128x1xf32>
      %183 = arith.select %181, %180, %arg8 : vector<128x1xi1>, vector<128x1xi32>
      scf.yield %182, %183 : vector<128x1xf32>, vector<128x1xi32>
    }
    %c2_i32_4 = arith.constant 2 : i32
    %c0_5 = arith.constant 0 : index
    %c0_6 = arith.constant 0 : index
    %11 = vector.load %arg5[%c0_5, %c0_6] : memref<128x1xf32, #tpu.memory_space<vmem>>, vector<128x1xf32>
    %12 = arith.cmpf olt, %10#0, %11 : vector<128x1xf32>
    %13 = arith.select %12, %10#0, %11 : vector<128x1xi1>, vector<128x1xf32>
    %c0_7 = arith.constant 0 : index
    %c0_8 = arith.constant 0 : index
    %14 = vector.load %arg5[%c0_7, %c0_8] : memref<128x1xf32, #tpu.memory_space<vmem>>, vector<128x1xf32>
    tpu.vector_store %arg5[%c0_7, %c0_8], %13 {strides = array<i32>} : memref<128x1xf32, #tpu.memory_space<vmem>>, vector<128x1xf32>,
    %c256_i32 = arith.constant 256 : i32
    %15 = arith.muli %arg1, %c256_i32 : i32
    %16 = vector.broadcast %15 : i32 to vector<128x1xi32>
    %17 = arith.addi %16, %10#1 : vector<128x1xi32>
    %c0_9 = arith.constant 0 : index
    %c0_10 = arith.constant 0 : index
    %18 = vector.load %arg4[%c0_9, %c0_10] : memref<128x1xi32, #tpu.memory_space<vmem>>, vector<128x1xi32>
    %19 = arith.select %12, %17, %18 : vector<128x1xi1>, vector<128x1xi32>
    %c0_11 = arith.constant 0 : index
    %c0_12 = arith.constant 0 : index
    %20 = vector.load %arg4[%c0_11, %c0_12] : memref<128x1xi32, #tpu.memory_space<vmem>>, vector<128x1xi32>
    tpu.vector_store %arg4[%c0_11, %c0_12], %19 {strides = array<i32>} : memref<128x1xi32, #tpu.memory_space<vmem>>, vector<128x1xi32>,
    return
  }
  func.func @transform_0(%arg0: i32, %arg1: i32) -> (i32, i32) {
    %c0_i32 = arith.constant 0 : i32
    %c0_i32_0 = arith.constant 0 : i32
    return %arg0, %c0_i32 : i32, i32
  }
  func.func @transform_1(%arg0: i32, %arg1: i32) -> (i32, i32) {
    %c0_i32 = arith.constant 0 : i32
    %c0_i32_0 = arith.constant 0 : i32
    return %c0_i32, %arg1 : i32, i32
  }
  func.func @transform_2(%arg0: i32, %arg1: i32) -> (i32, i32) {
    %c0_i32 = arith.constant 0 : i32
    %c0_i32_0 = arith.constant 0 : i32
    return %arg0, %c0_i32 : i32, i32
  }
}

module attributes {stable_mosaic.version = 11 : i64} {
  func.func @_knn_kernel(%arg0: i32, %arg1: memref<128x3xf32, #tpu.memory_space<vmem>>, %arg2: memref<3x128xf32, #tpu.memory_space<vmem>>, %arg3: memref<128x5xf32, #tpu.memory_space<vmem>>, %arg4: memref<128x5xi32, #tpu.memory_space<vmem>>) attributes {dimension_semantics = [#tpu.dimension_semantics<parallel>], iteration_bounds = array<i64: 4>, scalar_prefetch = 0 : i64, scratch_operands = 0 : i64, tpu.core_type = #tpu.core_type<tc>, window_params = [{transform_indices = @transform_0, window_bounds = array<i64: 128, 3>}, {pipeline_mode = #tpu.pipeline_mode<synchronous>, transform_indices = @transform_1, window_bounds = array<i64: 3, 128>}, {transform_indices = @transform_2, window_bounds = array<i64: 128, 5>}, {transform_indices = @transform_3, window_bounds = array<i64: 128, 5>}]} {
    %c0 = arith.constant 0 : index
    %c0_0 = arith.constant 0 : index
    %0 = vector.load %arg1[%c0, %c0_0] : memref<128x3xf32, #tpu.memory_space<vmem>>, vector<128x3xf32>
    %1 = vector.extract_strided_slice %0 {offsets = [0, 0], sizes = [128, 1], strides = [1, 1]} : vector<128x3xf32> to vector<128x1xf32>
    %2 = vector.extract_strided_slice %0 {offsets = [0, 1], sizes = [128, 1], strides = [1, 1]} : vector<128x3xf32> to vector<128x1xf32>
    %3 = vector.extract_strided_slice %0 {offsets = [0, 2], sizes = [128, 1], strides = [1, 1]} : vector<128x3xf32> to vector<128x1xf32>
    %cst = arith.constant 0x7F800000 : f32
    %4 = vector.broadcast %cst : f32 to vector<128x5xf32>
    %c0_i32 = arith.constant 0 : i32
    %5 = vector.broadcast %c0_i32 : i32 to vector<128x5xi32>
    %c1073741824_i32 = arith.constant 1073741824 : i32
    %c0_i32_1 = arith.constant 0 : i32
    %c128_i32 = arith.constant 128 : i32
    %6 = arith.muli %c0_i32_1, %c128_i32 : i32
    %7 = tpu.assume_multiple %6, 128 : i32
    %c0_2 = arith.constant 0 : index
    %8 = arith.index_cast %7 : i32 to index
    %9 = vector.load %arg2[%c0_2, %8] : memref<3x128xf32, #tpu.memory_space<vmem>>, vector<1x128xf32>
    %c1 = arith.constant 1 : index
    %10 = arith.index_cast %7 : i32 to index
    %11 = vector.load %arg2[%c1, %10] : memref<3x128xf32, #tpu.memory_space<vmem>>, vector<1x128xf32>
    %c2 = arith.constant 2 : index
    %12 = arith.index_cast %7 : i32 to index
    %13 = vector.load %arg2[%c2, %12] : memref<3x128xf32, #tpu.memory_space<vmem>>, vector<1x128xf32>
    %14 = vector.broadcast %1 : vector<128x1xf32> to vector<128x128xf32>
    %15 = vector.broadcast %9 : vector<1x128xf32> to vector<128x128xf32>
    %16 = arith.subf %14, %15 : vector<128x128xf32>
    %17 = arith.mulf %16, %16 : vector<128x128xf32>
    %18 = vector.broadcast %2 : vector<128x1xf32> to vector<128x128xf32>
    %19 = vector.broadcast %11 : vector<1x128xf32> to vector<128x128xf32>
    %20 = arith.subf %18, %19 : vector<128x128xf32>
    %21 = arith.mulf %20, %20 : vector<128x128xf32>
    %22 = arith.addf %17, %21 : vector<128x128xf32>
    %23 = vector.broadcast %3 : vector<128x1xf32> to vector<128x128xf32>
    %24 = vector.broadcast %13 : vector<1x128xf32> to vector<128x128xf32>
    %25 = arith.subf %23, %24 : vector<128x128xf32>
    %26 = arith.mulf %25, %25 : vector<128x128xf32>
    %27 = arith.addf %22, %26 : vector<128x128xf32>
    %28 = tpu.iota {dimensions = array<i32: 1>} : vector<128x128xi32>
    %29 = vector.broadcast %6 : i32 to vector<128x128xi32>
    %30 = arith.addi %28, %29 : vector<128x128xi32>
    %31 = tpu.concatenate %27, %4 in 1 : vector<128x128xf32>, vector<128x5xf32> -> vector<128x133xf32>
    %32 = tpu.concatenate %30, %5 in 1 : vector<128x128xi32>, vector<128x5xi32> -> vector<128x133xi32>
    %cst_3 = arith.constant dense<0x7F800000> : vector<128xf32>
    %33 = vector.multi_reduction <minimumf>, %31, %cst_3 [1] : vector<128x133xf32> to vector<128xf32>
    %34 = vector.shape_cast %33 : vector<128xf32> to vector<128x1xf32>
    %35 = vector.broadcast %34 : vector<128x1xf32> to vector<128x133xf32>
    %36 = arith.cmpf ole, %31, %35 : vector<128x133xf32>
    %37 = vector.broadcast %c1073741824_i32 : i32 to vector<128x133xi32>
    %38 = arith.select %36, %32, %37 : vector<128x133xi1>, vector<128x133xi32>
    %cst_4 = arith.constant dense<2147483647> : vector<128xi32>
    %39 = vector.multi_reduction <minsi>, %38, %cst_4 [1] : vector<128x133xi32> to vector<128xi32>
    %40 = vector.shape_cast %39 : vector<128xi32> to vector<128x1xi32>
    %41 = vector.broadcast %40 : vector<128x1xi32> to vector<128x133xi32>
    %42 = arith.cmpi eq, %32, %41 : vector<128x133xi32>
    %cst_5 = arith.constant 0x7F800000 : f32
    %43 = vector.broadcast %cst_5 : f32 to vector<128x133xf32>
    %44 = arith.select %42, %43, %31 : vector<128x133xi1>, vector<128x133xf32>
    %cst_6 = arith.constant dense<0x7F800000> : vector<128xf32>
    %45 = vector.multi_reduction <minimumf>, %44, %cst_6 [1] : vector<128x133xf32> to vector<128xf32>
    %46 = vector.shape_cast %45 : vector<128xf32> to vector<128x1xf32>
    %47 = vector.broadcast %46 : vector<128x1xf32> to vector<128x133xf32>
    %48 = arith.cmpf ole, %44, %47 : vector<128x133xf32>
    %49 = vector.broadcast %c1073741824_i32 : i32 to vector<128x133xi32>
    %50 = arith.select %48, %32, %49 : vector<128x133xi1>, vector<128x133xi32>
    %cst_7 = arith.constant dense<2147483647> : vector<128xi32>
    %51 = vector.multi_reduction <minsi>, %50, %cst_7 [1] : vector<128x133xi32> to vector<128xi32>
    %52 = vector.shape_cast %51 : vector<128xi32> to vector<128x1xi32>
    %53 = vector.broadcast %52 : vector<128x1xi32> to vector<128x133xi32>
    %54 = arith.cmpi eq, %32, %53 : vector<128x133xi32>
    %cst_8 = arith.constant 0x7F800000 : f32
    %55 = vector.broadcast %cst_8 : f32 to vector<128x133xf32>
    %56 = arith.select %54, %55, %44 : vector<128x133xi1>, vector<128x133xf32>
    %cst_9 = arith.constant dense<0x7F800000> : vector<128xf32>
    %57 = vector.multi_reduction <minimumf>, %56, %cst_9 [1] : vector<128x133xf32> to vector<128xf32>
    %58 = vector.shape_cast %57 : vector<128xf32> to vector<128x1xf32>
    %59 = vector.broadcast %58 : vector<128x1xf32> to vector<128x133xf32>
    %60 = arith.cmpf ole, %56, %59 : vector<128x133xf32>
    %61 = vector.broadcast %c1073741824_i32 : i32 to vector<128x133xi32>
    %62 = arith.select %60, %32, %61 : vector<128x133xi1>, vector<128x133xi32>
    %cst_10 = arith.constant dense<2147483647> : vector<128xi32>
    %63 = vector.multi_reduction <minsi>, %62, %cst_10 [1] : vector<128x133xi32> to vector<128xi32>
    %64 = vector.shape_cast %63 : vector<128xi32> to vector<128x1xi32>
    %65 = vector.broadcast %64 : vector<128x1xi32> to vector<128x133xi32>
    %66 = arith.cmpi eq, %32, %65 : vector<128x133xi32>
    %cst_11 = arith.constant 0x7F800000 : f32
    %67 = vector.broadcast %cst_11 : f32 to vector<128x133xf32>
    %68 = arith.select %66, %67, %56 : vector<128x133xi1>, vector<128x133xf32>
    %cst_12 = arith.constant dense<0x7F800000> : vector<128xf32>
    %69 = vector.multi_reduction <minimumf>, %68, %cst_12 [1] : vector<128x133xf32> to vector<128xf32>
    %70 = vector.shape_cast %69 : vector<128xf32> to vector<128x1xf32>
    %71 = vector.broadcast %70 : vector<128x1xf32> to vector<128x133xf32>
    %72 = arith.cmpf ole, %68, %71 : vector<128x133xf32>
    %73 = vector.broadcast %c1073741824_i32 : i32 to vector<128x133xi32>
    %74 = arith.select %72, %32, %73 : vector<128x133xi1>, vector<128x133xi32>
    %cst_13 = arith.constant dense<2147483647> : vector<128xi32>
    %75 = vector.multi_reduction <minsi>, %74, %cst_13 [1] : vector<128x133xi32> to vector<128xi32>
    %76 = vector.shape_cast %75 : vector<128xi32> to vector<128x1xi32>
    %77 = vector.broadcast %76 : vector<128x1xi32> to vector<128x133xi32>
    %78 = arith.cmpi eq, %32, %77 : vector<128x133xi32>
    %cst_14 = arith.constant 0x7F800000 : f32
    %79 = vector.broadcast %cst_14 : f32 to vector<128x133xf32>
    %80 = arith.select %78, %79, %68 : vector<128x133xi1>, vector<128x133xf32>
    %cst_15 = arith.constant dense<0x7F800000> : vector<128xf32>
    %81 = vector.multi_reduction <minimumf>, %80, %cst_15 [1] : vector<128x133xf32> to vector<128xf32>
    %82 = vector.shape_cast %81 : vector<128xf32> to vector<128x1xf32>
    %83 = vector.broadcast %82 : vector<128x1xf32> to vector<128x133xf32>
    %84 = arith.cmpf ole, %80, %83 : vector<128x133xf32>
    %85 = vector.broadcast %c1073741824_i32 : i32 to vector<128x133xi32>
    %86 = arith.select %84, %32, %85 : vector<128x133xi1>, vector<128x133xi32>
    %cst_16 = arith.constant dense<2147483647> : vector<128xi32>
    %87 = vector.multi_reduction <minsi>, %86, %cst_16 [1] : vector<128x133xi32> to vector<128xi32>
    %88 = vector.shape_cast %87 : vector<128xi32> to vector<128x1xi32>
    %89 = tpu.concatenate %34, %46, %58, %70, %82 in 1 : vector<128x1xf32>, vector<128x1xf32>, vector<128x1xf32>, vector<128x1xf32>, vector<128x1xf32> -> vector<128x5xf32>
    %90 = tpu.concatenate %40, %52, %64, %76, %88 in 1 : vector<128x1xi32>, vector<128x1xi32>, vector<128x1xi32>, vector<128x1xi32>, vector<128x1xi32> -> vector<128x5xi32>
    %c1_i32 = arith.constant 1 : i32
    %c0_17 = arith.constant 0 : index
    %c0_18 = arith.constant 0 : index
    %91 = vector.load %arg3[%c0_17, %c0_18] : memref<128x5xf32, #tpu.memory_space<vmem>>, vector<128x5xf32>
    tpu.vector_store %arg3[%c0_17, %c0_18], %89 {strides = array<i32>} : memref<128x5xf32, #tpu.memory_space<vmem>>, vector<128x5xf32>,
    %c0_19 = arith.constant 0 : index
    %c0_20 = arith.constant 0 : index
    %92 = vector.load %arg4[%c0_19, %c0_20] : memref<128x5xi32, #tpu.memory_space<vmem>>, vector<128x5xi32>
    tpu.vector_store %arg4[%c0_19, %c0_20], %90 {strides = array<i32>} : memref<128x5xi32, #tpu.memory_space<vmem>>, vector<128x5xi32>,
    return
  }
  func.func @transform_0(%arg0: i32) -> (i32, i32) {
    %c0_i32 = arith.constant 0 : i32
    %c0_i32_0 = arith.constant 0 : i32
    return %arg0, %c0_i32 : i32, i32
  }
  func.func @transform_1(%arg0: i32) -> (i32, i32) {
    %c0_i32 = arith.constant 0 : i32
    %c0_i32_0 = arith.constant 0 : i32
    %c0_i32_1 = arith.constant 0 : i32
    return %c0_i32, %c0_i32_0 : i32, i32
  }
  func.func @transform_2(%arg0: i32) -> (i32, i32) {
    %c0_i32 = arith.constant 0 : i32
    %c0_i32_0 = arith.constant 0 : i32
    return %arg0, %c0_i32 : i32, i32
  }
  func.func @transform_3(%arg0: i32) -> (i32, i32) {
    %c0_i32 = arith.constant 0 : i32
    %c0_i32_0 = arith.constant 0 : i32
    return %arg0, %c0_i32 : i32, i32
  }
}

</mosaic_0001>

<llo_original>
// kernel: neg.20
$region0: #{neg.20}
  #allocation0 [shape = 's32[1]{0}', space=sflag, size = 0x4, scoped, tag = 'scoped memory for neg.20']
  %s0 = inlined_call_operand.vmem [shape: f32[200], index: 0, kind: input, shape index: {}]
  %s1 = inlined_call_operand.vmem [shape: f32[200], index: 1, kind: output, shape index: {}]
  %v2 = vld [vmem:[%s0] sm:$0x3]
  %3 = xla_tuple %v2
  %4 = xla_tuple %3
  %v5 = vxor.u32 %v2, 2147483648
  %6 = xla_tuple %v5
  %7 = vst [vmem:[%s1] sm:$0x3] %v5

// kernel: ddm_m2p_forward.2
$region0: #{ddm_m2p_forward.2}
  #allocation0 [shape = 'u32[]', space=smem, size = 0x4, offset = 0x4, fixed_abs, tag = 'smem constant byte address 0x4 - core index']
  #allocation1 [shape = 'u32[144,128]{1,0:T(1,128)}', space=vmem, size = 0x12000, scoped, tag = 'internal scratch']
  #allocation2 [shape = 'f32[128,1]{1,0:T(8,128)}', space=vmem, size = 0x10000, scoped, tag = 'scratch operand']
  %s0 = inlined_call_operand.vmem [shape: f32[512,8], index: 0, kind: input, shape index: {}]
  %s1 = inlined_call_operand.vmem [shape: f32[32,256], index: 1, kind: input, shape index: {}]
  %s2 = inlined_call_operand.vmem [shape: s32[512,1], index: 2, kind: output, shape index: {}]
  %s3 = sld [smem:[#allocation0]]
  $region52: #{ddm_m2p_forward.2} parent=0
    _
  %s5 = ssub.s32 1, %s3
  %s6 = scalar_select 0, %s5, %s3
  loop: start=0, step=1, limit=6
  $region2: #{ddm_m2p_forward.2} parent=0 // loop_pre_header
    _
  $region3: #{ddm_m2p_forward.2} parent=0 // loop_header
    %s8 = sphi 0, %s12
    %p9 = scmp.ge.s32.totalorder %s8, 6
    %s15 = sphi 0, %s27
    %s16 = sphi 0, %s23
    %s17 = sphi 0, %s15
    %s18 = sphi 0, %s16
    %s19 = sphi 0, %s17
    %s20 = sphi 0, %s18
    %s30 = sphi 0, %s32
    %s33 = sphi 0, %s30
    %s34 = sphi 0, %s33
    %s50 = sphi 0, %s34
    %s56 = sphi 0, %s58
    %s59 = sphi 0, %s56
    %s60 = sphi 0, %s59
    %s76 = sphi 0, %s60
    %s82 = sphi 0, %s84
    %s85 = sphi 0, %s82
    %s86 = sphi 0, %s85
    %s102 = sphi 0, %s86
  $region4: #{ddm_m2p_forward.2} parent=0 // loop_header_branch
    %11 = sbr.rel (%p9) target = $region8
  $region5: #{ddm_m2p_forward.2} parent=0 // loop_body
    %s13 = ssub.s32 %s8, 1
    %s14 = ssub.s32 %s8, 2
    %s21 = sadd.s32 1, %s16
    %p22 = scmp.ge.s32.totalorder %s21, 1
    %s23 = scalar_select %p22, 0, %s21
    %s24 = sadd.s32 1, %s15
    %s25 = scalar_select %p22, %s24, %s15
    %p26 = scmp.ge.s32.totalorder %s25, 4
    %s27 = scalar_select %p26, 0, %s25
    %s28 = ssub.s32 %s15, %s27
    %p29 = scmp.eq.s32.totalorder %s28, 0
    %s31 = sadd.s32 %s30, 1
    %s32 = scalar_select %p29, %s30, %s31
    %p35 = pneg %p29
    %p36 = scmp.eq.s32.totalorder %s8, 3
    %p37 = por %p35, %p36
    %p38 = scmp.ne.s32.totalorder %s30, %s33
    %p39 = scmp.eq.s32.totalorder %s8, 0
    %p40 = por %p38, %p39
    %p41 = scmp.ne.s32.totalorder %s30, %s33
    %p42 = scmp.eq.s32.totalorder %s13, 3
    %p43 = por %p41, %p42
    %p44 = scmp.ne.s32.totalorder %s33, %s34
    %p45 = scmp.eq.s32.totalorder %s13, 0
    %p46 = por %p44, %p45
    %p47 = scmp.ne.s32.totalorder %s33, %s34
    %p48 = scmp.eq.s32.totalorder %s14, 3
    %p49 = por %p47, %p48
    %p51 = scmp.ne.s32.totalorder %s34, %s50
    %p52 = scmp.eq.s32.totalorder %s14, 0
    %p53 = por %p51, %p52
    %s54 = ssub.s32 %s16, %s23
    %p55 = scmp.eq.s32.totalorder %s54, 0
    %s57 = sadd.s32 %s56, 1
    %s58 = scalar_select %p55, %s56, %s57
    %p61 = pneg %p55
    %p62 = scmp.eq.s32.totalorder %s8, 3
    %p63 = por %p61, %p62
    %p64 = scmp.ne.s32.totalorder %s56, %s59
    %p65 = scmp.eq.s32.totalorder %s8, 0
    %p66 = por %p64, %p65
    %p67 = scmp.ne.s32.totalorder %s56, %s59
    %p68 = scmp.eq.s32.totalorder %s13, 3
    %p69 = por %p67, %p68
    %p70 = scmp.ne.s32.totalorder %s59, %s60
    %p71 = scmp.eq.s32.totalorder %s13, 0
    %p72 = por %p70, %p71
    %p73 = scmp.ne.s32.totalorder %s59, %s60
    %p74 = scmp.eq.s32.totalorder %s14, 3
    %p75 = por %p73, %p74
    %p77 = scmp.ne.s32.totalorder %s60, %s76
    %p78 = scmp.eq.s32.totalorder %s14, 0
    %p79 = por %p77, %p78
    %s80 = ssub.s32 %s15, %s27
    %p81 = scmp.eq.s32.totalorder %s80, 0
    %s83 = sadd.s32 %s82, 1
    %s84 = scalar_select %p81, %s82, %s83
    %p87 = pneg %p81
    %p88 = scmp.eq.s32.totalorder %s8, 3
    %p89 = por %p87, %p88
    %p90 = scmp.ne.s32.totalorder %s82, %s85
    %p91 = scmp.eq.s32.totalorder %s8, 0
    %p92 = por %p90, %p91
    %p93 = scmp.ne.s32.totalorder %s82, %s85
    %p94 = scmp.eq.s32.totalorder %s13, 3
    %p95 = por %p93, %p94
    %p96 = scmp.ne.s32.totalorder %s85, %s86
    %p97 = scmp.eq.s32.totalorder %s13, 0
    %p98 = por %p96, %p97
    %p99 = scmp.ne.s32.totalorder %s85, %s86
    %p100 = scmp.eq.s32.totalorder %s14, 3
    %p101 = por %p99, %p100
    %p103 = scmp.ne.s32.totalorder %s86, %s102
    %p104 = scmp.eq.s32.totalorder %s14, 0
    %p105 = por %p103, %p104
    %p106 = scmp.le.s32.totalorder 1, %s8
    %p107 = scmp.lt.s32.totalorder %s8, 5
    %p108 = pnand %p106, %p107
    %p109 = pneg %p108
    // Predicated region
    $region9: #{ddm_m2p_forward.2} parent=5 // pred_check
      _
    $region10: #{ddm_m2p_forward.2} parent=5 // pred_check_branch
      %111 = sbr.rel (%p108) target = $region12
    $region11: #{ddm_m2p_forward.2} parent=5 // pred_region
      %s112 = ssub.s32 %s8, 1
      // Predicated region
      $region13: #{ddm_m2p_forward.2} parent=11 // pred_check
        %p113 = pneg %p72
      $region14: #{ddm_m2p_forward.2} parent=11 // pred_check_branch
        %115 = sbr.rel (%p113) target = $region16
      $region15: #{ddm_m2p_forward.2} parent=11 // pred_region
        %s116 = smul.u32 2, %s18
        %p117 = scmp.lt.s32.totalorder %s116, 1
        %s118 = scalar_select %p117, %s116, 1
        %s119 = smul.addr %s118, 8
        %s120 = scalar_lea.vmem %s1, %s119
        %s121 = smul.u32 2, %s18
      $region16: #{ddm_m2p_forward.2} parent=11 // pred_fallthru
        _
    $region12: #{ddm_m2p_forward.2} parent=5 // pred_fallthru
      _
    %p122 = scmp.lt.s32.totalorder %s8, 4
    // Predicated region
    $region17: #{ddm_m2p_forward.2} parent=5 // pred_check
      %p123 = pneg %p122
    $region18: #{ddm_m2p_forward.2} parent=5 // pred_check_branch
      %125 = sbr.rel (%p123) target = $region20
    $region19: #{ddm_m2p_forward.2} parent=5 // pred_region
      // Predicated region
      $region21: #{ddm_m2p_forward.2} parent=19 // pred_check
        %p126 = pneg %p40
      $region22: #{ddm_m2p_forward.2} parent=19 // pred_check_branch
        %128 = sbr.rel (%p126) target = $region24
      $region23: #{ddm_m2p_forward.2} parent=19 // pred_region
        %s129 = smul.u32 16, %s15
        %p130 = scmp.lt.s32.totalorder %s129, 63
        %s131 = scalar_select %p130, %s129, 63
        %s132 = smul.addr %s131, 8
        %s133 = scalar_lea.vmem %s0, %s132
        %s134 = smul.u32 16, %s15
      $region24: #{ddm_m2p_forward.2} parent=19 // pred_fallthru
        _
    $region20: #{ddm_m2p_forward.2} parent=5 // pred_fallthru
      _
    %p135 = scmp.le.s32.totalorder 1, %s8
    %p136 = scmp.lt.s32.totalorder %s8, 5
    %p137 = pnand %p135, %p136
    %p138 = pneg %p137
    // Predicated region
    $region25: #{ddm_m2p_forward.2} parent=5 // pred_check
      _
    $region26: #{ddm_m2p_forward.2} parent=5 // pred_check_branch
      %140 = sbr.rel (%p137) target = $region28
    $region27: #{ddm_m2p_forward.2} parent=5 // pred_region
      %s141 = ssub.s32 %s8, 1
      %s142 = smul.u32 16, %s17
      %p143 = scmp.lt.s32.totalorder %s142, 63
      %s144 = scalar_select %p143, %s142, 63
      %s145 = smul.addr %s144, 8
      %s146 = scalar_lea.vmem %s0, %s145
      %p147 = pneg %p46
      %p148 = pneg %p43
      %s149 = smul.u32 2, %s18
      %p150 = scmp.lt.s32.totalorder %s149, 1
      %s151 = scalar_select %p150, %s149, 1
      %s152 = smul.addr %s151, 8
      %s153 = scalar_lea.vmem %s1, %s152
      %p154 = pneg %p72
      %p155 = pneg %p69
      %p156 = pneg %p98
      %p157 = pneg %p95
      %s158 = smul.u32 16, %s17
      %p159 = scmp.lt.s32.totalorder %s158, 63
      %s160 = scalar_select %p159, %s158, 63
      %s161 = smul.addr %s160, 8
      %s162 = scalar_lea.vmem %s2, %s161
      %s163 = smul.u32 16, %s17
      %p164 = scmp.lt.s32.totalorder %s163, 63
      %s165 = scalar_select %p164, %s163, 63
      %s166 = smul.addr %s165, 8
      %s167 = scalar_lea.vmem %s0, %s166
      %s168 = smul.u32 16, %s17
      %s169 = smul.u32 2, %s18
      %p170 = scmp.lt.s32.totalorder %s169, 1
      %s171 = scalar_select %p170, %s169, 1
      %s172 = smul.addr %s171, 8
      %s173 = scalar_lea.vmem %s1, %s172
      %s174 = smul.u32 2, %s18
      %s175 = smul.u32 16, %s17
      %p176 = scmp.lt.s32.totalorder %s175, 63
      %s177 = scalar_select %p176, %s175, 63
      %s178 = smul.addr %s177, 8
      %s179 = scalar_lea.vmem %s2, %s178
      %s180 = smul.u32 16, %s17
      %p181 = scmp.eq.s32.totalorder %s18, 0
      // Predicated region
      $region29: #{ddm_m2p_forward.2} parent=27 // pred_check
        %p182 = pneg %p181
      $region30: #{ddm_m2p_forward.2} parent=27 // pred_check_branch
        %184 = sbr.rel (%p182) target = $region32
      $region31: #{ddm_m2p_forward.2} parent=27 // pred_region
        %vm185 = vcmask 7168
        %186 = vst.msk [vmem:[#allocation2] sm:$0xff] %vm185, inf
        %187 = vst.msk [vmem:[#allocation2 + $0x8] sm:$0xff] %vm185, inf
        %188 = vst.msk [vmem:[#allocation2 + $0x10] sm:$0xff] %vm185, inf
        %189 = vst.msk [vmem:[#allocation2 + $0x18] sm:$0xff] %vm185, inf
        %190 = vst.msk [vmem:[#allocation2 + $0x20] sm:$0xff] %vm185, inf
        %191 = vst.msk [vmem:[#allocation2 + $0x28] sm:$0xff] %vm185, inf
        %192 = vst.msk [vmem:[#allocation2 + $0x30] sm:$0xff] %vm185, inf
        %193 = vst.msk [vmem:[#allocation2 + $0x38] sm:$0xff] %vm185, inf
        %194 = vst.msk [vmem:[#allocation2 + $0x40] sm:$0xff] %vm185, inf
        %195 = vst.msk [vmem:[#allocation2 + $0x48] sm:$0xff] %vm185, inf
        %196 = vst.msk [vmem:[#allocation2 + $0x50] sm:$0xff] %vm185, inf
        %197 = vst.msk [vmem:[#allocation2 + $0x58] sm:$0xff] %vm185, inf
        %198 = vst.msk [vmem:[#allocation2 + $0x60] sm:$0xff] %vm185, inf
        %199 = vst.msk [vmem:[#allocation2 + $0x68] sm:$0xff] %vm185, inf
        %200 = vst.msk [vmem:[#allocation2 + $0x70] sm:$0xff] %vm185, inf
        %201 = vst.msk [vmem:[#allocation2 + $0x78] sm:$0xff] %vm185, inf
        %202 = vst.msk [vmem:[%s179] sm:$0xff] %vm185, 0
        %203 = vst.msk [vmem:[%s179 + $0x8] sm:$0xff] %vm185, 0
        %204 = vst.msk [vmem:[%s179 + $0x10] sm:$0xff] %vm185, 0
        %205 = vst.msk [vmem:[%s179 + $0x18] sm:$0xff] %vm185, 0
        %206 = vst.msk [vmem:[%s179 + $0x20] sm:$0xff] %vm185, 0
        %207 = vst.msk [vmem:[%s179 + $0x28] sm:$0xff] %vm185, 0
        %208 = vst.msk [vmem:[%s179 + $0x30] sm:$0xff] %vm185, 0
        %209 = vst.msk [vmem:[%s179 + $0x38] sm:$0xff] %vm185, 0
        %210 = vst.msk [vmem:[%s179 + $0x40] sm:$0xff] %vm185, 0
        %211 = vst.msk [vmem:[%s179 + $0x48] sm:$0xff] %vm185, 0
        %212 = vst.msk [vmem:[%s179 + $0x50] sm:$0xff] %vm185, 0
        %213 = vst.msk [vmem:[%s179 + $0x58] sm:$0xff] %vm185, 0
        %214 = vst.msk [vmem:[%s179 + $0x60] sm:$0xff] %vm185, 0
        %215 = vst.msk [vmem:[%s179 + $0x68] sm:$0xff] %vm185, 0
        %216 = vst.msk [vmem:[%s179 + $0x70] sm:$0xff] %vm185, 0
        %217 = vst.msk [vmem:[%s179 + $0x78] sm:$0xff] %vm185, 0
      $region32: #{ddm_m2p_forward.2} parent=27 // pred_fallthru
        _
      %v218 = vld [vmem:[%s167] sm:$0xff]
      %v219 = vld [vmem:[%s167 + $0x8] sm:$0xff]
      %v220 = vld [vmem:[%s167 + $0x10] sm:$0xff]
      %v221 = vld [vmem:[%s167 + $0x18] sm:$0xff]
      %v222 = vld [vmem:[%s167 + $0x20] sm:$0xff]
      %v223 = vld [vmem:[%s167 + $0x28] sm:$0xff]
      %v224 = vld [vmem:[%s167 + $0x30] sm:$0xff]
      %v225 = vld [vmem:[%s167 + $0x38] sm:$0xff]
      %v226 = vld [vmem:[%s167 + $0x40] sm:$0xff]
      %v227 = vld [vmem:[%s167 + $0x48] sm:$0xff]
      %v228 = vld [vmem:[%s167 + $0x50] sm:$0xff]
      %v229 = vld [vmem:[%s167 + $0x58] sm:$0xff]
      %v230 = vld [vmem:[%s167 + $0x60] sm:$0xff]
      %v231 = vld [vmem:[%s167 + $0x68] sm:$0xff]
      %v232 = vld [vmem:[%s167 + $0x70] sm:$0xff]
      %v233 = vld [vmem:[%s167 + $0x78] sm:$0xff]
      loop: start=0, step=1, limit=2
      $region33: #{ddm_m2p_forward.2} parent=27 // loop_pre_header
        _
      $region34: #{ddm_m2p_forward.2} parent=27 // loop_header
        %s235 = sphi 0, %s239
        %p236 = scmp.ge.s32.totalorder %s235, 2
        %v240 = vphi inf, %v2399
        %v241 = vphi inf, %v2400
        %v242 = vphi inf, %v2401
        %v243 = vphi inf, %v2402
        %v244 = vphi inf, %v2403
        %v245 = vphi inf, %v2404
        %v246 = vphi inf, %v2405
        %v247 = vphi inf, %v2406
        %v248 = vphi inf, %v2407
        %v249 = vphi inf, %v2408
        %v250 = vphi inf, %v2409
        %v251 = vphi inf, %v2410
        %v252 = vphi inf, %v2411
        %v253 = vphi inf, %v2412
        %v254 = vphi inf, %v2413
        %v255 = vphi inf, %v2414
        %v256 = vphi 0, %v2415
        %v257 = vphi 0, %v2416
        %v258 = vphi 0, %v2417
        %v259 = vphi 0, %v2418
        %v260 = vphi 0, %v2419
        %v261 = vphi 0, %v2420
        %v262 = vphi 0, %v2421
        %v263 = vphi 0, %v2422
        %v264 = vphi 0, %v2423
        %v265 = vphi 0, %v2424
        %v266 = vphi 0, %v2425
        %v267 = vphi 0, %v2426
        %v268 = vphi 0, %v2427
        %v269 = vphi 0, %v2428
        %v270 = vphi 0, %v2429
        %v271 = vphi 0, %v2430
      $region35: #{ddm_m2p_forward.2} parent=27 // loop_header_branch
        %238 = sbr.rel (%p236) target = $region39
      $region36: #{ddm_m2p_forward.2} parent=27 // loop_body
        %s272 = smul.u32 %s235, 128
        %s273 = sshra.s32 %s272, 7
        %s274 = sand.u32 %s272, 127
        %s275 = smul.addr %s273, 8
        %s276 = scalar_lea.vmem %s173, %s275
        %v277 = vld [vmem:[%s276] sm:$0xff]
        %v278 = vld [vmem:[%s276 + $0x10] sm:$0xff]
        %vm279 = vcmask 64512
        %v281 = vsel %vm279, %v218, 0
        %v284 = vsel %vm279, %v219, 0
        %v287 = vsel %vm279, %v220, 0
        %v290 = vsel %vm279, %v221, 0
        %v293 = vsel %vm279, %v222, 0
        %v296 = vsel %vm279, %v223, 0
        %v299 = vsel %vm279, %v224, 0
        %v302 = vsel %vm279, %v225, 0
        %v305 = vsel %vm279, %v226, 0
        %v308 = vsel %vm279, %v227, 0
        %v311 = vsel %vm279, %v228, 0
        %v314 = vsel %vm279, %v229, 0
        %v317 = vsel %vm279, %v230, 0
        %v320 = vsel %vm279, %v231, 0
        %v323 = vsel %vm279, %v232, 0
        %v326 = vsel %vm279, %v233, 0
        %328 = vmatprep.subr.mxu0 0.0
        %329 = vmatpush1.msra.mxu0 0.0
        %330 = vmatprep.subr.mxu0 0.0
        %331 = vmatpush1.msra.mxu0 0.0
        %332 = vmatprep.subr.mxu0 0.0
        %333 = vmatpush1.msra.mxu0 0.0
        %334 = vmatprep.subr.mxu0 0.0
        %335 = vmatpush1.msra.mxu0 0.0
        %336 = vmatprep.subr.mxu0 0.0
        %337 = vmatpush1.msra.mxu0 0.0
        %338 = vmatprep.subr.mxu0 0.0
        %339 = vmatpush1.msra.mxu0 0.0
        %340 = vmatprep.subr.mxu0 0.0
        %341 = vmatpush1.msra.mxu0 0.0
        %342 = vmatprep.subr.mxu0 0.0
        %343 = vmatpush1.msra.mxu0 0.0
        %344 = vmatprep.subr.mxu0 0.0
        %345 = vmatpush1.msra.mxu0 0.0
        %346 = vmatprep.subr.mxu0 0.0
        %347 = vmatpush1.msra.mxu0 0.0
        %348 = vmatprep.subr.mxu0 0.0
        %349 = vmatpush1.msra.mxu0 0.0
        %350 = vmatprep.subr.mxu0 0.0
        %351 = vmatpush1.msra.mxu0 0.0
        %352 = vmatprep.subr.mxu0 0.0
        %353 = vmatpush1.msra.mxu0 0.0
        %354 = vmatprep.subr.mxu0 0.0
        %355 = vmatpush1.msra.mxu0 0.0
        %356 = vmatprep.subr.mxu0 0.0
        %357 = vmatpush1.msra.mxu0 0.0
        %358 = vmatprep.subr.mxu0 0.0
        %359 = vmatpush1.msra.mxu0 %v277
        %360 = vmatprep.subr.mxu0 0.0
        %361 = vmatpush2.msra.mxu0 0.0
        %362 = vmatprep.subr.mxu0 0.0
        %363 = vmatpush2.msra.mxu0 0.0
        %364 = vmatprep.subr.mxu0 0.0
        %365 = vmatpush2.msra.mxu0 0.0
        %366 = vmatprep.subr.mxu0 0.0
        %367 = vmatpush2.msra.mxu0 0.0
        %368 = vmatprep.subr.mxu0 0.0
        %369 = vmatpush2.msra.mxu0 0.0
        %370 = vmatprep.subr.mxu0 0.0
        %371 = vmatpush2.msra.mxu0 0.0
        %372 = vmatprep.subr.mxu0 0.0
        %373 = vmatpush2.msra.mxu0 0.0
        %374 = vmatprep.subr.mxu0 0.0
        %375 = vmatpush2.msra.mxu0 0.0
        %376 = vmatprep.subr.mxu0 0.0
        %377 = vmatpush2.msra.mxu0 0.0
        %378 = vmatprep.subr.mxu0 0.0
        %379 = vmatpush2.msra.mxu0 0.0
        %380 = vmatprep.subr.mxu0 0.0
        %381 = vmatpush2.msra.mxu0 0.0
        %382 = vmatprep.subr.mxu0 0.0
        %383 = vmatpush2.msra.mxu0 0.0
        %384 = vmatprep.subr.mxu0 0.0
        %385 = vmatpush2.msra.mxu0 0.0
        %386 = vmatprep.subr.mxu0 0.0
        %387 = vmatpush2.msra.mxu0 0.0
        %388 = vmatprep.subr.mxu0 0.0
        %389 = vmatpush2.msra.mxu0 0.0
        %390 = vmatprep.subr.mxu0 0.0
        %391 = vmatpush2.msra.mxu0 0.0
        %392 = vmatprep.mubr.f32.mxu0 0.0
        %393 = vmatmul.mubr.f32.gmra.mxu0 %v281
        %v394 = vpop.f32.mrf.mxu0
        %v395 = vadd.f32 0.0, %v394
        %v396 = vpop.f32.mrf.mxu0
        %397 = vmatprep.mubr.f32.mxu0 0.0
        %398 = vmatmul.mubr.f32.gmra.mxu0 %v284
        %v399 = vpop.f32.mrf.mxu0
        %v400 = vadd.f32 0.0, %v399
        %v401 = vpop.f32.mrf.mxu0
        %402 = vmatprep.mubr.f32.mxu0 0.0
        %403 = vmatmul.mubr.f32.gmra.mxu0 %v287
        %v404 = vpop.f32.mrf.mxu0
        %v405 = vadd.f32 0.0, %v404
        %v406 = vpop.f32.mrf.mxu0
        %407 = vmatprep.mubr.f32.mxu0 0.0
        %408 = vmatmul.mubr.f32.gmra.mxu0 %v290
        %v409 = vpop.f32.mrf.mxu0
        %v410 = vadd.f32 0.0, %v409
        %v411 = vpop.f32.mrf.mxu0
        %412 = vmatprep.mubr.f32.mxu0 0.0
        %413 = vmatmul.mubr.f32.gmra.mxu0 %v293
        %v414 = vpop.f32.mrf.mxu0
        %v415 = vadd.f32 0.0, %v414
        %v416 = vpop.f32.mrf.mxu0
        %417 = vmatprep.mubr.f32.mxu0 0.0
        %418 = vmatmul.mubr.f32.gmra.mxu0 %v296
        %v419 = vpop.f32.mrf.mxu0
        %v420 = vadd.f32 0.0, %v419
        %v421 = vpop.f32.mrf.mxu0
        %422 = vmatprep.mubr.f32.mxu0 0.0
        %423 = vmatmul.mubr.f32.gmra.mxu0 %v299
        %v424 = vpop.f32.mrf.mxu0
        %v425 = vadd.f32 0.0, %v424
        %v426 = vpop.f32.mrf.mxu0
        %427 = vmatprep.mubr.f32.mxu0 0.0
        %428 = vmatmul.mubr.f32.gmra.mxu0 %v302
        %v429 = vpop.f32.mrf.mxu0
        %v430 = vadd.f32 0.0, %v429
        %v431 = vpop.f32.mrf.mxu0
        %432 = vmatprep.mubr.f32.mxu0 0.0
        %433 = vmatmul.mubr.f32.gmra.mxu0 %v305
        %v434 = vpop.f32.mrf.mxu0
        %v435 = vadd.f32 0.0, %v434
        %v436 = vpop.f32.mrf.mxu0
        %437 = vmatprep.mubr.f32.mxu0 0.0
        %438 = vmatmul.mubr.f32.gmra.mxu0 %v308
        %v439 = vpop.f32.mrf.mxu0
        %v440 = vadd.f32 0.0, %v439
        %v441 = vpop.f32.mrf.mxu0
        %442 = vmatprep.mubr.f32.mxu0 0.0
        %443 = vmatmul.mubr.f32.gmra.mxu0 %v311
        %v444 = vpop.f32.mrf.mxu0
        %v445 = vadd.f32 0.0, %v444
        %v446 = vpop.f32.mrf.mxu0
        %447 = vmatprep.mubr.f32.mxu0 0.0
        %448 = vmatmul.mubr.f32.gmra.mxu0 %v314
        %v449 = vpop.f32.mrf.mxu0
        %v450 = vadd.f32 0.0, %v449
        %v451 = vpop.f32.mrf.mxu0
        %452 = vmatprep.mubr.f32.mxu0 0.0
        %453 = vmatmul.mubr.f32.gmra.mxu0 %v317
        %v454 = vpop.f32.mrf.mxu0
        %v455 = vadd.f32 0.0, %v454
        %v456 = vpop.f32.mrf.mxu0
        %457 = vmatprep.mubr.f32.mxu0 0.0
        %458 = vmatmul.mubr.f32.gmra.mxu0 %v320
        %v459 = vpop.f32.mrf.mxu0
        %v460 = vadd.f32 0.0, %v459
        %v461 = vpop.f32.mrf.mxu0
        %462 = vmatprep.mubr.f32.mxu0 0.0
        %463 = vmatmul.mubr.f32.gmra.mxu0 %v323
        %v464 = vpop.f32.mrf.mxu0
        %v465 = vadd.f32 0.0, %v464
        %v466 = vpop.f32.mrf.mxu0
        %467 = vmatprep.mubr.f32.mxu0 0.0
        %468 = vmatmul.mubr.f32.gmra.mxu0 %v326
        %v469 = vpop.f32.mrf.mxu0
        %v470 = vadd.f32 0.0, %v469
        %v471 = vpop.f32.mrf.mxu0
        %472 = vdwg.mxu0
        %473 = vmatprep.subr.mxu0 0.0
        %474 = vmatpush1.msra.mxu0 0.0
        %475 = vmatprep.subr.mxu0 0.0
        %476 = vmatpush1.msra.mxu0 0.0
        %477 = vmatprep.subr.mxu0 0.0
        %478 = vmatpush1.msra.mxu0 0.0
        %479 = vmatprep.subr.mxu0 0.0
        %480 = vmatpush1.msra.mxu0 0.0
        %481 = vmatprep.subr.mxu0 0.0
        %482 = vmatpush1.msra.mxu0 0.0
        %483 = vmatprep.subr.mxu0 0.0
        %484 = vmatpush1.msra.mxu0 0.0
        %485 = vmatprep.subr.mxu0 0.0
        %486 = vmatpush1.msra.mxu0 0.0
        %487 = vmatprep.subr.mxu0 0.0
        %488 = vmatpush1.msra.mxu0 0.0
        %489 = vmatprep.subr.mxu0 0.0
        %490 = vmatpush1.msra.mxu0 0.0
        %491 = vmatprep.subr.mxu0 0.0
        %492 = vmatpush1.msra.mxu0 0.0
        %493 = vmatprep.subr.mxu0 0.0
        %494 = vmatpush1.msra.mxu0 0.0
        %495 = vmatprep.subr.mxu0 0.0
        %496 = vmatpush1.msra.mxu0 0.0
        %497 = vmatprep.subr.mxu0 0.0
        %498 = vmatpush1.msra.mxu0 0.0
        %499 = vmatprep.subr.mxu0 0.0
        %500 = vmatpush1.msra.mxu0 0.0
        %501 = vmatprep.subr.mxu0 0.0
        %502 = vmatpush1.msra.mxu0 0.0
        %503 = vmatprep.subr.mxu0 0.0
        %504 = vmatpush1.msra.mxu0 %v278
        %505 = vmatprep.subr.mxu0 0.0
        %506 = vmatpush2.msra.mxu0 0.0
        %507 = vmatprep.subr.mxu0 0.0
        %508 = vmatpush2.msra.mxu0 0.0
        %509 = vmatprep.subr.mxu0 0.0
        %510 = vmatpush2.msra.mxu0 0.0
        %511 = vmatprep.subr.mxu0 0.0
        %512 = vmatpush2.msra.mxu0 0.0
        %513 = vmatprep.subr.mxu0 0.0
        %514 = vmatpush2.msra.mxu0 0.0
        %515 = vmatprep.subr.mxu0 0.0
        %516 = vmatpush2.msra.mxu0 0.0
        %517 = vmatprep.subr.mxu0 0.0
        %518 = vmatpush2.msra.mxu0 0.0
        %519 = vmatprep.subr.mxu0 0.0
        %520 = vmatpush2.msra.mxu0 0.0
        %521 = vmatprep.subr.mxu0 0.0
        %522 = vmatpush2.msra.mxu0 0.0
        %523 = vmatprep.subr.mxu0 0.0
        %524 = vmatpush2.msra.mxu0 0.0
        %525 = vmatprep.subr.mxu0 0.0
        %526 = vmatpush2.msra.mxu0 0.0
        %527 = vmatprep.subr.mxu0 0.0
        %528 = vmatpush2.msra.mxu0 0.0
        %529 = vmatprep.subr.mxu0 0.0
        %530 = vmatpush2.msra.mxu0 0.0
        %531 = vmatprep.subr.mxu0 0.0
        %532 = vmatpush2.msra.mxu0 0.0
        %533 = vmatprep.subr.mxu0 0.0
        %534 = vmatpush2.msra.mxu0 0.0
        %535 = vmatprep.subr.mxu0 0.0
        %536 = vmatpush2.msra.mxu0 0.0
        %537 = vmatprep.mubr.f32.mxu0 0.0
        %538 = vmatmul.mubr.f32.gmra.mxu0 %v281
        %v539 = vpop.f32.mrf.mxu0
        %v540 = vadd.f32 0.0, %v539
        %v541 = vpop.f32.mrf.mxu0
        %542 = vmatprep.mubr.f32.mxu0 0.0
        %543 = vmatmul.mubr.f32.gmra.mxu0 %v284
        %v544 = vpop.f32.mrf.mxu0
        %v545 = vadd.f32 0.0, %v544
        %v546 = vpop.f32.mrf.mxu0
        %547 = vmatprep.mubr.f32.mxu0 0.0
        %548 = vmatmul.mubr.f32.gmra.mxu0 %v287
        %v549 = vpop.f32.mrf.mxu0
        %v550 = vadd.f32 0.0, %v549
        %v551 = vpop.f32.mrf.mxu0
        %552 = vmatprep.mubr.f32.mxu0 0.0
        %553 = vmatmul.mubr.f32.gmra.mxu0 %v290
        %v554 = vpop.f32.mrf.mxu0
        %v555 = vadd.f32 0.0, %v554
        %v556 = vpop.f32.mrf.mxu0
        %557 = vmatprep.mubr.f32.mxu0 0.0
        %558 = vmatmul.mubr.f32.gmra.mxu0 %v293
        %v559 = vpop.f32.mrf.mxu0
        %v560 = vadd.f32 0.0, %v559
        %v561 = vpop.f32.mrf.mxu0
        %562 = vmatprep.mubr.f32.mxu0 0.0
        %563 = vmatmul.mubr.f32.gmra.mxu0 %v296
        %v564 = vpop.f32.mrf.mxu0
        %v565 = vadd.f32 0.0, %v564
        %v566 = vpop.f32.mrf.mxu0
        %567 = vmatprep.mubr.f32.mxu0 0.0
        %568 = vmatmul.mubr.f32.gmra.mxu0 %v299
        %v569 = vpop.f32.mrf.mxu0
        %v570 = vadd.f32 0.0, %v569
        %v571 = vpop.f32.mrf.mxu0
        %572 = vmatprep.mubr.f32.mxu0 0.0
        %573 = vmatmul.mubr.f32.gmra.mxu0 %v302
        %v574 = vpop.f32.mrf.mxu0
        %v575 = vadd.f32 0.0, %v574
        %v576 = vpop.f32.mrf.mxu0
        %577 = vmatprep.mubr.f32.mxu0 0.0
        %578 = vmatmul.mubr.f32.gmra.mxu0 %v305
        %v579 = vpop.f32.mrf.mxu0
        %v580 = vadd.f32 0.0, %v579
        %v581 = vpop.f32.mrf.mxu0
        %582 = vmatprep.mubr.f32.mxu0 0.0
        %583 = vmatmul.mubr.f32.gmra.mxu0 %v308
        %v584 = vpop.f32.mrf.mxu0
        %v585 = vadd.f32 0.0, %v584
        %v586 = vpop.f32.mrf.mxu0
        %587 = vmatprep.mubr.f32.mxu0 0.0
        %588 = vmatmul.mubr.f32.gmra.mxu0 %v311
        %v589 = vpop.f32.mrf.mxu0
        %v590 = vadd.f32 0.0, %v589
        %v591 = vpop.f32.mrf.mxu0
        %592 = vmatprep.mubr.f32.mxu0 0.0
        %593 = vmatmul.mubr.f32.gmra.mxu0 %v314
        %v594 = vpop.f32.mrf.mxu0
        %v595 = vadd.f32 0.0, %v594
        %v596 = vpop.f32.mrf.mxu0
        %597 = vmatprep.mubr.f32.mxu0 0.0
        %598 = vmatmul.mubr.f32.gmra.mxu0 %v317
        %v599 = vpop.f32.mrf.mxu0
        %v600 = vadd.f32 0.0, %v599
        %v601 = vpop.f32.mrf.mxu0
        %602 = vmatprep.mubr.f32.mxu0 0.0
        %603 = vmatmul.mubr.f32.gmra.mxu0 %v320
        %v604 = vpop.f32.mrf.mxu0
        %v605 = vadd.f32 0.0, %v604
        %v606 = vpop.f32.mrf.mxu0
        %607 = vmatprep.mubr.f32.mxu0 0.0
        %608 = vmatmul.mubr.f32.gmra.mxu0 %v323
        %v609 = vpop.f32.mrf.mxu0
        %v610 = vadd.f32 0.0, %v609
        %v611 = vpop.f32.mrf.mxu0
        %612 = vmatprep.mubr.f32.mxu0 0.0
        %613 = vmatmul.mubr.f32.gmra.mxu0 %v326
        %v614 = vpop.f32.mrf.mxu0
        %v615 = vadd.f32 0.0, %v614
        %v616 = vpop.f32.mrf.mxu0
        %617 = vdwg.mxu0
        %v618 = vld [vmem:[%s276 + $0x23] ss:$0 sm:$0xff]
        %v619 = vld [vmem:[%s276 + $0x24] ss:$0 sm:$0xff]
        %v620 = vld [vmem:[%s276 + $0x25] ss:$0 sm:$0xff]
        %v621 = vld [vmem:[%s276 + $0x26] ss:$0 sm:$0xff]
        %v622 = vld [vmem:[%s276 + $0x27] ss:$0 sm:$0xff]
        %v623 = vld [vmem:[%s276 + $0x30] ss:$0 sm:$0xff]
        %v624 = vld [vmem:[%s276 + $0x31] ss:$0 sm:$0xff]
        %v625 = vsub.f32 %v395, %v618
        %v626 = vsub.f32 %v400, %v618
        %v627 = vsub.f32 %v405, %v618
        %v628 = vsub.f32 %v410, %v618
        %v629 = vsub.f32 %v415, %v618
        %v630 = vsub.f32 %v420, %v618
        %v631 = vsub.f32 %v425, %v618
        %v632 = vsub.f32 %v430, %v618
        %v633 = vsub.f32 %v435, %v618
        %v634 = vsub.f32 %v440, %v618
        %v635 = vsub.f32 %v445, %v618
        %v636 = vsub.f32 %v450, %v618
        %v637 = vsub.f32 %v455, %v618
        %v638 = vsub.f32 %v460, %v618
        %v639 = vsub.f32 %v465, %v618
        %v640 = vsub.f32 %v470, %v618
        %v641 = vsub.f32 %v395, %v619
        %v642 = vsub.f32 %v400, %v619
        %v643 = vsub.f32 %v405, %v619
        %v644 = vsub.f32 %v410, %v619
        %v645 = vsub.f32 %v415, %v619
        %v646 = vsub.f32 %v420, %v619
        %v647 = vsub.f32 %v425, %v619
        %v648 = vsub.f32 %v430, %v619
        %v649 = vsub.f32 %v435, %v619
        %v650 = vsub.f32 %v440, %v619
        %v651 = vsub.f32 %v445, %v619
        %v652 = vsub.f32 %v450, %v619
        %v653 = vsub.f32 %v455, %v619
        %v654 = vsub.f32 %v460, %v619
        %v655 = vsub.f32 %v465, %v619
        %v656 = vsub.f32 %v470, %v619
        %v657 = vsub.f32 %v540, %v619
        %v658 = vsub.f32 %v545, %v619
        %v659 = vsub.f32 %v550, %v619
        %v660 = vsub.f32 %v555, %v619
        %v661 = vsub.f32 %v560, %v619
        %v662 = vsub.f32 %v565, %v619
        %v663 = vsub.f32 %v570, %v619
        %v664 = vsub.f32 %v575, %v619
        %v665 = vsub.f32 %v580, %v619
        %v666 = vsub.f32 %v585, %v619
        %v667 = vsub.f32 %v590, %v619
        %v668 = vsub.f32 %v595, %v619
        %v669 = vsub.f32 %v600, %v619
        %v670 = vsub.f32 %v605, %v619
        %v671 = vsub.f32 %v610, %v619
        %v672 = vsub.f32 %v615, %v619
        %v673 = vsub.f32 %v540, %v620
        %v674 = vsub.f32 %v545, %v620
        %v675 = vsub.f32 %v550, %v620
        %v676 = vsub.f32 %v555, %v620
        %v677 = vsub.f32 %v560, %v620
        %v678 = vsub.f32 %v565, %v620
        %v679 = vsub.f32 %v570, %v620
        %v680 = vsub.f32 %v575, %v620
        %v681 = vsub.f32 %v580, %v620
        %v682 = vsub.f32 %v585, %v620
        %v683 = vsub.f32 %v590, %v620
        %v684 = vsub.f32 %v595, %v620
        %v685 = vsub.f32 %v600, %v620
        %v686 = vsub.f32 %v605, %v620
        %v687 = vsub.f32 %v610, %v620
        %v688 = vsub.f32 %v615, %v620
        %v689 = vmul.f32 %v395, %v657
        %v690 = vmul.f32 %v400, %v658
        %v691 = vmul.f32 %v405, %v659
        %v692 = vmul.f32 %v410, %v660
        %v693 = vmul.f32 %v415, %v661
        %v694 = vmul.f32 %v420, %v662
        %v695 = vmul.f32 %v425, %v663
        %v696 = vmul.f32 %v430, %v664
        %v697 = vmul.f32 %v435, %v665
        %v698 = vmul.f32 %v440, %v666
        %v699 = vmul.f32 %v445, %v667
        %v700 = vmul.f32 %v450, %v668
        %v701 = vmul.f32 %v455, %v669
        %v702 = vmul.f32 %v460, %v670
        %v703 = vmul.f32 %v465, %v671
        %v704 = vmul.f32 %v470, %v672
        %v705 = vmul.f32 %v625, %v540
        %v706 = vmul.f32 %v626, %v545
        %v707 = vmul.f32 %v627, %v550
        %v708 = vmul.f32 %v628, %v555
        %v709 = vmul.f32 %v629, %v560
        %v710 = vmul.f32 %v630, %v565
        %v711 = vmul.f32 %v631, %v570
        %v712 = vmul.f32 %v632, %v575
        %v713 = vmul.f32 %v633, %v580
        %v714 = vmul.f32 %v634, %v585
        %v715 = vmul.f32 %v635, %v590
        %v716 = vmul.f32 %v636, %v595
        %v717 = vmul.f32 %v637, %v600
        %v718 = vmul.f32 %v638, %v605
        %v719 = vmul.f32 %v639, %v610
        %v720 = vmul.f32 %v640, %v615
        %v721 = vsub.f32 %v689, %v705
        %v722 = vsub.f32 %v690, %v706
        %v723 = vsub.f32 %v691, %v707
        %v724 = vsub.f32 %v692, %v708
        %v725 = vsub.f32 %v693, %v709
        %v726 = vsub.f32 %v694, %v710
        %v727 = vsub.f32 %v695, %v711
        %v728 = vsub.f32 %v696, %v712
        %v729 = vsub.f32 %v697, %v713
        %v730 = vsub.f32 %v698, %v714
        %v731 = vsub.f32 %v699, %v715
        %v732 = vsub.f32 %v700, %v716
        %v733 = vsub.f32 %v701, %v717
        %v734 = vsub.f32 %v702, %v718
        %v735 = vsub.f32 %v703, %v719
        %v736 = vsub.f32 %v704, %v720
        %v737 = vmul.f32 %v641, %v540
        %v738 = vmul.f32 %v642, %v545
        %v739 = vmul.f32 %v643, %v550
        %v740 = vmul.f32 %v644, %v555
        %v741 = vmul.f32 %v645, %v560
        %v742 = vmul.f32 %v646, %v565
        %v743 = vmul.f32 %v647, %v570
        %v744 = vmul.f32 %v648, %v575
        %v745 = vmul.f32 %v649, %v580
        %v746 = vmul.f32 %v650, %v585
        %v747 = vmul.f32 %v651, %v590
        %v748 = vmul.f32 %v652, %v595
        %v749 = vmul.f32 %v653, %v600
        %v750 = vmul.f32 %v654, %v605
        %v751 = vmul.f32 %v655, %v610
        %v752 = vmul.f32 %v656, %v615
        %v753 = vmul.f32 %v395, %v673
        %v754 = vmul.f32 %v400, %v674
        %v755 = vmul.f32 %v405, %v675
        %v756 = vmul.f32 %v410, %v676
        %v757 = vmul.f32 %v415, %v677
        %v758 = vmul.f32 %v420, %v678
        %v759 = vmul.f32 %v425, %v679
        %v760 = vmul.f32 %v430, %v680
        %v761 = vmul.f32 %v435, %v681
        %v762 = vmul.f32 %v440, %v682
        %v763 = vmul.f32 %v445, %v683
        %v764 = vmul.f32 %v450, %v684
        %v765 = vmul.f32 %v455, %v685
        %v766 = vmul.f32 %v460, %v686
        %v767 = vmul.f32 %v465, %v687
        %v768 = vmul.f32 %v470, %v688
        %v769 = vsub.f32 %v737, %v753
        %v770 = vsub.f32 %v738, %v754
        %v771 = vsub.f32 %v739, %v755
        %v772 = vsub.f32 %v740, %v756
        %v773 = vsub.f32 %v741, %v757
        %v774 = vsub.f32 %v742, %v758
        %v775 = vsub.f32 %v743, %v759
        %v776 = vsub.f32 %v744, %v760
        %v777 = vsub.f32 %v745, %v761
        %v778 = vsub.f32 %v746, %v762
        %v779 = vsub.f32 %v747, %v763
        %v780 = vsub.f32 %v748, %v764
        %v781 = vsub.f32 %v749, %v765
        %v782 = vsub.f32 %v750, %v766
        %v783 = vsub.f32 %v751, %v767
        %v784 = vsub.f32 %v752, %v768
        %v785 = vmul.f32 %v625, %v673
        %v786 = vmul.f32 %v626, %v674
        %v787 = vmul.f32 %v627, %v675
        %v788 = vmul.f32 %v628, %v676
        %v789 = vmul.f32 %v629, %v677
        %v790 = vmul.f32 %v630, %v678
        %v791 = vmul.f32 %v631, %v679
        %v792 = vmul.f32 %v632, %v680
        %v793 = vmul.f32 %v633, %v681
        %v794 = vmul.f32 %v634, %v682
        %v795 = vmul.f32 %v635, %v683
        %v796 = vmul.f32 %v636, %v684
        %v797 = vmul.f32 %v637, %v685
        %v798 = vmul.f32 %v638, %v686
        %v799 = vmul.f32 %v639, %v687
        %v800 = vmul.f32 %v640, %v688
        %v801 = vmul.f32 %v641, %v657
        %v802 = vmul.f32 %v642, %v658
        %v803 = vmul.f32 %v643, %v659
        %v804 = vmul.f32 %v644, %v660
        %v805 = vmul.f32 %v645, %v661
        %v806 = vmul.f32 %v646, %v662
        %v807 = vmul.f32 %v647, %v663
        %v808 = vmul.f32 %v648, %v664
        %v809 = vmul.f32 %v649, %v665
        %v810 = vmul.f32 %v650, %v666
        %v811 = vmul.f32 %v651, %v667
        %v812 = vmul.f32 %v652, %v668
        %v813 = vmul.f32 %v653, %v669
        %v814 = vmul.f32 %v654, %v670
        %v815 = vmul.f32 %v655, %v671
        %v816 = vmul.f32 %v656, %v672
        %v817 = vsub.f32 %v785, %v801
        %v818 = vsub.f32 %v786, %v802
        %v819 = vsub.f32 %v787, %v803
        %v820 = vsub.f32 %v788, %v804
        %v821 = vsub.f32 %v789, %v805
        %v822 = vsub.f32 %v790, %v806
        %v823 = vsub.f32 %v791, %v807
        %v824 = vsub.f32 %v792, %v808
        %v825 = vsub.f32 %v793, %v809
        %v826 = vsub.f32 %v794, %v810
        %v827 = vsub.f32 %v795, %v811
        %v828 = vsub.f32 %v796, %v812
        %v829 = vsub.f32 %v797, %v813
        %v830 = vsub.f32 %v798, %v814
        %v831 = vsub.f32 %v799, %v815
        %v832 = vsub.f32 %v800, %v816
        %v833 = vmul.f32 %v395, %v621
        %v834 = vmul.f32 %v400, %v621
        %v835 = vmul.f32 %v405, %v621
        %v836 = vmul.f32 %v410, %v621
        %v837 = vmul.f32 %v415, %v621
        %v838 = vmul.f32 %v420, %v621
        %v839 = vmul.f32 %v425, %v621
        %v840 = vmul.f32 %v430, %v621
        %v841 = vmul.f32 %v435, %v621
        %v842 = vmul.f32 %v440, %v621
        %v843 = vmul.f32 %v445, %v621
        %v844 = vmul.f32 %v450, %v621
        %v845 = vmul.f32 %v455, %v621
        %v846 = vmul.f32 %v460, %v621
        %v847 = vmul.f32 %v465, %v621
        %v848 = vmul.f32 %v470, %v621
        %v849 = vmul.f32 %v540, %v622
        %v850 = vmul.f32 %v545, %v622
        %v851 = vmul.f32 %v550, %v622
        %v852 = vmul.f32 %v555, %v622
        %v853 = vmul.f32 %v560, %v622
        %v854 = vmul.f32 %v565, %v622
        %v855 = vmul.f32 %v570, %v622
        %v856 = vmul.f32 %v575, %v622
        %v857 = vmul.f32 %v580, %v622
        %v858 = vmul.f32 %v585, %v622
        %v859 = vmul.f32 %v590, %v622
        %v860 = vmul.f32 %v595, %v622
        %v861 = vmul.f32 %v600, %v622
        %v862 = vmul.f32 %v605, %v622
        %v863 = vmul.f32 %v610, %v622
        %v864 = vmul.f32 %v615, %v622
        %v865 = vsub.f32 %v657, %v625
        %v866 = vsub.f32 %v658, %v626
        %v867 = vsub.f32 %v659, %v627
        %v868 = vsub.f32 %v660, %v628
        %v869 = vsub.f32 %v661, %v629
        %v870 = vsub.f32 %v662, %v630
        %v871 = vsub.f32 %v663, %v631
        %v872 = vsub.f32 %v664, %v632
        %v873 = vsub.f32 %v665, %v633
        %v874 = vsub.f32 %v666, %v634
        %v875 = vsub.f32 %v667, %v635
        %v876 = vsub.f32 %v668, %v636
        %v877 = vsub.f32 %v669, %v637
        %v878 = vsub.f32 %v670, %v638
        %v879 = vsub.f32 %v671, %v639
        %v880 = vsub.f32 %v672, %v640
        %v881 = vmul.f32 %v865, %v623
        %v882 = vmul.f32 %v866, %v623
        %v883 = vmul.f32 %v867, %v623
        %v884 = vmul.f32 %v868, %v623
        %v885 = vmul.f32 %v869, %v623
        %v886 = vmul.f32 %v870, %v623
        %v887 = vmul.f32 %v871, %v623
        %v888 = vmul.f32 %v872, %v623
        %v889 = vmul.f32 %v873, %v623
        %v890 = vmul.f32 %v874, %v623
        %v891 = vmul.f32 %v875, %v623
        %v892 = vmul.f32 %v876, %v623
        %v893 = vmul.f32 %v877, %v623
        %v894 = vmul.f32 %v878, %v623
        %v895 = vmul.f32 %v879, %v623
        %v896 = vmul.f32 %v880, %v623
        %v897 = vmul.f32 %v769, %v624
        %v898 = vmul.f32 %v770, %v624
        %v899 = vmul.f32 %v771, %v624
        %v900 = vmul.f32 %v772, %v624
        %v901 = vmul.f32 %v773, %v624
        %v902 = vmul.f32 %v774, %v624
        %v903 = vmul.f32 %v775, %v624
        %v904 = vmul.f32 %v776, %v624
        %v905 = vmul.f32 %v777, %v624
        %v906 = vmul.f32 %v778, %v624
        %v907 = vmul.f32 %v779, %v624
        %v908 = vmul.f32 %v780, %v624
        %v909 = vmul.f32 %v781, %v624
        %v910 = vmul.f32 %v782, %v624
        %v911 = vmul.f32 %v783, %v624
        %v912 = vmul.f32 %v784, %v624
        %v913 = vmul.f32 %v721, %v624
        %v914 = vmul.f32 %v722, %v624
        %v915 = vmul.f32 %v723, %v624
        %v916 = vmul.f32 %v724, %v624
        %v917 = vmul.f32 %v725, %v624
        %v918 = vmul.f32 %v726, %v624
        %v919 = vmul.f32 %v727, %v624
        %v920 = vmul.f32 %v728, %v624
        %v921 = vmul.f32 %v729, %v624
        %v922 = vmul.f32 %v730, %v624
        %v923 = vmul.f32 %v731, %v624
        %v924 = vmul.f32 %v732, %v624
        %v925 = vmul.f32 %v733, %v624
        %v926 = vmul.f32 %v734, %v624
        %v927 = vmul.f32 %v735, %v624
        %v928 = vmul.f32 %v736, %v624
        %vm929 = vcmp.le.f32.partialorder %v395, 0.0
        %vm930 = vcmp.le.f32.partialorder %v400, 0.0
        %vm931 = vcmp.le.f32.partialorder %v405, 0.0
        %vm932 = vcmp.le.f32.partialorder %v410, 0.0
        %vm933 = vcmp.le.f32.partialorder %v415, 0.0
        %vm934 = vcmp.le.f32.partialorder %v420, 0.0
        %vm935 = vcmp.le.f32.partialorder %v425, 0.0
        %vm936 = vcmp.le.f32.partialorder %v430, 0.0
        %vm937 = vcmp.le.f32.partialorder %v435, 0.0
        %vm938 = vcmp.le.f32.partialorder %v440, 0.0
        %vm939 = vcmp.le.f32.partialorder %v445, 0.0
        %vm940 = vcmp.le.f32.partialorder %v450, 0.0
        %vm941 = vcmp.le.f32.partialorder %v455, 0.0
        %vm942 = vcmp.le.f32.partialorder %v460, 0.0
        %vm943 = vcmp.le.f32.partialorder %v465, 0.0
        %vm944 = vcmp.le.f32.partialorder %v470, 0.0
        %vm945 = vcmp.le.f32.partialorder %v540, 0.0
        %vm946 = vcmp.le.f32.partialorder %v545, 0.0
        %vm947 = vcmp.le.f32.partialorder %v550, 0.0
        %vm948 = vcmp.le.f32.partialorder %v555, 0.0
        %vm949 = vcmp.le.f32.partialorder %v560, 0.0
        %vm950 = vcmp.le.f32.partialorder %v565, 0.0
        %vm951 = vcmp.le.f32.partialorder %v570, 0.0
        %vm952 = vcmp.le.f32.partialorder %v575, 0.0
        %vm953 = vcmp.le.f32.partialorder %v580, 0.0
        %vm954 = vcmp.le.f32.partialorder %v585, 0.0
        %vm955 = vcmp.le.f32.partialorder %v590, 0.0
        %vm956 = vcmp.le.f32.partialorder %v595, 0.0
        %vm957 = vcmp.le.f32.partialorder %v600, 0.0
        %vm958 = vcmp.le.f32.partialorder %v605, 0.0
        %vm959 = vcmp.le.f32.partialorder %v610, 0.0
        %vm960 = vcmp.le.f32.partialorder %v615, 0.0
        %vm961 = vmand %vm929, %vm945
        %vm962 = vmand %vm930, %vm946
        %vm963 = vmand %vm931, %vm947
        %vm964 = vmand %vm932, %vm948
        %vm965 = vmand %vm933, %vm949
        %vm966 = vmand %vm934, %vm950
        %vm967 = vmand %vm935, %vm951
        %vm968 = vmand %vm936, %vm952
        %vm969 = vmand %vm937, %vm953
        %vm970 = vmand %vm938, %vm954
        %vm971 = vmand %vm939, %vm955
        %vm972 = vmand %vm940, %vm956
        %vm973 = vmand %vm941, %vm957
        %vm974 = vmand %vm942, %vm958
        %vm975 = vmand %vm943, %vm959
        %vm976 = vmand %vm944, %vm960
        %vm977 = vcmp.ge.f32.partialorder %v625, 0.0
        %vm978 = vcmp.ge.f32.partialorder %v626, 0.0
        %vm979 = vcmp.ge.f32.partialorder %v627, 0.0
        %vm980 = vcmp.ge.f32.partialorder %v628, 0.0
        %vm981 = vcmp.ge.f32.partialorder %v629, 0.0
        %vm982 = vcmp.ge.f32.partialorder %v630, 0.0
        %vm983 = vcmp.ge.f32.partialorder %v631, 0.0
        %vm984 = vcmp.ge.f32.partialorder %v632, 0.0
        %vm985 = vcmp.ge.f32.partialorder %v633, 0.0
        %vm986 = vcmp.ge.f32.partialorder %v634, 0.0
        %vm987 = vcmp.ge.f32.partialorder %v635, 0.0
        %vm988 = vcmp.ge.f32.partialorder %v636, 0.0
        %vm989 = vcmp.ge.f32.partialorder %v637, 0.0
        %vm990 = vcmp.ge.f32.partialorder %v638, 0.0
        %vm991 = vcmp.ge.f32.partialorder %v639, 0.0
        %vm992 = vcmp.ge.f32.partialorder %v640, 0.0
        %vm993 = vcmp.le.f32.partialorder %v657, %v625
        %vm994 = vcmp.le.f32.partialorder %v658, %v626
        %vm995 = vcmp.le.f32.partialorder %v659, %v627
        %vm996 = vcmp.le.f32.partialorder %v660, %v628
        %vm997 = vcmp.le.f32.partialorder %v661, %v629
        %vm998 = vcmp.le.f32.partialorder %v662, %v630
        %vm999 = vcmp.le.f32.partialorder %v663, %v631
        %vm1000 = vcmp.le.f32.partialorder %v664, %v632
        %vm1001 = vcmp.le.f32.partialorder %v665, %v633
        %vm1002 = vcmp.le.f32.partialorder %v666, %v634
        %vm1003 = vcmp.le.f32.partialorder %v667, %v635
        %vm1004 = vcmp.le.f32.partialorder %v668, %v636
        %vm1005 = vcmp.le.f32.partialorder %v669, %v637
        %vm1006 = vcmp.le.f32.partialorder %v670, %v638
        %vm1007 = vcmp.le.f32.partialorder %v671, %v639
        %vm1008 = vcmp.le.f32.partialorder %v672, %v640
        %vm1009 = vmand %vm977, %vm993
        %vm1010 = vmand %vm978, %vm994
        %vm1011 = vmand %vm979, %vm995
        %vm1012 = vmand %vm980, %vm996
        %vm1013 = vmand %vm981, %vm997
        %vm1014 = vmand %vm982, %vm998
        %vm1015 = vmand %vm983, %vm999
        %vm1016 = vmand %vm984, %vm1000
        %vm1017 = vmand %vm985, %vm1001
        %vm1018 = vmand %vm986, %vm1002
        %vm1019 = vmand %vm987, %vm1003
        %vm1020 = vmand %vm988, %vm1004
        %vm1021 = vmand %vm989, %vm1005
        %vm1022 = vmand %vm990, %vm1006
        %vm1023 = vmand %vm991, %vm1007
        %vm1024 = vmand %vm992, %vm1008
        %vm1025 = vcmp.le.f32.partialorder %v721, 0.0
        %vm1026 = vcmp.le.f32.partialorder %v722, 0.0
        %vm1027 = vcmp.le.f32.partialorder %v723, 0.0
        %vm1028 = vcmp.le.f32.partialorder %v724, 0.0
        %vm1029 = vcmp.le.f32.partialorder %v725, 0.0
        %vm1030 = vcmp.le.f32.partialorder %v726, 0.0
        %vm1031 = vcmp.le.f32.partialorder %v727, 0.0
        %vm1032 = vcmp.le.f32.partialorder %v728, 0.0
        %vm1033 = vcmp.le.f32.partialorder %v729, 0.0
        %vm1034 = vcmp.le.f32.partialorder %v730, 0.0
        %vm1035 = vcmp.le.f32.partialorder %v731, 0.0
        %vm1036 = vcmp.le.f32.partialorder %v732, 0.0
        %vm1037 = vcmp.le.f32.partialorder %v733, 0.0
        %vm1038 = vcmp.le.f32.partialorder %v734, 0.0
        %vm1039 = vcmp.le.f32.partialorder %v735, 0.0
        %vm1040 = vcmp.le.f32.partialorder %v736, 0.0
        %vm1041 = vcmp.ge.f32.partialorder %v395, 0.0
        %vm1042 = vcmp.ge.f32.partialorder %v400, 0.0
        %vm1043 = vcmp.ge.f32.partialorder %v405, 0.0
        %vm1044 = vcmp.ge.f32.partialorder %v410, 0.0
        %vm1045 = vcmp.ge.f32.partialorder %v415, 0.0
        %vm1046 = vcmp.ge.f32.partialorder %v420, 0.0
        %vm1047 = vcmp.ge.f32.partialorder %v425, 0.0
        %vm1048 = vcmp.ge.f32.partialorder %v430, 0.0
        %vm1049 = vcmp.ge.f32.partialorder %v435, 0.0
        %vm1050 = vcmp.ge.f32.partialorder %v440, 0.0
        %vm1051 = vcmp.ge.f32.partialorder %v445, 0.0
        %vm1052 = vcmp.ge.f32.partialorder %v450, 0.0
        %vm1053 = vcmp.ge.f32.partialorder %v455, 0.0
        %vm1054 = vcmp.ge.f32.partialorder %v460, 0.0
        %vm1055 = vcmp.ge.f32.partialorder %v465, 0.0
        %vm1056 = vcmp.ge.f32.partialorder %v470, 0.0
        %vm1057 = vmand %vm1025, %vm1041
        %vm1058 = vmand %vm1026, %vm1042
        %vm1059 = vmand %vm1027, %vm1043
        %vm1060 = vmand %vm1028, %vm1044
        %vm1061 = vmand %vm1029, %vm1045
        %vm1062 = vmand %vm1030, %vm1046
        %vm1063 = vmand %vm1031, %vm1047
        %vm1064 = vmand %vm1032, %vm1048
        %vm1065 = vmand %vm1033, %vm1049
        %vm1066 = vmand %vm1034, %vm1050
        %vm1067 = vmand %vm1035, %vm1051
        %vm1068 = vmand %vm1036, %vm1052
        %vm1069 = vmand %vm1037, %vm1053
        %vm1070 = vmand %vm1038, %vm1054
        %vm1071 = vmand %vm1039, %vm1055
        %vm1072 = vmand %vm1040, %vm1056
        %vm1073 = vcmp.le.f32.partialorder %v625, 0.0
        %vm1074 = vcmp.le.f32.partialorder %v626, 0.0
        %vm1075 = vcmp.le.f32.partialorder %v627, 0.0
        %vm1076 = vcmp.le.f32.partialorder %v628, 0.0
        %vm1077 = vcmp.le.f32.partialorder %v629, 0.0
        %vm1078 = vcmp.le.f32.partialorder %v630, 0.0
        %vm1079 = vcmp.le.f32.partialorder %v631, 0.0
        %vm1080 = vcmp.le.f32.partialorder %v632, 0.0
        %vm1081 = vcmp.le.f32.partialorder %v633, 0.0
        %vm1082 = vcmp.le.f32.partialorder %v634, 0.0
        %vm1083 = vcmp.le.f32.partialorder %v635, 0.0
        %vm1084 = vcmp.le.f32.partialorder %v636, 0.0
        %vm1085 = vcmp.le.f32.partialorder %v637, 0.0
        %vm1086 = vcmp.le.f32.partialorder %v638, 0.0
        %vm1087 = vcmp.le.f32.partialorder %v639, 0.0
        %vm1088 = vcmp.le.f32.partialorder %v640, 0.0
        %vm1089 = vmand %vm1057, %vm1073
        %vm1090 = vmand %vm1058, %vm1074
        %vm1091 = vmand %vm1059, %vm1075
        %vm1092 = vmand %vm1060, %vm1076
        %vm1093 = vmand %vm1061, %vm1077
        %vm1094 = vmand %vm1062, %vm1078
        %vm1095 = vmand %vm1063, %vm1079
        %vm1096 = vmand %vm1064, %vm1080
        %vm1097 = vmand %vm1065, %vm1081
        %vm1098 = vmand %vm1066, %vm1082
        %vm1099 = vmand %vm1067, %vm1083
        %vm1100 = vmand %vm1068, %vm1084
        %vm1101 = vmand %vm1069, %vm1085
        %vm1102 = vmand %vm1070, %vm1086
        %vm1103 = vmand %vm1071, %vm1087
        %vm1104 = vmand %vm1072, %vm1088
        %vm1105 = vcmp.ge.f32.partialorder %v673, 0.0
        %vm1106 = vcmp.ge.f32.partialorder %v674, 0.0
        %vm1107 = vcmp.ge.f32.partialorder %v675, 0.0
        %vm1108 = vcmp.ge.f32.partialorder %v676, 0.0
        %vm1109 = vcmp.ge.f32.partialorder %v677, 0.0
        %vm1110 = vcmp.ge.f32.partialorder %v678, 0.0
        %vm1111 = vcmp.ge.f32.partialorder %v679, 0.0
        %vm1112 = vcmp.ge.f32.partialorder %v680, 0.0
        %vm1113 = vcmp.ge.f32.partialorder %v681, 0.0
        %vm1114 = vcmp.ge.f32.partialorder %v682, 0.0
        %vm1115 = vcmp.ge.f32.partialorder %v683, 0.0
        %vm1116 = vcmp.ge.f32.partialorder %v684, 0.0
        %vm1117 = vcmp.ge.f32.partialorder %v685, 0.0
        %vm1118 = vcmp.ge.f32.partialorder %v686, 0.0
        %vm1119 = vcmp.ge.f32.partialorder %v687, 0.0
        %vm1120 = vcmp.ge.f32.partialorder %v688, 0.0
        %vm1121 = vcmp.le.f32.partialorder %v641, %v673
        %vm1122 = vcmp.le.f32.partialorder %v642, %v674
        %vm1123 = vcmp.le.f32.partialorder %v643, %v675
        %vm1124 = vcmp.le.f32.partialorder %v644, %v676
        %vm1125 = vcmp.le.f32.partialorder %v645, %v677
        %vm1126 = vcmp.le.f32.partialorder %v646, %v678
        %vm1127 = vcmp.le.f32.partialorder %v647, %v679
        %vm1128 = vcmp.le.f32.partialorder %v648, %v680
        %vm1129 = vcmp.le.f32.partialorder %v649, %v681
        %vm1130 = vcmp.le.f32.partialorder %v650, %v682
        %vm1131 = vcmp.le.f32.partialorder %v651, %v683
        %vm1132 = vcmp.le.f32.partialorder %v652, %v684
        %vm1133 = vcmp.le.f32.partialorder %v653, %v685
        %vm1134 = vcmp.le.f32.partialorder %v654, %v686
        %vm1135 = vcmp.le.f32.partialorder %v655, %v687
        %vm1136 = vcmp.le.f32.partialorder %v656, %v688
        %vm1137 = vmand %vm1105, %vm1121
        %vm1138 = vmand %vm1106, %vm1122
        %vm1139 = vmand %vm1107, %vm1123
        %vm1140 = vmand %vm1108, %vm1124
        %vm1141 = vmand %vm1109, %vm1125
        %vm1142 = vmand %vm1110, %vm1126
        %vm1143 = vmand %vm1111, %vm1127
        %vm1144 = vmand %vm1112, %vm1128
        %vm1145 = vmand %vm1113, %vm1129
        %vm1146 = vmand %vm1114, %vm1130
        %vm1147 = vmand %vm1115, %vm1131
        %vm1148 = vmand %vm1116, %vm1132
        %vm1149 = vmand %vm1117, %vm1133
        %vm1150 = vmand %vm1118, %vm1134
        %vm1151 = vmand %vm1119, %vm1135
        %vm1152 = vmand %vm1120, %vm1136
        %vm1153 = vcmp.le.f32.partialorder %v769, 0.0
        %vm1154 = vcmp.le.f32.partialorder %v770, 0.0
        %vm1155 = vcmp.le.f32.partialorder %v771, 0.0
        %vm1156 = vcmp.le.f32.partialorder %v772, 0.0
        %vm1157 = vcmp.le.f32.partialorder %v773, 0.0
        %vm1158 = vcmp.le.f32.partialorder %v774, 0.0
        %vm1159 = vcmp.le.f32.partialorder %v775, 0.0
        %vm1160 = vcmp.le.f32.partialorder %v776, 0.0
        %vm1161 = vcmp.le.f32.partialorder %v777, 0.0
        %vm1162 = vcmp.le.f32.partialorder %v778, 0.0
        %vm1163 = vcmp.le.f32.partialorder %v779, 0.0
        %vm1164 = vcmp.le.f32.partialorder %v780, 0.0
        %vm1165 = vcmp.le.f32.partialorder %v781, 0.0
        %vm1166 = vcmp.le.f32.partialorder %v782, 0.0
        %vm1167 = vcmp.le.f32.partialorder %v783, 0.0
        %vm1168 = vcmp.le.f32.partialorder %v784, 0.0
        %vm1169 = vcmp.ge.f32.partialorder %v540, 0.0
        %vm1170 = vcmp.ge.f32.partialorder %v545, 0.0
        %vm1171 = vcmp.ge.f32.partialorder %v550, 0.0
        %vm1172 = vcmp.ge.f32.partialorder %v555, 0.0
        %vm1173 = vcmp.ge.f32.partialorder %v560, 0.0
        %vm1174 = vcmp.ge.f32.partialorder %v565, 0.0
        %vm1175 = vcmp.ge.f32.partialorder %v570, 0.0
        %vm1176 = vcmp.ge.f32.partialorder %v575, 0.0
        %vm1177 = vcmp.ge.f32.partialorder %v580, 0.0
        %vm1178 = vcmp.ge.f32.partialorder %v585, 0.0
        %vm1179 = vcmp.ge.f32.partialorder %v590, 0.0
        %vm1180 = vcmp.ge.f32.partialorder %v595, 0.0
        %vm1181 = vcmp.ge.f32.partialorder %v600, 0.0
        %vm1182 = vcmp.ge.f32.partialorder %v605, 0.0
        %vm1183 = vcmp.ge.f32.partialorder %v610, 0.0
        %vm1184 = vcmp.ge.f32.partialorder %v615, 0.0
        %vm1185 = vmand %vm1153, %vm1169
        %vm1186 = vmand %vm1154, %vm1170
        %vm1187 = vmand %vm1155, %vm1171
        %vm1188 = vmand %vm1156, %vm1172
        %vm1189 = vmand %vm1157, %vm1173
        %vm1190 = vmand %vm1158, %vm1174
        %vm1191 = vmand %vm1159, %vm1175
        %vm1192 = vmand %vm1160, %vm1176
        %vm1193 = vmand %vm1161, %vm1177
        %vm1194 = vmand %vm1162, %vm1178
        %vm1195 = vmand %vm1163, %vm1179
        %vm1196 = vmand %vm1164, %vm1180
        %vm1197 = vmand %vm1165, %vm1181
        %vm1198 = vmand %vm1166, %vm1182
        %vm1199 = vmand %vm1167, %vm1183
        %vm1200 = vmand %vm1168, %vm1184
        %vm1201 = vcmp.le.f32.partialorder %v673, 0.0
        %vm1202 = vcmp.le.f32.partialorder %v674, 0.0
        %vm1203 = vcmp.le.f32.partialorder %v675, 0.0
        %vm1204 = vcmp.le.f32.partialorder %v676, 0.0
        %vm1205 = vcmp.le.f32.partialorder %v677, 0.0
        %vm1206 = vcmp.le.f32.partialorder %v678, 0.0
        %vm1207 = vcmp.le.f32.partialorder %v679, 0.0
        %vm1208 = vcmp.le.f32.partialorder %v680, 0.0
        %vm1209 = vcmp.le.f32.partialorder %v681, 0.0
        %vm1210 = vcmp.le.f32.partialorder %v682, 0.0
        %vm1211 = vcmp.le.f32.partialorder %v683, 0.0
        %vm1212 = vcmp.le.f32.partialorder %v684, 0.0
        %vm1213 = vcmp.le.f32.partialorder %v685, 0.0
        %vm1214 = vcmp.le.f32.partialorder %v686, 0.0
        %vm1215 = vcmp.le.f32.partialorder %v687, 0.0
        %vm1216 = vcmp.le.f32.partialorder %v688, 0.0
        %vm1217 = vmand %vm1185, %vm1201
        %vm1218 = vmand %vm1186, %vm1202
        %vm1219 = vmand %vm1187, %vm1203
        %vm1220 = vmand %vm1188, %vm1204
        %vm1221 = vmand %vm1189, %vm1205
        %vm1222 = vmand %vm1190, %vm1206
        %vm1223 = vmand %vm1191, %vm1207
        %vm1224 = vmand %vm1192, %vm1208
        %vm1225 = vmand %vm1193, %vm1209
        %vm1226 = vmand %vm1194, %vm1210
        %vm1227 = vmand %vm1195, %vm1211
        %vm1228 = vmand %vm1196, %vm1212
        %vm1229 = vmand %vm1197, %vm1213
        %vm1230 = vmand %vm1198, %vm1214
        %vm1231 = vmand %vm1199, %vm1215
        %vm1232 = vmand %vm1200, %vm1216
        %vm1233 = vcmp.le.f32.partialorder %v817, 0.0
        %vm1234 = vcmp.le.f32.partialorder %v818, 0.0
        %vm1235 = vcmp.le.f32.partialorder %v819, 0.0
        %vm1236 = vcmp.le.f32.partialorder %v820, 0.0
        %vm1237 = vcmp.le.f32.partialorder %v821, 0.0
        %vm1238 = vcmp.le.f32.partialorder %v822, 0.0
        %vm1239 = vcmp.le.f32.partialorder %v823, 0.0
        %vm1240 = vcmp.le.f32.partialorder %v824, 0.0
        %vm1241 = vcmp.le.f32.partialorder %v825, 0.0
        %vm1242 = vcmp.le.f32.partialorder %v826, 0.0
        %vm1243 = vcmp.le.f32.partialorder %v827, 0.0
        %vm1244 = vcmp.le.f32.partialorder %v828, 0.0
        %vm1245 = vcmp.le.f32.partialorder %v829, 0.0
        %vm1246 = vcmp.le.f32.partialorder %v830, 0.0
        %vm1247 = vcmp.le.f32.partialorder %v831, 0.0
        %vm1248 = vcmp.le.f32.partialorder %v832, 0.0
        %vm1249 = vcmp.ge.f32.partialorder %v865, 0.0
        %vm1250 = vcmp.ge.f32.partialorder %v866, 0.0
        %vm1251 = vcmp.ge.f32.partialorder %v867, 0.0
        %vm1252 = vcmp.ge.f32.partialorder %v868, 0.0
        %vm1253 = vcmp.ge.f32.partialorder %v869, 0.0
        %vm1254 = vcmp.ge.f32.partialorder %v870, 0.0
        %vm1255 = vcmp.ge.f32.partialorder %v871, 0.0
        %vm1256 = vcmp.ge.f32.partialorder %v872, 0.0
        %vm1257 = vcmp.ge.f32.partialorder %v873, 0.0
        %vm1258 = vcmp.ge.f32.partialorder %v874, 0.0
        %vm1259 = vcmp.ge.f32.partialorder %v875, 0.0
        %vm1260 = vcmp.ge.f32.partialorder %v876, 0.0
        %vm1261 = vcmp.ge.f32.partialorder %v877, 0.0
        %vm1262 = vcmp.ge.f32.partialorder %v878, 0.0
        %vm1263 = vcmp.ge.f32.partialorder %v879, 0.0
        %vm1264 = vcmp.ge.f32.partialorder %v880, 0.0
        %vm1265 = vmand %vm1233, %vm1249
        %vm1266 = vmand %vm1234, %vm1250
        %vm1267 = vmand %vm1235, %vm1251
        %vm1268 = vmand %vm1236, %vm1252
        %vm1269 = vmand %vm1237, %vm1253
        %vm1270 = vmand %vm1238, %vm1254
        %vm1271 = vmand %vm1239, %vm1255
        %vm1272 = vmand %vm1240, %vm1256
        %vm1273 = vmand %vm1241, %vm1257
        %vm1274 = vmand %vm1242, %vm1258
        %vm1275 = vmand %vm1243, %vm1259
        %vm1276 = vmand %vm1244, %vm1260
        %vm1277 = vmand %vm1245, %vm1261
        %vm1278 = vmand %vm1246, %vm1262
        %vm1279 = vmand %vm1247, %vm1263
        %vm1280 = vmand %vm1248, %vm1264
        %v1281 = vsub.f32 %v641, %v673
        %v1282 = vsub.f32 %v642, %v674
        %v1283 = vsub.f32 %v643, %v675
        %v1284 = vsub.f32 %v644, %v676
        %v1285 = vsub.f32 %v645, %v677
        %v1286 = vsub.f32 %v646, %v678
        %v1287 = vsub.f32 %v647, %v679
        %v1288 = vsub.f32 %v648, %v680
        %v1289 = vsub.f32 %v649, %v681
        %v1290 = vsub.f32 %v650, %v682
        %v1291 = vsub.f32 %v651, %v683
        %v1292 = vsub.f32 %v652, %v684
        %v1293 = vsub.f32 %v653, %v685
        %v1294 = vsub.f32 %v654, %v686
        %v1295 = vsub.f32 %v655, %v687
        %v1296 = vsub.f32 %v656, %v688
        %vm1297 = vcmp.ge.f32.partialorder %v1281, 0.0
        %vm1298 = vcmp.ge.f32.partialorder %v1282, 0.0
        %vm1299 = vcmp.ge.f32.partialorder %v1283, 0.0
        %vm1300 = vcmp.ge.f32.partialorder %v1284, 0.0
        %vm1301 = vcmp.ge.f32.partialorder %v1285, 0.0
        %vm1302 = vcmp.ge.f32.partialorder %v1286, 0.0
        %vm1303 = vcmp.ge.f32.partialorder %v1287, 0.0
        %vm1304 = vcmp.ge.f32.partialorder %v1288, 0.0
        %vm1305 = vcmp.ge.f32.partialorder %v1289, 0.0
        %vm1306 = vcmp.ge.f32.partialorder %v1290, 0.0
        %vm1307 = vcmp.ge.f32.partialorder %v1291, 0.0
        %vm1308 = vcmp.ge.f32.partialorder %v1292, 0.0
        %vm1309 = vcmp.ge.f32.partialorder %v1293, 0.0
        %vm1310 = vcmp.ge.f32.partialorder %v1294, 0.0
        %vm1311 = vcmp.ge.f32.partialorder %v1295, 0.0
        %vm1312 = vcmp.ge.f32.partialorder %v1296, 0.0
        %vm1313 = vmand %vm1265, %vm1297
        %vm1314 = vmand %vm1266, %vm1298
        %vm1315 = vmand %vm1267, %vm1299
        %vm1316 = vmand %vm1268, %vm1300
        %vm1317 = vmand %vm1269, %vm1301
        %vm1318 = vmand %vm1270, %vm1302
        %vm1319 = vmand %vm1271, %vm1303
        %vm1320 = vmand %vm1272, %vm1304
        %vm1321 = vmand %vm1273, %vm1305
        %vm1322 = vmand %vm1274, %vm1306
        %vm1323 = vmand %vm1275, %vm1307
        %vm1324 = vmand %vm1276, %vm1308
        %vm1325 = vmand %vm1277, %vm1309
        %vm1326 = vmand %vm1278, %vm1310
        %vm1327 = vmand %vm1279, %vm1311
        %vm1328 = vmand %vm1280, %vm1312
        %v1329 = vsub.f32 1.0, %v881
        %v1330 = vsub.f32 1.0, %v882
        %v1331 = vsub.f32 1.0, %v883
        %v1332 = vsub.f32 1.0, %v884
        %v1333 = vsub.f32 1.0, %v885
        %v1334 = vsub.f32 1.0, %v886
        %v1335 = vsub.f32 1.0, %v887
        %v1336 = vsub.f32 1.0, %v888
        %v1337 = vsub.f32 1.0, %v889
        %v1338 = vsub.f32 1.0, %v890
        %v1339 = vsub.f32 1.0, %v891
        %v1340 = vsub.f32 1.0, %v892
        %v1341 = vsub.f32 1.0, %v893
        %v1342 = vsub.f32 1.0, %v894
        %v1343 = vsub.f32 1.0, %v895
        %v1344 = vsub.f32 1.0, %v896
        %v1345 = vsel %vm1313, %v1329, %v897
        %v1346 = vsel %vm1314, %v1330, %v898
        %v1347 = vsel %vm1315, %v1331, %v899
        %v1348 = vsel %vm1316, %v1332, %v900
        %v1349 = vsel %vm1317, %v1333, %v901
        %v1350 = vsel %vm1318, %v1334, %v902
        %v1351 = vsel %vm1319, %v1335, %v903
        %v1352 = vsel %vm1320, %v1336, %v904
        %v1353 = vsel %vm1321, %v1337, %v905
        %v1354 = vsel %vm1322, %v1338, %v906
        %v1355 = vsel %vm1323, %v1339, %v907
        %v1356 = vsel %vm1324, %v1340, %v908
        %v1357 = vsel %vm1325, %v1341, %v909
        %v1358 = vsel %vm1326, %v1342, %v910
        %v1359 = vsel %vm1327, %v1343, %v911
        %v1360 = vsel %vm1328, %v1344, %v912
        %v1361 = vsel %vm1217, 0.0, %v1345
        %v1362 = vsel %vm1218, 0.0, %v1346
        %v1363 = vsel %vm1219, 0.0, %v1347
        %v1364 = vsel %vm1220, 0.0, %v1348
        %v1365 = vsel %vm1221, 0.0, %v1349
        %v1366 = vsel %vm1222, 0.0, %v1350
        %v1367 = vsel %vm1223, 0.0, %v1351
        %v1368 = vsel %vm1224, 0.0, %v1352
        %v1369 = vsel %vm1225, 0.0, %v1353
        %v1370 = vsel %vm1226, 0.0, %v1354
        %v1371 = vsel %vm1227, 0.0, %v1355
        %v1372 = vsel %vm1228, 0.0, %v1356
        %v1373 = vsel %vm1229, 0.0, %v1357
        %v1374 = vsel %vm1230, 0.0, %v1358
        %v1375 = vsel %vm1231, 0.0, %v1359
        %v1376 = vsel %vm1232, 0.0, %v1360
        %v1377 = vsel %vm1137, 0.0, %v1361
        %v1378 = vsel %vm1138, 0.0, %v1362
        %v1379 = vsel %vm1139, 0.0, %v1363
        %v1380 = vsel %vm1140, 0.0, %v1364
        %v1381 = vsel %vm1141, 0.0, %v1365
        %v1382 = vsel %vm1142, 0.0, %v1366
        %v1383 = vsel %vm1143, 0.0, %v1367
        %v1384 = vsel %vm1144, 0.0, %v1368
        %v1385 = vsel %vm1145, 0.0, %v1369
        %v1386 = vsel %vm1146, 0.0, %v1370
        %v1387 = vsel %vm1147, 0.0, %v1371
        %v1388 = vsel %vm1148, 0.0, %v1372
        %v1389 = vsel %vm1149, 0.0, %v1373
        %v1390 = vsel %vm1150, 0.0, %v1374
        %v1391 = vsel %vm1151, 0.0, %v1375
        %v1392 = vsel %vm1152, 0.0, %v1376
        %v1393 = vsel %vm1089, %v833, %v1377
        %v1394 = vsel %vm1090, %v834, %v1378
        %v1395 = vsel %vm1091, %v835, %v1379
        %v1396 = vsel %vm1092, %v836, %v1380
        %v1397 = vsel %vm1093, %v837, %v1381
        %v1398 = vsel %vm1094, %v838, %v1382
        %v1399 = vsel %vm1095, %v839, %v1383
        %v1400 = vsel %vm1096, %v840, %v1384
        %v1401 = vsel %vm1097, %v841, %v1385
        %v1402 = vsel %vm1098, %v842, %v1386
        %v1403 = vsel %vm1099, %v843, %v1387
        %v1404 = vsel %vm1100, %v844, %v1388
        %v1405 = vsel %vm1101, %v845, %v1389
        %v1406 = vsel %vm1102, %v846, %v1390
        %v1407 = vsel %vm1103, %v847, %v1391
        %v1408 = vsel %vm1104, %v848, %v1392
        %v1409 = vsel %vm1009, 1.0, %v1393
        %v1410 = vsel %vm1010, 1.0, %v1394
        %v1411 = vsel %vm1011, 1.0, %v1395
        %v1412 = vsel %vm1012, 1.0, %v1396
        %v1413 = vsel %vm1013, 1.0, %v1397
        %v1414 = vsel %vm1014, 1.0, %v1398
        %v1415 = vsel %vm1015, 1.0, %v1399
        %v1416 = vsel %vm1016, 1.0, %v1400
        %v1417 = vsel %vm1017, 1.0, %v1401
        %v1418 = vsel %vm1018, 1.0, %v1402
        %v1419 = vsel %vm1019, 1.0, %v1403
        %v1420 = vsel %vm1020, 1.0, %v1404
        %v1421 = vsel %vm1021, 1.0, %v1405
        %v1422 = vsel %vm1022, 1.0, %v1406
        %v1423 = vsel %vm1023, 1.0, %v1407
        %v1424 = vsel %vm1024, 1.0, %v1408
        %v1425 = vsel %vm961, 0.0, %v1409
        %v1426 = vsel %vm962, 0.0, %v1410
        %v1427 = vsel %vm963, 0.0, %v1411
        %v1428 = vsel %vm964, 0.0, %v1412
        %v1429 = vsel %vm965, 0.0, %v1413
        %v1430 = vsel %vm966, 0.0, %v1414
        %v1431 = vsel %vm967, 0.0, %v1415
        %v1432 = vsel %vm968, 0.0, %v1416
        %v1433 = vsel %vm969, 0.0, %v1417
        %v1434 = vsel %vm970, 0.0, %v1418
        %v1435 = vsel %vm971, 0.0, %v1419
        %v1436 = vsel %vm972, 0.0, %v1420
        %v1437 = vsel %vm973, 0.0, %v1421
        %v1438 = vsel %vm974, 0.0, %v1422
        %v1439 = vsel %vm975, 0.0, %v1423
        %v1440 = vsel %vm976, 0.0, %v1424
        %v1441 = vsel %vm1313, %v881, %v913
        %v1442 = vsel %vm1314, %v882, %v914
        %v1443 = vsel %vm1315, %v883, %v915
        %v1444 = vsel %vm1316, %v884, %v916
        %v1445 = vsel %vm1317, %v885, %v917
        %v1446 = vsel %vm1318, %v886, %v918
        %v1447 = vsel %vm1319, %v887, %v919
        %v1448 = vsel %vm1320, %v888, %v920
        %v1449 = vsel %vm1321, %v889, %v921
        %v1450 = vsel %vm1322, %v890, %v922
        %v1451 = vsel %vm1323, %v891, %v923
        %v1452 = vsel %vm1324, %v892, %v924
        %v1453 = vsel %vm1325, %v893, %v925
        %v1454 = vsel %vm1326, %v894, %v926
        %v1455 = vsel %vm1327, %v895, %v927
        %v1456 = vsel %vm1328, %v896, %v928
        %v1457 = vsel %vm1217, %v849, %v1441
        %v1458 = vsel %vm1218, %v850, %v1442
        %v1459 = vsel %vm1219, %v851, %v1443
        %v1460 = vsel %vm1220, %v852, %v1444
        %v1461 = vsel %vm1221, %v853, %v1445
        %v1462 = vsel %vm1222, %v854, %v1446
        %v1463 = vsel %vm1223, %v855, %v1447
        %v1464 = vsel %vm1224, %v856, %v1448
        %v1465 = vsel %vm1225, %v857, %v1449
        %v1466 = vsel %vm1226, %v858, %v1450
        %v1467 = vsel %vm1227, %v859, %v1451
        %v1468 = vsel %vm1228, %v860, %v1452
        %v1469 = vsel %vm1229, %v861, %v1453
        %v1470 = vsel %vm1230, %v862, %v1454
        %v1471 = vsel %vm1231, %v863, %v1455
        %v1472 = vsel %vm1232, %v864, %v1456
        %v1473 = vsel %vm1137, 1.0, %v1457
        %v1474 = vsel %vm1138, 1.0, %v1458
        %v1475 = vsel %vm1139, 1.0, %v1459
        %v1476 = vsel %vm1140, 1.0, %v1460
        %v1477 = vsel %vm1141, 1.0, %v1461
        %v1478 = vsel %vm1142, 1.0, %v1462
        %v1479 = vsel %vm1143, 1.0, %v1463
        %v1480 = vsel %vm1144, 1.0, %v1464
        %v1481 = vsel %vm1145, 1.0, %v1465
        %v1482 = vsel %vm1146, 1.0, %v1466
        %v1483 = vsel %vm1147, 1.0, %v1467
        %v1484 = vsel %vm1148, 1.0, %v1468
        %v1485 = vsel %vm1149, 1.0, %v1469
        %v1486 = vsel %vm1150, 1.0, %v1470
        %v1487 = vsel %vm1151, 1.0, %v1471
        %v1488 = vsel %vm1152, 1.0, %v1472
        %v1489 = vsel %vm1089, 0.0, %v1473
        %v1490 = vsel %vm1090, 0.0, %v1474
        %v1491 = vsel %vm1091, 0.0, %v1475
        %v1492 = vsel %vm1092, 0.0, %v1476
        %v1493 = vsel %vm1093, 0.0, %v1477
        %v1494 = vsel %vm1094, 0.0, %v1478
        %v1495 = vsel %vm1095, 0.0, %v1479
        %v1496 = vsel %vm1096, 0.0, %v1480
        %v1497 = vsel %vm1097, 0.0, %v1481
        %v1498 = vsel %vm1098, 0.0, %v1482
        %v1499 = vsel %vm1099, 0.0, %v1483
        %v1500 = vsel %vm1100, 0.0, %v1484
        %v1501 = vsel %vm1101, 0.0, %v1485
        %v1502 = vsel %vm1102, 0.0, %v1486
        %v1503 = vsel %vm1103, 0.0, %v1487
        %v1504 = vsel %vm1104, 0.0, %v1488
        %v1505 = vsel %vm1009, 0.0, %v1489
        %v1506 = vsel %vm1010, 0.0, %v1490
        %v1507 = vsel %vm1011, 0.0, %v1491
        %v1508 = vsel %vm1012, 0.0, %v1492
        %v1509 = vsel %vm1013, 0.0, %v1493
        %v1510 = vsel %vm1014, 0.0, %v1494
        %v1511 = vsel %vm1015, 0.0, %v1495
        %v1512 = vsel %vm1016, 0.0, %v1496
        %v1513 = vsel %vm1017, 0.0, %v1497
        %v1514 = vsel %vm1018, 0.0, %v1498
        %v1515 = vsel %vm1019, 0.0, %v1499
        %v1516 = vsel %vm1020, 0.0, %v1500
        %v1517 = vsel %vm1021, 0.0, %v1501
        %v1518 = vsel %vm1022, 0.0, %v1502
        %v1519 = vsel %vm1023, 0.0, %v1503
        %v1520 = vsel %vm1024, 0.0, %v1504
        %v1521 = vsel %vm961, 0.0, %v1505
        %v1522 = vsel %vm962, 0.0, %v1506
        %v1523 = vsel %vm963, 0.0, %v1507
        %v1524 = vsel %vm964, 0.0, %v1508
        %v1525 = vsel %vm965, 0.0, %v1509
        %v1526 = vsel %vm966, 0.0, %v1510
        %v1527 = vsel %vm967, 0.0, %v1511
        %v1528 = vsel %vm968, 0.0, %v1512
        %v1529 = vsel %vm969, 0.0, %v1513
        %v1530 = vsel %vm970, 0.0, %v1514
        %v1531 = vsel %vm971, 0.0, %v1515
        %v1532 = vsel %vm972, 0.0, %v1516
        %v1533 = vsel %vm973, 0.0, %v1517
        %v1534 = vsel %vm974, 0.0, %v1518
        %v1535 = vsel %vm975, 0.0, %v1519
        %v1536 = vsel %vm976, 0.0, %v1520
        %v1537 = vld [vmem:[%s276 + $0x20] ss:$0 sm:$0xff]
        %v1538 = vld [vmem:[%s276 + $0x21] ss:$0 sm:$0xff]
        %v1539 = vld [vmem:[%s276 + $0x22] ss:$0 sm:$0xff]
        %1540 = vset.pattern.permute.xlu0 0
        %1541 = vperm.xlu0 %1540, %v218
        %v1542 = vpop.permute.xlu0 %1541
        %1544 = vset.pattern.permute.xlu0 0
        %1545 = vperm.xlu0 %1544, %v219
        %v1546 = vpop.permute.xlu0 %1545
        %1548 = vset.pattern.permute.xlu0 0
        %1549 = vperm.xlu0 %1548, %v220
        %v1550 = vpop.permute.xlu0 %1549
        %1552 = vset.pattern.permute.xlu0 0
        %1553 = vperm.xlu0 %1552, %v221
        %v1554 = vpop.permute.xlu0 %1553
        %1556 = vset.pattern.permute.xlu0 0
        %1557 = vperm.xlu0 %1556, %v222
        %v1558 = vpop.permute.xlu0 %1557
        %1560 = vset.pattern.permute.xlu0 0
        %1561 = vperm.xlu0 %1560, %v223
        %v1562 = vpop.permute.xlu0 %1561
        %1564 = vset.pattern.permute.xlu0 0
        %1565 = vperm.xlu0 %1564, %v224
        %v1566 = vpop.permute.xlu0 %1565
        %1568 = vset.pattern.permute.xlu0 0
        %1569 = vperm.xlu0 %1568, %v225
        %v1570 = vpop.permute.xlu0 %1569
        %1572 = vset.pattern.permute.xlu0 0
        %1573 = vperm.xlu0 %1572, %v226
        %v1574 = vpop.permute.xlu0 %1573
        %1576 = vset.pattern.permute.xlu0 0
        %1577 = vperm.xlu0 %1576, %v227
        %v1578 = vpop.permute.xlu0 %1577
        %1580 = vset.pattern.permute.xlu0 0
        %1581 = vperm.xlu0 %1580, %v228
        %v1582 = vpop.permute.xlu0 %1581
        %1584 = vset.pattern.permute.xlu0 0
        %1585 = vperm.xlu0 %1584, %v229
        %v1586 = vpop.permute.xlu0 %1585
        %1588 = vset.pattern.permute.xlu0 0
        %1589 = vperm.xlu0 %1588, %v230
        %v1590 = vpop.permute.xlu0 %1589
        %1592 = vset.pattern.permute.xlu0 0
        %1593 = vperm.xlu0 %1592, %v231
        %v1594 = vpop.permute.xlu0 %1593
        %1596 = vset.pattern.permute.xlu0 0
        %1597 = vperm.xlu0 %1596, %v232
        %v1598 = vpop.permute.xlu0 %1597
        %1600 = vset.pattern.permute.xlu0 0
        %1601 = vperm.xlu0 %1600, %v233
        %v1602 = vpop.permute.xlu0 %1601
        %v1604 = vsub.f32 %v1542, %v1537
        %v1605 = vsub.f32 %v1546, %v1537
        %v1606 = vsub.f32 %v1550, %v1537
        %v1607 = vsub.f32 %v1554, %v1537
        %v1608 = vsub.f32 %v1558, %v1537
        %v1609 = vsub.f32 %v1562, %v1537
        %v1610 = vsub.f32 %v1566, %v1537
        %v1611 = vsub.f32 %v1570, %v1537
        %v1612 = vsub.f32 %v1574, %v1537
        %v1613 = vsub.f32 %v1578, %v1537
        %v1614 = vsub.f32 %v1582, %v1537
        %v1615 = vsub.f32 %v1586, %v1537
        %v1616 = vsub.f32 %v1590, %v1537
        %v1617 = vsub.f32 %v1594, %v1537
        %v1618 = vsub.f32 %v1598, %v1537
        %v1619 = vsub.f32 %v1602, %v1537
        %v1620 = vlaneseq
        %v1621 = vshrl.u32 %v1620, 7
        %v1622 = vsub.s32 0, %v1621
        %v1623 = vrot.slane %v277, %v1622
        %v1624 = vmul.f32 %v1425, %v1623
        %v1625 = vmul.f32 %v1426, %v1623
        %v1626 = vmul.f32 %v1427, %v1623
        %v1627 = vmul.f32 %v1428, %v1623
        %v1628 = vmul.f32 %v1429, %v1623
        %v1629 = vmul.f32 %v1430, %v1623
        %v1630 = vmul.f32 %v1431, %v1623
        %v1631 = vmul.f32 %v1432, %v1623
        %v1632 = vmul.f32 %v1433, %v1623
        %v1633 = vmul.f32 %v1434, %v1623
        %v1634 = vmul.f32 %v1435, %v1623
        %v1635 = vmul.f32 %v1436, %v1623
        %v1636 = vmul.f32 %v1437, %v1623
        %v1637 = vmul.f32 %v1438, %v1623
        %v1638 = vmul.f32 %v1439, %v1623
        %v1639 = vmul.f32 %v1440, %v1623
        %v1640 = vsub.f32 %v1604, %v1624
        %v1641 = vsub.f32 %v1605, %v1625
        %v1642 = vsub.f32 %v1606, %v1626
        %v1643 = vsub.f32 %v1607, %v1627
        %v1644 = vsub.f32 %v1608, %v1628
        %v1645 = vsub.f32 %v1609, %v1629
        %v1646 = vsub.f32 %v1610, %v1630
        %v1647 = vsub.f32 %v1611, %v1631
        %v1648 = vsub.f32 %v1612, %v1632
        %v1649 = vsub.f32 %v1613, %v1633
        %v1650 = vsub.f32 %v1614, %v1634
        %v1651 = vsub.f32 %v1615, %v1635
        %v1652 = vsub.f32 %v1616, %v1636
        %v1653 = vsub.f32 %v1617, %v1637
        %v1654 = vsub.f32 %v1618, %v1638
        %v1655 = vsub.f32 %v1619, %v1639
        %v1656 = vlaneseq
        %v1657 = vshrl.u32 %v1656, 7
        %v1658 = vsub.s32 0, %v1657
        %v1659 = vrot.slane %v278, %v1658
        %v1660 = vmul.f32 %v1521, %v1659
        %v1661 = vmul.f32 %v1522, %v1659
        %v1662 = vmul.f32 %v1523, %v1659
        %v1663 = vmul.f32 %v1524, %v1659
        %v1664 = vmul.f32 %v1525, %v1659
        %v1665 = vmul.f32 %v1526, %v1659
        %v1666 = vmul.f32 %v1527, %v1659
        %v1667 = vmul.f32 %v1528, %v1659
        %v1668 = vmul.f32 %v1529, %v1659
        %v1669 = vmul.f32 %v1530, %v1659
        %v1670 = vmul.f32 %v1531, %v1659
        %v1671 = vmul.f32 %v1532, %v1659
        %v1672 = vmul.f32 %v1533, %v1659
        %v1673 = vmul.f32 %v1534, %v1659
        %v1674 = vmul.f32 %v1535, %v1659
        %v1675 = vmul.f32 %v1536, %v1659
        %v1676 = vsub.f32 %v1640, %v1660
        %v1677 = vsub.f32 %v1641, %v1661
        %v1678 = vsub.f32 %v1642, %v1662
        %v1679 = vsub.f32 %v1643, %v1663
        %v1680 = vsub.f32 %v1644, %v1664
        %v1681 = vsub.f32 %v1645, %v1665
        %v1682 = vsub.f32 %v1646, %v1666
        %v1683 = vsub.f32 %v1647, %v1667
        %v1684 = vsub.f32 %v1648, %v1668
        %v1685 = vsub.f32 %v1649, %v1669
        %v1686 = vsub.f32 %v1650, %v1670
        %v1687 = vsub.f32 %v1651, %v1671
        %v1688 = vsub.f32 %v1652, %v1672
        %v1689 = vsub.f32 %v1653, %v1673
        %v1690 = vsub.f32 %v1654, %v1674
        %v1691 = vsub.f32 %v1655, %v1675
        %1692 = vset.pattern.permute.xlu0 1
        %1693 = vperm.xlu0 %1692, %v218
        %v1694 = vpop.permute.xlu0 %1693
        %1696 = vset.pattern.permute.xlu0 1
        %1697 = vperm.xlu0 %1696, %v219
        %v1698 = vpop.permute.xlu0 %1697
        %1700 = vset.pattern.permute.xlu0 1
        %1701 = vperm.xlu0 %1700, %v220
        %v1702 = vpop.permute.xlu0 %1701
        %1704 = vset.pattern.permute.xlu0 1
        %1705 = vperm.xlu0 %1704, %v221
        %v1706 = vpop.permute.xlu0 %1705
        %1708 = vset.pattern.permute.xlu0 1
        %1709 = vperm.xlu0 %1708, %v222
        %v1710 = vpop.permute.xlu0 %1709
        %1712 = vset.pattern.permute.xlu0 1
        %1713 = vperm.xlu0 %1712, %v223
        %v1714 = vpop.permute.xlu0 %1713
        %1716 = vset.pattern.permute.xlu0 1
        %1717 = vperm.xlu0 %1716, %v224
        %v1718 = vpop.permute.xlu0 %1717
        %1720 = vset.pattern.permute.xlu0 1
        %1721 = vperm.xlu0 %1720, %v225
        %v1722 = vpop.permute.xlu0 %1721
        %1724 = vset.pattern.permute.xlu0 1
        %1725 = vperm.xlu0 %1724, %v226
        %v1726 = vpop.permute.xlu0 %1725
        %1728 = vset.pattern.permute.xlu0 1
        %1729 = vperm.xlu0 %1728, %v227
        %v1730 = vpop.permute.xlu0 %1729
        %1732 = vset.pattern.permute.xlu0 1
        %1733 = vperm.xlu0 %1732, %v228
        %v1734 = vpop.permute.xlu0 %1733
        %1736 = vset.pattern.permute.xlu0 1
        %1737 = vperm.xlu0 %1736, %v229
        %v1738 = vpop.permute.xlu0 %1737
        %1740 = vset.pattern.permute.xlu0 1
        %1741 = vperm.xlu0 %1740, %v230
        %v1742 = vpop.permute.xlu0 %1741
        %1744 = vset.pattern.permute.xlu0 1
        %1745 = vperm.xlu0 %1744, %v231
        %v1746 = vpop.permute.xlu0 %1745
        %1748 = vset.pattern.permute.xlu0 1
        %1749 = vperm.xlu0 %1748, %v232
        %v1750 = vpop.permute.xlu0 %1749
        %1752 = vset.pattern.permute.xlu0 1
        %1753 = vperm.xlu0 %1752, %v233
        %v1754 = vpop.permute.xlu0 %1753
        %v1756 = vsub.f32 %v1694, %v1538
        %v1757 = vsub.f32 %v1698, %v1538
        %v1758 = vsub.f32 %v1702, %v1538
        %v1759 = vsub.f32 %v1706, %v1538
        %v1760 = vsub.f32 %v1710, %v1538
        %v1761 = vsub.f32 %v1714, %v1538
        %v1762 = vsub.f32 %v1718, %v1538
        %v1763 = vsub.f32 %v1722, %v1538
        %v1764 = vsub.f32 %v1726, %v1538
        %v1765 = vsub.f32 %v1730, %v1538
        %v1766 = vsub.f32 %v1734, %v1538
        %v1767 = vsub.f32 %v1738, %v1538
        %v1768 = vsub.f32 %v1742, %v1538
        %v1769 = vsub.f32 %v1746, %v1538
        %v1770 = vsub.f32 %v1750, %v1538
        %v1771 = vsub.f32 %v1754, %v1538
        %v1772 = vlaneseq
        %v1773 = vshrl.u32 %v1772, 7
        %v1774 = vsub.s32 1, %v1773
        %v1775 = vrot.slane %v277, %v1774
        %v1776 = vmul.f32 %v1425, %v1775
        %v1777 = vmul.f32 %v1426, %v1775
        %v1778 = vmul.f32 %v1427, %v1775
        %v1779 = vmul.f32 %v1428, %v1775
        %v1780 = vmul.f32 %v1429, %v1775
        %v1781 = vmul.f32 %v1430, %v1775
        %v1782 = vmul.f32 %v1431, %v1775
        %v1783 = vmul.f32 %v1432, %v1775
        %v1784 = vmul.f32 %v1433, %v1775
        %v1785 = vmul.f32 %v1434, %v1775
        %v1786 = vmul.f32 %v1435, %v1775
        %v1787 = vmul.f32 %v1436, %v1775
        %v1788 = vmul.f32 %v1437, %v1775
        %v1789 = vmul.f32 %v1438, %v1775
        %v1790 = vmul.f32 %v1439, %v1775
        %v1791 = vmul.f32 %v1440, %v1775
        %v1792 = vsub.f32 %v1756, %v1776
        %v1793 = vsub.f32 %v1757, %v1777
        %v1794 = vsub.f32 %v1758, %v1778
        %v1795 = vsub.f32 %v1759, %v1779
        %v1796 = vsub.f32 %v1760, %v1780
        %v1797 = vsub.f32 %v1761, %v1781
        %v1798 = vsub.f32 %v1762, %v1782
        %v1799 = vsub.f32 %v1763, %v1783
        %v1800 = vsub.f32 %v1764, %v1784
        %v1801 = vsub.f32 %v1765, %v1785
        %v1802 = vsub.f32 %v1766, %v1786
        %v1803 = vsub.f32 %v1767, %v1787
        %v1804 = vsub.f32 %v1768, %v1788
        %v1805 = vsub.f32 %v1769, %v1789
        %v1806 = vsub.f32 %v1770, %v1790
        %v1807 = vsub.f32 %v1771, %v1791
        %v1808 = vlaneseq
        %v1809 = vshrl.u32 %v1808, 7
        %v1810 = vsub.s32 1, %v1809
        %v1811 = vrot.slane %v278, %v1810
        %v1812 = vmul.f32 %v1521, %v1811
        %v1813 = vmul.f32 %v1522, %v1811
        %v1814 = vmul.f32 %v1523, %v1811
        %v1815 = vmul.f32 %v1524, %v1811
        %v1816 = vmul.f32 %v1525, %v1811
        %v1817 = vmul.f32 %v1526, %v1811
        %v1818 = vmul.f32 %v1527, %v1811
        %v1819 = vmul.f32 %v1528, %v1811
        %v1820 = vmul.f32 %v1529, %v1811
        %v1821 = vmul.f32 %v1530, %v1811
        %v1822 = vmul.f32 %v1531, %v1811
        %v1823 = vmul.f32 %v1532, %v1811
        %v1824 = vmul.f32 %v1533, %v1811
        %v1825 = vmul.f32 %v1534, %v1811
        %v1826 = vmul.f32 %v1535, %v1811
        %v1827 = vmul.f32 %v1536, %v1811
        %v1828 = vsub.f32 %v1792, %v1812
        %v1829 = vsub.f32 %v1793, %v1813
        %v1830 = vsub.f32 %v1794, %v1814
        %v1831 = vsub.f32 %v1795, %v1815
        %v1832 = vsub.f32 %v1796, %v1816
        %v1833 = vsub.f32 %v1797, %v1817
        %v1834 = vsub.f32 %v1798, %v1818
        %v1835 = vsub.f32 %v1799, %v1819
        %v1836 = vsub.f32 %v1800, %v1820
        %v1837 = vsub.f32 %v1801, %v1821
        %v1838 = vsub.f32 %v1802, %v1822
        %v1839 = vsub.f32 %v1803, %v1823
        %v1840 = vsub.f32 %v1804, %v1824
        %v1841 = vsub.f32 %v1805, %v1825
        %v1842 = vsub.f32 %v1806, %v1826
        %v1843 = vsub.f32 %v1807, %v1827
        %1844 = vset.pattern.permute.xlu0 2
        %1845 = vperm.xlu0 %1844, %v218
        %v1846 = vpop.permute.xlu0 %1845
        %1848 = vset.pattern.permute.xlu0 2
        %1849 = vperm.xlu0 %1848, %v219
        %v1850 = vpop.permute.xlu0 %1849
        %1852 = vset.pattern.permute.xlu0 2
        %1853 = vperm.xlu0 %1852, %v220
        %v1854 = vpop.permute.xlu0 %1853
        %1856 = vset.pattern.permute.xlu0 2
        %1857 = vperm.xlu0 %1856, %v221
        %v1858 = vpop.permute.xlu0 %1857
        %1860 = vset.pattern.permute.xlu0 2
        %1861 = vperm.xlu0 %1860, %v222
        %v1862 = vpop.permute.xlu0 %1861
        %1864 = vset.pattern.permute.xlu0 2
        %1865 = vperm.xlu0 %1864, %v223
        %v1866 = vpop.permute.xlu0 %1865
        %1868 = vset.pattern.permute.xlu0 2
        %1869 = vperm.xlu0 %1868, %v224
        %v1870 = vpop.permute.xlu0 %1869
        %1872 = vset.pattern.permute.xlu0 2
        %1873 = vperm.xlu0 %1872, %v225
        %v1874 = vpop.permute.xlu0 %1873
        %1876 = vset.pattern.permute.xlu0 2
        %1877 = vperm.xlu0 %1876, %v226
        %v1878 = vpop.permute.xlu0 %1877
        %1880 = vset.pattern.permute.xlu0 2
        %1881 = vperm.xlu0 %1880, %v227
        %v1882 = vpop.permute.xlu0 %1881
        %1884 = vset.pattern.permute.xlu0 2
        %1885 = vperm.xlu0 %1884, %v228
        %v1886 = vpop.permute.xlu0 %1885
        %1888 = vset.pattern.permute.xlu0 2
        %1889 = vperm.xlu0 %1888, %v229
        %v1890 = vpop.permute.xlu0 %1889
        %1892 = vset.pattern.permute.xlu0 2
        %1893 = vperm.xlu0 %1892, %v230
        %v1894 = vpop.permute.xlu0 %1893
        %1896 = vset.pattern.permute.xlu0 2
        %1897 = vperm.xlu0 %1896, %v231
        %v1898 = vpop.permute.xlu0 %1897
        %1900 = vset.pattern.permute.xlu0 2
        %1901 = vperm.xlu0 %1900, %v232
        %v1902 = vpop.permute.xlu0 %1901
        %1904 = vset.pattern.permute.xlu0 2
        %1905 = vperm.xlu0 %1904, %v233
        %v1906 = vpop.permute.xlu0 %1905
        %v1908 = vsub.f32 %v1846, %v1539
        %v1909 = vsub.f32 %v1850, %v1539
        %v1910 = vsub.f32 %v1854, %v1539
        %v1911 = vsub.f32 %v1858, %v1539
        %v1912 = vsub.f32 %v1862, %v1539
        %v1913 = vsub.f32 %v1866, %v1539
        %v1914 = vsub.f32 %v1870, %v1539
        %v1915 = vsub.f32 %v1874, %v1539
        %v1916 = vsub.f32 %v1878, %v1539
        %v1917 = vsub.f32 %v1882, %v1539
        %v1918 = vsub.f32 %v1886, %v1539
        %v1919 = vsub.f32 %v1890, %v1539
        %v1920 = vsub.f32 %v1894, %v1539
        %v1921 = vsub.f32 %v1898, %v1539
        %v1922 = vsub.f32 %v1902, %v1539
        %v1923 = vsub.f32 %v1906, %v1539
        %v1924 = vlaneseq
        %v1925 = vshrl.u32 %v1924, 7
        %v1926 = vsub.s32 2, %v1925
        %v1927 = vrot.slane %v277, %v1926
        %v1928 = vmul.f32 %v1425, %v1927
        %v1929 = vmul.f32 %v1426, %v1927
        %v1930 = vmul.f32 %v1427, %v1927
        %v1931 = vmul.f32 %v1428, %v1927
        %v1932 = vmul.f32 %v1429, %v1927
        %v1933 = vmul.f32 %v1430, %v1927
        %v1934 = vmul.f32 %v1431, %v1927
        %v1935 = vmul.f32 %v1432, %v1927
        %v1936 = vmul.f32 %v1433, %v1927
        %v1937 = vmul.f32 %v1434, %v1927
        %v1938 = vmul.f32 %v1435, %v1927
        %v1939 = vmul.f32 %v1436, %v1927
        %v1940 = vmul.f32 %v1437, %v1927
        %v1941 = vmul.f32 %v1438, %v1927
        %v1942 = vmul.f32 %v1439, %v1927
        %v1943 = vmul.f32 %v1440, %v1927
        %v1944 = vsub.f32 %v1908, %v1928
        %v1945 = vsub.f32 %v1909, %v1929
        %v1946 = vsub.f32 %v1910, %v1930
        %v1947 = vsub.f32 %v1911, %v1931
        %v1948 = vsub.f32 %v1912, %v1932
        %v1949 = vsub.f32 %v1913, %v1933
        %v1950 = vsub.f32 %v1914, %v1934
        %v1951 = vsub.f32 %v1915, %v1935
        %v1952 = vsub.f32 %v1916, %v1936
        %v1953 = vsub.f32 %v1917, %v1937
        %v1954 = vsub.f32 %v1918, %v1938
        %v1955 = vsub.f32 %v1919, %v1939
        %v1956 = vsub.f32 %v1920, %v1940
        %v1957 = vsub.f32 %v1921, %v1941
        %v1958 = vsub.f32 %v1922, %v1942
        %v1959 = vsub.f32 %v1923, %v1943
        %v1960 = vlaneseq
        %v1961 = vshrl.u32 %v1960, 7
        %v1962 = vsub.s32 2, %v1961
        %v1963 = vrot.slane %v278, %v1962
        %v1964 = vmul.f32 %v1521, %v1963
        %v1965 = vmul.f32 %v1522, %v1963
        %v1966 = vmul.f32 %v1523, %v1963
        %v1967 = vmul.f32 %v1524, %v1963
        %v1968 = vmul.f32 %v1525, %v1963
        %v1969 = vmul.f32 %v1526, %v1963
        %v1970 = vmul.f32 %v1527, %v1963
        %v1971 = vmul.f32 %v1528, %v1963
        %v1972 = vmul.f32 %v1529, %v1963
        %v1973 = vmul.f32 %v1530, %v1963
        %v1974 = vmul.f32 %v1531, %v1963
        %v1975 = vmul.f32 %v1532, %v1963
        %v1976 = vmul.f32 %v1533, %v1963
        %v1977 = vmul.f32 %v1534, %v1963
        %v1978 = vmul.f32 %v1535, %v1963
        %v1979 = vmul.f32 %v1536, %v1963
        %v1980 = vsub.f32 %v1944, %v1964
        %v1981 = vsub.f32 %v1945, %v1965
        %v1982 = vsub.f32 %v1946, %v1966
        %v1983 = vsub.f32 %v1947, %v1967
        %v1984 = vsub.f32 %v1948, %v1968
        %v1985 = vsub.f32 %v1949, %v1969
        %v1986 = vsub.f32 %v1950, %v1970
        %v1987 = vsub.f32 %v1951, %v1971
        %v1988 = vsub.f32 %v1952, %v1972
        %v1989 = vsub.f32 %v1953, %v1973
        %v1990 = vsub.f32 %v1954, %v1974
        %v1991 = vsub.f32 %v1955, %v1975
        %v1992 = vsub.f32 %v1956, %v1976
        %v1993 = vsub.f32 %v1957, %v1977
        %v1994 = vsub.f32 %v1958, %v1978
        %v1995 = vsub.f32 %v1959, %v1979
        %v1996 = vmul.f32 %v1676, %v1676
        %v1997 = vmul.f32 %v1677, %v1677
        %v1998 = vmul.f32 %v1678, %v1678
        %v1999 = vmul.f32 %v1679, %v1679
        %v2000 = vmul.f32 %v1680, %v1680
        %v2001 = vmul.f32 %v1681, %v1681
        %v2002 = vmul.f32 %v1682, %v1682
        %v2003 = vmul.f32 %v1683, %v1683
        %v2004 = vmul.f32 %v1684, %v1684
        %v2005 = vmul.f32 %v1685, %v1685
        %v2006 = vmul.f32 %v1686, %v1686
        %v2007 = vmul.f32 %v1687, %v1687
        %v2008 = vmul.f32 %v1688, %v1688
        %v2009 = vmul.f32 %v1689, %v1689
        %v2010 = vmul.f32 %v1690, %v1690
        %v2011 = vmul.f32 %v1691, %v1691
        %v2012 = vmul.f32 %v1828, %v1828
        %v2013 = vmul.f32 %v1829, %v1829
        %v2014 = vmul.f32 %v1830, %v1830
        %v2015 = vmul.f32 %v1831, %v1831
        %v2016 = vmul.f32 %v1832, %v1832
        %v2017 = vmul.f32 %v1833, %v1833
        %v2018 = vmul.f32 %v1834, %v1834
        %v2019 = vmul.f32 %v1835, %v1835
        %v2020 = vmul.f32 %v1836, %v1836
        %v2021 = vmul.f32 %v1837, %v1837
        %v2022 = vmul.f32 %v1838, %v1838
        %v2023 = vmul.f32 %v1839, %v1839
        %v2024 = vmul.f32 %v1840, %v1840
        %v2025 = vmul.f32 %v1841, %v1841
        %v2026 = vmul.f32 %v1842, %v1842
        %v2027 = vmul.f32 %v1843, %v1843
        %v2028 = vadd.f32 %v1996, %v2012
        %v2029 = vadd.f32 %v1997, %v2013
        %v2030 = vadd.f32 %v1998, %v2014
        %v2031 = vadd.f32 %v1999, %v2015
        %v2032 = vadd.f32 %v2000, %v2016
        %v2033 = vadd.f32 %v2001, %v2017
        %v2034 = vadd.f32 %v2002, %v2018
        %v2035 = vadd.f32 %v2003, %v2019
        %v2036 = vadd.f32 %v2004, %v2020
        %v2037 = vadd.f32 %v2005, %v2021
        %v2038 = vadd.f32 %v2006, %v2022
        %v2039 = vadd.f32 %v2007, %v2023
        %v2040 = vadd.f32 %v2008, %v2024
        %v2041 = vadd.f32 %v2009, %v2025
        %v2042 = vadd.f32 %v2010, %v2026
        %v2043 = vadd.f32 %v2011, %v2027
        %v2044 = vmul.f32 %v1980, %v1980
        %v2045 = vmul.f32 %v1981, %v1981
        %v2046 = vmul.f32 %v1982, %v1982
        %v2047 = vmul.f32 %v1983, %v1983
        %v2048 = vmul.f32 %v1984, %v1984
        %v2049 = vmul.f32 %v1985, %v1985
        %v2050 = vmul.f32 %v1986, %v1986
        %v2051 = vmul.f32 %v1987, %v1987
        %v2052 = vmul.f32 %v1988, %v1988
        %v2053 = vmul.f32 %v1989, %v1989
        %v2054 = vmul.f32 %v1990, %v1990
        %v2055 = vmul.f32 %v1991, %v1991
        %v2056 = vmul.f32 %v1992, %v1992
        %v2057 = vmul.f32 %v1993, %v1993
        %v2058 = vmul.f32 %v1994, %v1994
        %v2059 = vmul.f32 %v1995, %v1995
        %v2060 = vadd.f32 %v2028, %v2044
        %v2061 = vadd.f32 %v2029, %v2045
        %v2062 = vadd.f32 %v2030, %v2046
        %v2063 = vadd.f32 %v2031, %v2047
        %v2064 = vadd.f32 %v2032, %v2048
        %v2065 = vadd.f32 %v2033, %v2049
        %v2066 = vadd.f32 %v2034, %v2050
        %v2067 = vadd.f32 %v2035, %v2051
        %v2068 = vadd.f32 %v2036, %v2052
        %v2069 = vadd.f32 %v2037, %v2053
        %v2070 = vadd.f32 %v2038, %v2054
        %v2071 = vadd.f32 %v2039, %v2055
        %v2072 = vadd.f32 %v2040, %v2056
        %v2073 = vadd.f32 %v2041, %v2057
        %v2074 = vadd.f32 %v2042, %v2058
        %v2075 = vadd.f32 %v2043, %v2059
        %2076 = vmin.xlane.f32.xlu0 %v2060
        %v2077 = vpop.xlane.xlu0 %2076
        %2078 = vmin.xlane.f32.xlu0 %v2061
        %v2079 = vpop.xlane.xlu0 %2078
        %2080 = vmin.xlane.f32.xlu0 %v2062
        %v2081 = vpop.xlane.xlu0 %2080
        %2082 = vmin.xlane.f32.xlu0 %v2063
        %v2083 = vpop.xlane.xlu0 %2082
        %2084 = vmin.xlane.f32.xlu0 %v2064
        %v2085 = vpop.xlane.xlu0 %2084
        %2086 = vmin.xlane.f32.xlu0 %v2065
        %v2087 = vpop.xlane.xlu0 %2086
        %2088 = vmin.xlane.f32.xlu0 %v2066
        %v2089 = vpop.xlane.xlu0 %2088
        %2090 = vmin.xlane.f32.xlu0 %v2067
        %v2091 = vpop.xlane.xlu0 %2090
        %2092 = vmin.xlane.f32.xlu0 %v2068
        %v2093 = vpop.xlane.xlu0 %2092
        %2094 = vmin.xlane.f32.xlu0 %v2069
        %v2095 = vpop.xlane.xlu0 %2094
        %2096 = vmin.xlane.f32.xlu0 %v2070
        %v2097 = vpop.xlane.xlu0 %2096
        %2098 = vmin.xlane.f32.xlu0 %v2071
        %v2099 = vpop.xlane.xlu0 %2098
        %2100 = vmin.xlane.f32.xlu0 %v2072
        %v2101 = vpop.xlane.xlu0 %2100
        %2102 = vmin.xlane.f32.xlu0 %v2073
        %v2103 = vpop.xlane.xlu0 %2102
        %2104 = vmin.xlane.f32.xlu0 %v2074
        %v2105 = vpop.xlane.xlu0 %2104
        %2106 = vmin.xlane.f32.xlu0 %v2075
        %v2107 = vpop.xlane.xlu0 %2106
        %v2108 = vlaneseq
        %v2109 = vand.u32 %v2108, 127
        %vm2110 = vcmp.le.f32.partialorder %v2060, %v2077
        %vm2111 = vcmp.le.f32.partialorder %v2061, %v2079
        %vm2112 = vcmp.le.f32.partialorder %v2062, %v2081
        %vm2113 = vcmp.le.f32.partialorder %v2063, %v2083
        %vm2114 = vcmp.le.f32.partialorder %v2064, %v2085
        %vm2115 = vcmp.le.f32.partialorder %v2065, %v2087
        %vm2116 = vcmp.le.f32.partialorder %v2066, %v2089
        %vm2117 = vcmp.le.f32.partialorder %v2067, %v2091
        %vm2118 = vcmp.le.f32.partialorder %v2068, %v2093
        %vm2119 = vcmp.le.f32.partialorder %v2069, %v2095
        %vm2120 = vcmp.le.f32.partialorder %v2070, %v2097
        %vm2121 = vcmp.le.f32.partialorder %v2071, %v2099
        %vm2122 = vcmp.le.f32.partialorder %v2072, %v2101
        %vm2123 = vcmp.le.f32.partialorder %v2073, %v2103
        %vm2124 = vcmp.le.f32.partialorder %v2074, %v2105
        %vm2125 = vcmp.le.f32.partialorder %v2075, %v2107
        %v2126 = vsel %vm2110, %v2109, 128
        %v2127 = vsel %vm2111, %v2109, 128
        %v2128 = vsel %vm2112, %v2109, 128
        %v2129 = vsel %vm2113, %v2109, 128
        %v2130 = vsel %vm2114, %v2109, 128
        %v2131 = vsel %vm2115, %v2109, 128
        %v2132 = vsel %vm2116, %v2109, 128
        %v2133 = vsel %vm2117, %v2109, 128
        %v2134 = vsel %vm2118, %v2109, 128
        %v2135 = vsel %vm2119, %v2109, 128
        %v2136 = vsel %vm2120, %v2109, 128
        %v2137 = vsel %vm2121, %v2109, 128
        %v2138 = vsel %vm2122, %v2109, 128
        %v2139 = vsel %vm2123, %v2109, 128
        %v2140 = vsel %vm2124, %v2109, 128
        %v2141 = vsel %vm2125, %v2109, 128
        %v2142 = vand.u32 %v2126, 65535
        %v2143 = vshra.s32 %v2126, 16
        %v2144 = vcvt.s32.f32 %v2142
        %v2145 = vcvt.s32.f32 %v2143
        %2146 = vmin.xlane.f32.xlu0 %v2145
        %v2147 = vpop.xlane.xlu0 %2146
        %vm2148 = vcmp.eq.f32.partialorder %v2145, %v2147
        %v2149 = vsel %vm2148, %v2144, inf
        %2150 = vmin.xlane.f32.xlu0 %v2149
        %v2151 = vpop.xlane.xlu0 %2150
        %v2152 = vcvt.f32.s32 %v2151
        %v2153 = vcvt.f32.s32 %v2147
        %v2154 = vshll.u32 %v2153, 16
        %v2155 = vadd.s32 %v2154, %v2152
        %v2156 = vand.u32 %v2127, 65535
        %v2157 = vshra.s32 %v2127, 16
        %v2158 = vcvt.s32.f32 %v2156
        %v2159 = vcvt.s32.f32 %v2157
        %2160 = vmin.xlane.f32.xlu0 %v2159
        %v2161 = vpop.xlane.xlu0 %2160
        %vm2162 = vcmp.eq.f32.partialorder %v2159, %v2161
        %v2163 = vsel %vm2162, %v2158, inf
        %2164 = vmin.xlane.f32.xlu0 %v2163
        %v2165 = vpop.xlane.xlu0 %2164
        %v2166 = vcvt.f32.s32 %v2165
        %v2167 = vcvt.f32.s32 %v2161
        %v2168 = vshll.u32 %v2167, 16
        %v2169 = vadd.s32 %v2168, %v2166
        %v2170 = vand.u32 %v2128, 65535
        %v2171 = vshra.s32 %v2128, 16
        %v2172 = vcvt.s32.f32 %v2170
        %v2173 = vcvt.s32.f32 %v2171
        %2174 = vmin.xlane.f32.xlu0 %v2173
        %v2175 = vpop.xlane.xlu0 %2174
        %vm2176 = vcmp.eq.f32.partialorder %v2173, %v2175
        %v2177 = vsel %vm2176, %v2172, inf
        %2178 = vmin.xlane.f32.xlu0 %v2177
        %v2179 = vpop.xlane.xlu0 %2178
        %v2180 = vcvt.f32.s32 %v2179
        %v2181 = vcvt.f32.s32 %v2175
        %v2182 = vshll.u32 %v2181, 16
        %v2183 = vadd.s32 %v2182, %v2180
        %v2184 = vand.u32 %v2129, 65535
        %v2185 = vshra.s32 %v2129, 16
        %v2186 = vcvt.s32.f32 %v2184
        %v2187 = vcvt.s32.f32 %v2185
        %2188 = vmin.xlane.f32.xlu0 %v2187
        %v2189 = vpop.xlane.xlu0 %2188
        %vm2190 = vcmp.eq.f32.partialorder %v2187, %v2189
        %v2191 = vsel %vm2190, %v2186, inf
        %2192 = vmin.xlane.f32.xlu0 %v2191
        %v2193 = vpop.xlane.xlu0 %2192
        %v2194 = vcvt.f32.s32 %v2193
        %v2195 = vcvt.f32.s32 %v2189
        %v2196 = vshll.u32 %v2195, 16
        %v2197 = vadd.s32 %v2196, %v2194
        %v2198 = vand.u32 %v2130, 65535
        %v2199 = vshra.s32 %v2130, 16
        %v2200 = vcvt.s32.f32 %v2198
        %v2201 = vcvt.s32.f32 %v2199
        %2202 = vmin.xlane.f32.xlu0 %v2201
        %v2203 = vpop.xlane.xlu0 %2202
        %vm2204 = vcmp.eq.f32.partialorder %v2201, %v2203
        %v2205 = vsel %vm2204, %v2200, inf
        %2206 = vmin.xlane.f32.xlu0 %v2205
        %v2207 = vpop.xlane.xlu0 %2206
        %v2208 = vcvt.f32.s32 %v2207
        %v2209 = vcvt.f32.s32 %v2203
        %v2210 = vshll.u32 %v2209, 16
        %v2211 = vadd.s32 %v2210, %v2208
        %v2212 = vand.u32 %v2131, 65535
        %v2213 = vshra.s32 %v2131, 16
        %v2214 = vcvt.s32.f32 %v2212
        %v2215 = vcvt.s32.f32 %v2213
        %2216 = vmin.xlane.f32.xlu0 %v2215
        %v2217 = vpop.xlane.xlu0 %2216
        %vm2218 = vcmp.eq.f32.partialorder %v2215, %v2217
        %v2219 = vsel %vm2218, %v2214, inf
        %2220 = vmin.xlane.f32.xlu0 %v2219
        %v2221 = vpop.xlane.xlu0 %2220
        %v2222 = vcvt.f32.s32 %v2221
        %v2223 = vcvt.f32.s32 %v2217
        %v2224 = vshll.u32 %v2223, 16
        %v2225 = vadd.s32 %v2224, %v2222
        %v2226 = vand.u32 %v2132, 65535
        %v2227 = vshra.s32 %v2132, 16
        %v2228 = vcvt.s32.f32 %v2226
        %v2229 = vcvt.s32.f32 %v2227
        %2230 = vmin.xlane.f32.xlu0 %v2229
        %v2231 = vpop.xlane.xlu0 %2230
        %vm2232 = vcmp.eq.f32.partialorder %v2229, %v2231
        %v2233 = vsel %vm2232, %v2228, inf
        %2234 = vmin.xlane.f32.xlu0 %v2233
        %v2235 = vpop.xlane.xlu0 %2234
        %v2236 = vcvt.f32.s32 %v2235
        %v2237 = vcvt.f32.s32 %v2231
        %v2238 = vshll.u32 %v2237, 16
        %v2239 = vadd.s32 %v2238, %v2236
        %v2240 = vand.u32 %v2133, 65535
        %v2241 = vshra.s32 %v2133, 16
        %v2242 = vcvt.s32.f32 %v2240
        %v2243 = vcvt.s32.f32 %v2241
        %2244 = vmin.xlane.f32.xlu0 %v2243
        %v2245 = vpop.xlane.xlu0 %2244
        %vm2246 = vcmp.eq.f32.partialorder %v2243, %v2245
        %v2247 = vsel %vm2246, %v2242, inf
        %2248 = vmin.xlane.f32.xlu0 %v2247
        %v2249 = vpop.xlane.xlu0 %2248
        %v2250 = vcvt.f32.s32 %v2249
        %v2251 = vcvt.f32.s32 %v2245
        %v2252 = vshll.u32 %v2251, 16
        %v2253 = vadd.s32 %v2252, %v2250
        %v2254 = vand.u32 %v2134, 65535
        %v2255 = vshra.s32 %v2134, 16
        %v2256 = vcvt.s32.f32 %v2254
        %v2257 = vcvt.s32.f32 %v2255
        %2258 = vmin.xlane.f32.xlu0 %v2257
        %v2259 = vpop.xlane.xlu0 %2258
        %vm2260 = vcmp.eq.f32.partialorder %v2257, %v2259
        %v2261 = vsel %vm2260, %v2256, inf
        %2262 = vmin.xlane.f32.xlu0 %v2261
        %v2263 = vpop.xlane.xlu0 %2262
        %v2264 = vcvt.f32.s32 %v2263
        %v2265 = vcvt.f32.s32 %v2259
        %v2266 = vshll.u32 %v2265, 16
        %v2267 = vadd.s32 %v2266, %v2264
        %v2268 = vand.u32 %v2135, 65535
        %v2269 = vshra.s32 %v2135, 16
        %v2270 = vcvt.s32.f32 %v2268
        %v2271 = vcvt.s32.f32 %v2269
        %2272 = vmin.xlane.f32.xlu0 %v2271
        %v2273 = vpop.xlane.xlu0 %2272
        %vm2274 = vcmp.eq.f32.partialorder %v2271, %v2273
        %v2275 = vsel %vm2274, %v2270, inf
        %2276 = vmin.xlane.f32.xlu0 %v2275
        %v2277 = vpop.xlane.xlu0 %2276
        %v2278 = vcvt.f32.s32 %v2277
        %v2279 = vcvt.f32.s32 %v2273
        %v2280 = vshll.u32 %v2279, 16
        %v2281 = vadd.s32 %v2280, %v2278
        %v2282 = vand.u32 %v2136, 65535
        %v2283 = vshra.s32 %v2136, 16
        %v2284 = vcvt.s32.f32 %v2282
        %v2285 = vcvt.s32.f32 %v2283
        %2286 = vmin.xlane.f32.xlu0 %v2285
        %v2287 = vpop.xlane.xlu0 %2286
        %vm2288 = vcmp.eq.f32.partialorder %v2285, %v2287
        %v2289 = vsel %vm2288, %v2284, inf
        %2290 = vmin.xlane.f32.xlu0 %v2289
        %v2291 = vpop.xlane.xlu0 %2290
        %v2292 = vcvt.f32.s32 %v2291
        %v2293 = vcvt.f32.s32 %v2287
        %v2294 = vshll.u32 %v2293, 16
        %v2295 = vadd.s32 %v2294, %v2292
        %v2296 = vand.u32 %v2137, 65535
        %v2297 = vshra.s32 %v2137, 16
        %v2298 = vcvt.s32.f32 %v2296
        %v2299 = vcvt.s32.f32 %v2297
        %2300 = vmin.xlane.f32.xlu0 %v2299
        %v2301 = vpop.xlane.xlu0 %2300
        %vm2302 = vcmp.eq.f32.partialorder %v2299, %v2301
        %v2303 = vsel %vm2302, %v2298, inf
        %2304 = vmin.xlane.f32.xlu0 %v2303
        %v2305 = vpop.xlane.xlu0 %2304
        %v2306 = vcvt.f32.s32 %v2305
        %v2307 = vcvt.f32.s32 %v2301
        %v2308 = vshll.u32 %v2307, 16
        %v2309 = vadd.s32 %v2308, %v2306
        %v2310 = vand.u32 %v2138, 65535
        %v2311 = vshra.s32 %v2138, 16
        %v2312 = vcvt.s32.f32 %v2310
        %v2313 = vcvt.s32.f32 %v2311
        %2314 = vmin.xlane.f32.xlu0 %v2313
        %v2315 = vpop.xlane.xlu0 %2314
        %vm2316 = vcmp.eq.f32.partialorder %v2313, %v2315
        %v2317 = vsel %vm2316, %v2312, inf
        %2318 = vmin.xlane.f32.xlu0 %v2317
        %v2319 = vpop.xlane.xlu0 %2318
        %v2320 = vcvt.f32.s32 %v2319
        %v2321 = vcvt.f32.s32 %v2315
        %v2322 = vshll.u32 %v2321, 16
        %v2323 = vadd.s32 %v2322, %v2320
        %v2324 = vand.u32 %v2139, 65535
        %v2325 = vshra.s32 %v2139, 16
        %v2326 = vcvt.s32.f32 %v2324
        %v2327 = vcvt.s32.f32 %v2325
        %2328 = vmin.xlane.f32.xlu0 %v2327
        %v2329 = vpop.xlane.xlu0 %2328
        %vm2330 = vcmp.eq.f32.partialorder %v2327, %v2329
        %v2331 = vsel %vm2330, %v2326, inf
        %2332 = vmin.xlane.f32.xlu0 %v2331
        %v2333 = vpop.xlane.xlu0 %2332
        %v2334 = vcvt.f32.s32 %v2333
        %v2335 = vcvt.f32.s32 %v2329
        %v2336 = vshll.u32 %v2335, 16
        %v2337 = vadd.s32 %v2336, %v2334
        %v2338 = vand.u32 %v2140, 65535
        %v2339 = vshra.s32 %v2140, 16
        %v2340 = vcvt.s32.f32 %v2338
        %v2341 = vcvt.s32.f32 %v2339
        %2342 = vmin.xlane.f32.xlu0 %v2341
        %v2343 = vpop.xlane.xlu0 %2342
        %vm2344 = vcmp.eq.f32.partialorder %v2341, %v2343
        %v2345 = vsel %vm2344, %v2340, inf
        %2346 = vmin.xlane.f32.xlu0 %v2345
        %v2347 = vpop.xlane.xlu0 %2346
        %v2348 = vcvt.f32.s32 %v2347
        %v2349 = vcvt.f32.s32 %v2343
        %v2350 = vshll.u32 %v2349, 16
        %v2351 = vadd.s32 %v2350, %v2348
        %v2352 = vand.u32 %v2141, 65535
        %v2353 = vshra.s32 %v2141, 16
        %v2354 = vcvt.s32.f32 %v2352
        %v2355 = vcvt.s32.f32 %v2353
        %2356 = vmin.xlane.f32.xlu0 %v2355
        %v2357 = vpop.xlane.xlu0 %2356
        %vm2358 = vcmp.eq.f32.partialorder %v2355, %v2357
        %v2359 = vsel %vm2358, %v2354, inf
        %2360 = vmin.xlane.f32.xlu0 %v2359
        %v2361 = vpop.xlane.xlu0 %2360
        %v2362 = vcvt.f32.s32 %v2361
        %v2363 = vcvt.f32.s32 %v2357
        %v2364 = vshll.u32 %v2363, 16
        %v2365 = vadd.s32 %v2364, %v2362
        %v2366 = vstv %s272
        %v2367 = vadd.s32 %v2155, %v2366
        %v2368 = vadd.s32 %v2169, %v2366
        %v2369 = vadd.s32 %v2183, %v2366
        %v2370 = vadd.s32 %v2197, %v2366
        %v2371 = vadd.s32 %v2211, %v2366
        %v2372 = vadd.s32 %v2225, %v2366
        %v2373 = vadd.s32 %v2239, %v2366
        %v2374 = vadd.s32 %v2253, %v2366
        %v2375 = vadd.s32 %v2267, %v2366
        %v2376 = vadd.s32 %v2281, %v2366
        %v2377 = vadd.s32 %v2295, %v2366
        %v2378 = vadd.s32 %v2309, %v2366
        %v2379 = vadd.s32 %v2323, %v2366
        %v2380 = vadd.s32 %v2337, %v2366
        %v2381 = vadd.s32 %v2351, %v2366
        %v2382 = vadd.s32 %v2365, %v2366
        %vm2383 = vcmp.lt.f32.partialorder %v2077, %v240
        %vm2384 = vcmp.lt.f32.partialorder %v2079, %v241
        %vm2385 = vcmp.lt.f32.partialorder %v2081, %v242
        %vm2386 = vcmp.lt.f32.partialorder %v2083, %v243
        %vm2387 = vcmp.lt.f32.partialorder %v2085, %v244
        %vm2388 = vcmp.lt.f32.partialorder %v2087, %v245
        %vm2389 = vcmp.lt.f32.partialorder %v2089, %v246
        %vm2390 = vcmp.lt.f32.partialorder %v2091, %v247
        %vm2391 = vcmp.lt.f32.partialorder %v2093, %v248
        %vm2392 = vcmp.lt.f32.partialorder %v2095, %v249
        %vm2393 = vcmp.lt.f32.partialorder %v2097, %v250
        %vm2394 = vcmp.lt.f32.partialorder %v2099, %v251
        %vm2395 = vcmp.lt.f32.partialorder %v2101, %v252
        %vm2396 = vcmp.lt.f32.partialorder %v2103, %v253
        %vm2397 = vcmp.lt.f32.partialorder %v2105, %v254
        %vm2398 = vcmp.lt.f32.partialorder %v2107, %v255
        %v2399 = vsel %vm2383, %v2077, %v240
        %v2400 = vsel %vm2384, %v2079, %v241
        %v2401 = vsel %vm2385, %v2081, %v242
        %v2402 = vsel %vm2386, %v2083, %v243
        %v2403 = vsel %vm2387, %v2085, %v244
        %v2404 = vsel %vm2388, %v2087, %v245
        %v2405 = vsel %vm2389, %v2089, %v246
        %v2406 = vsel %vm2390, %v2091, %v247
        %v2407 = vsel %vm2391, %v2093, %v248
        %v2408 = vsel %vm2392, %v2095, %v249
        %v2409 = vsel %vm2393, %v2097, %v250
        %v2410 = vsel %vm2394, %v2099, %v251
        %v2411 = vsel %vm2395, %v2101, %v252
        %v2412 = vsel %vm2396, %v2103, %v253
        %v2413 = vsel %vm2397, %v2105, %v254
        %v2414 = vsel %vm2398, %v2107, %v255
        %v2415 = vsel %vm2383, %v2367, %v256
        %v2416 = vsel %vm2384, %v2368, %v257
        %v2417 = vsel %vm2385, %v2369, %v258
        %v2418 = vsel %vm2386, %v2370, %v259
        %v2419 = vsel %vm2387, %v2371, %v260
        %v2420 = vsel %vm2388, %v2372, %v261
        %v2421 = vsel %vm2389, %v2373, %v262
        %v2422 = vsel %vm2390, %v2374, %v263
        %v2423 = vsel %vm2391, %v2375, %v264
        %v2424 = vsel %vm2392, %v2376, %v265
        %v2425 = vsel %vm2393, %v2377, %v266
        %v2426 = vsel %vm2394, %v2378, %v267
        %v2427 = vsel %vm2395, %v2379, %v268
        %v2428 = vsel %vm2396, %v2380, %v269
        %v2429 = vsel %vm2397, %v2381, %v270
        %v2430 = vsel %vm2398, %v2382, %v271
      $region37: #{ddm_m2p_forward.2} parent=27 // loop_footer
        %s239 = sadd.s32 1, %s235
      $region38: #{ddm_m2p_forward.2} parent=27 // loop_footer_branch
        %234 = sbr.rel target = $region34
      $region39: #{ddm_m2p_forward.2} parent=27 // loop_exit
        _
      %v2431 = vld [vmem:[#allocation2] sm:$0xff]
      %v2432 = vld [vmem:[#allocation2 + $0x8] sm:$0xff]
      %v2433 = vld [vmem:[#allocation2 + $0x10] sm:$0xff]
      %v2434 = vld [vmem:[#allocation2 + $0x18] sm:$0xff]
      %v2435 = vld [vmem:[#allocation2 + $0x20] sm:$0xff]
      %v2436 = vld [vmem:[#allocation2 + $0x28] sm:$0xff]
      %v2437 = vld [vmem:[#allocation2 + $0x30] sm:$0xff]
      %v2438 = vld [vmem:[#allocation2 + $0x38] sm:$0xff]
      %v2439 = vld [vmem:[#allocation2 + $0x40] sm:$0xff]
      %v2440 = vld [vmem:[#allocation2 + $0x48] sm:$0xff]
      %v2441 = vld [vmem:[#allocation2 + $0x50] sm:$0xff]
      %v2442 = vld [vmem:[#allocation2 + $0x58] sm:$0xff]
      %v2443 = vld [vmem:[#allocation2 + $0x60] sm:$0xff]
      %v2444 = vld [vmem:[#allocation2 + $0x68] sm:$0xff]
      %v2445 = vld [vmem:[#allocation2 + $0x70] sm:$0xff]
      %v2446 = vld [vmem:[#allocation2 + $0x78] sm:$0xff]
      %vm2447 = vcmp.lt.f32.partialorder %v240, %v2431
      %vm2448 = vcmp.lt.f32.partialorder %v241, %v2432
      %vm2449 = vcmp.lt.f32.partialorder %v242, %v2433
      %vm2450 = vcmp.lt.f32.partialorder %v243, %v2434
      %vm2451 = vcmp.lt.f32.partialorder %v244, %v2435
      %vm2452 = vcmp.lt.f32.partialorder %v245, %v2436
      %vm2453 = vcmp.lt.f32.partialorder %v246, %v2437
      %vm2454 = vcmp.lt.f32.partialorder %v247, %v2438
      %vm2455 = vcmp.lt.f32.partialorder %v248, %v2439
      %vm2456 = vcmp.lt.f32.partialorder %v249, %v2440
      %vm2457 = vcmp.lt.f32.partialorder %v250, %v2441
      %vm2458 = vcmp.lt.f32.partialorder %v251, %v2442
      %vm2459 = vcmp.lt.f32.partialorder %v252, %v2443
      %vm2460 = vcmp.lt.f32.partialorder %v253, %v2444
      %vm2461 = vcmp.lt.f32.partialorder %v254, %v2445
      %vm2462 = vcmp.lt.f32.partialorder %v255, %v2446
      %v2463 = vsel %vm2447, %v240, %v2431
      %v2464 = vsel %vm2448, %v241, %v2432
      %v2465 = vsel %vm2449, %v242, %v2433
      %v2466 = vsel %vm2450, %v243, %v2434
      %v2467 = vsel %vm2451, %v244, %v2435
      %v2468 = vsel %vm2452, %v245, %v2436
      %v2469 = vsel %vm2453, %v246, %v2437
      %v2470 = vsel %vm2454, %v247, %v2438
      %v2471 = vsel %vm2455, %v248, %v2439
      %v2472 = vsel %vm2456, %v249, %v2440
      %v2473 = vsel %vm2457, %v250, %v2441
      %v2474 = vsel %vm2458, %v251, %v2442
      %v2475 = vsel %vm2459, %v252, %v2443
      %v2476 = vsel %vm2460, %v253, %v2444
      %v2477 = vsel %vm2461, %v254, %v2445
      %v2478 = vsel %vm2462, %v255, %v2446
      %vm2479 = vcmask 7168
      %2480 = vst.msk [vmem:[#allocation2] sm:$0xff] %vm2479, %v2463
      %2481 = vst.msk [vmem:[#allocation2 + $0x8] sm:$0xff] %vm2479, %v2464
      %2482 = vst.msk [vmem:[#allocation2 + $0x10] sm:$0xff] %vm2479, %v2465
      %2483 = vst.msk [vmem:[#allocation2 + $0x18] sm:$0xff] %vm2479, %v2466
      %2484 = vst.msk [vmem:[#allocation2 + $0x20] sm:$0xff] %vm2479, %v2467
      %2485 = vst.msk [vmem:[#allocation2 + $0x28] sm:$0xff] %vm2479, %v2468
      %2486 = vst.msk [vmem:[#allocation2 + $0x30] sm:$0xff] %vm2479, %v2469
      %2487 = vst.msk [vmem:[#allocation2 + $0x38] sm:$0xff] %vm2479, %v2470
      %2488 = vst.msk [vmem:[#allocation2 + $0x40] sm:$0xff] %vm2479, %v2471
      %2489 = vst.msk [vmem:[#allocation2 + $0x48] sm:$0xff] %vm2479, %v2472
      %2490 = vst.msk [vmem:[#allocation2 + $0x50] sm:$0xff] %vm2479, %v2473
      %2491 = vst.msk [vmem:[#allocation2 + $0x58] sm:$0xff] %vm2479, %v2474
      %2492 = vst.msk [vmem:[#allocation2 + $0x60] sm:$0xff] %vm2479, %v2475
      %2493 = vst.msk [vmem:[#allocation2 + $0x68] sm:$0xff] %vm2479, %v2476
      %2494 = vst.msk [vmem:[#allocation2 + $0x70] sm:$0xff] %vm2479, %v2477
      %2495 = vst.msk [vmem:[#allocation2 + $0x78] sm:$0xff] %vm2479, %v2478
      %s2496 = smul.u32 %s18, 256
      %v2497 = vstv %s2496
      %v2498 = vadd.s32 %v2497, %v256
      %v2499 = vadd.s32 %v2497, %v257
      %v2500 = vadd.s32 %v2497, %v258
      %v2501 = vadd.s32 %v2497, %v259
      %v2502 = vadd.s32 %v2497, %v260
      %v2503 = vadd.s32 %v2497, %v261
      %v2504 = vadd.s32 %v2497, %v262
      %v2505 = vadd.s32 %v2497, %v263
      %v2506 = vadd.s32 %v2497, %v264
      %v2507 = vadd.s32 %v2497, %v265
      %v2508 = vadd.s32 %v2497, %v266
      %v2509 = vadd.s32 %v2497, %v267
      %v2510 = vadd.s32 %v2497, %v268
      %v2511 = vadd.s32 %v2497, %v269
      %v2512 = vadd.s32 %v2497, %v270
      %v2513 = vadd.s32 %v2497, %v271
      %v2514 = vld [vmem:[%s179] sm:$0xff]
      %v2515 = vld [vmem:[%s179 + $0x8] sm:$0xff]
      %v2516 = vld [vmem:[%s179 + $0x10] sm:$0xff]
      %v2517 = vld [vmem:[%s179 + $0x18] sm:$0xff]
      %v2518 = vld [vmem:[%s179 + $0x20] sm:$0xff]
      %v2519 = vld [vmem:[%s179 + $0x28] sm:$0xff]
      %v2520 = vld [vmem:[%s179 + $0x30] sm:$0xff]
      %v2521 = vld [vmem:[%s179 + $0x38] sm:$0xff]
      %v2522 = vld [vmem:[%s179 + $0x40] sm:$0xff]
      %v2523 = vld [vmem:[%s179 + $0x48] sm:$0xff]
      %v2524 = vld [vmem:[%s179 + $0x50] sm:$0xff]
      %v2525 = vld [vmem:[%s179 + $0x58] sm:$0xff]
      %v2526 = vld [vmem:[%s179 + $0x60] sm:$0xff]
      %v2527 = vld [vmem:[%s179 + $0x68] sm:$0xff]
      %v2528 = vld [vmem:[%s179 + $0x70] sm:$0xff]
      %v2529 = vld [vmem:[%s179 + $0x78] sm:$0xff]
      %v2530 = vsel %vm2447, %v2498, %v2514
      %v2531 = vsel %vm2448, %v2499, %v2515
      %v2532 = vsel %vm2449, %v2500, %v2516
      %v2533 = vsel %vm2450, %v2501, %v2517
      %v2534 = vsel %vm2451, %v2502, %v2518
      %v2535 = vsel %vm2452, %v2503, %v2519
      %v2536 = vsel %vm2453, %v2504, %v2520
      %v2537 = vsel %vm2454, %v2505, %v2521
      %v2538 = vsel %vm2455, %v2506, %v2522
      %v2539 = vsel %vm2456, %v2507, %v2523
      %v2540 = vsel %vm2457, %v2508, %v2524
      %v2541 = vsel %vm2458, %v2509, %v2525
      %v2542 = vsel %vm2459, %v2510, %v2526
      %v2543 = vsel %vm2460, %v2511, %v2527
      %v2544 = vsel %vm2461, %v2512, %v2528
      %v2545 = vsel %vm2462, %v2513, %v2529
      %2546 = vst.msk [vmem:[%s179] sm:$0xff] %vm2479, %v2530
      %2547 = vst.msk [vmem:[%s179 + $0x8] sm:$0xff] %vm2479, %v2531
      %2548 = vst.msk [vmem:[%s179 + $0x10] sm:$0xff] %vm2479, %v2532
      %2549 = vst.msk [vmem:[%s179 + $0x18] sm:$0xff] %vm2479, %v2533
      %2550 = vst.msk [vmem:[%s179 + $0x20] sm:$0xff] %vm2479, %v2534
      %2551 = vst.msk [vmem:[%s179 + $0x28] sm:$0xff] %vm2479, %v2535
      %2552 = vst.msk [vmem:[%s179 + $0x30] sm:$0xff] %vm2479, %v2536
      %2553 = vst.msk [vmem:[%s179 + $0x38] sm:$0xff] %vm2479, %v2537
      %2554 = vst.msk [vmem:[%s179 + $0x40] sm:$0xff] %vm2479, %v2538
      %2555 = vst.msk [vmem:[%s179 + $0x48] sm:$0xff] %vm2479, %v2539
      %2556 = vst.msk [vmem:[%s179 + $0x50] sm:$0xff] %vm2479, %v2540
      %2557 = vst.msk [vmem:[%s179 + $0x58] sm:$0xff] %vm2479, %v2541
      %2558 = vst.msk [vmem:[%s179 + $0x60] sm:$0xff] %vm2479, %v2542
      %2559 = vst.msk [vmem:[%s179 + $0x68] sm:$0xff] %vm2479, %v2543
      %2560 = vst.msk [vmem:[%s179 + $0x70] sm:$0xff] %vm2479, %v2544
      %2561 = vst.msk [vmem:[%s179 + $0x78] sm:$0xff] %vm2479, %v2545
      %s2562 = smul.u32 16, %s17
      %p2563 = scmp.lt.s32.totalorder %s2562, 63
      %s2564 = scalar_select %p2563, %s2562, 63
      %s2565 = smul.addr %s2564, 8
      %s2566 = scalar_lea.vmem %s2, %s2565
      // Predicated region
      $region40: #{ddm_m2p_forward.2} parent=27 // pred_check
        %p2567 = pneg %p95
      $region41: #{ddm_m2p_forward.2} parent=27 // pred_check_branch
        %2569 = sbr.rel (%p2567) target = $region43
      $region42: #{ddm_m2p_forward.2} parent=27 // pred_region
        %s2570 = smul.u32 16, %s17
      $region43: #{ddm_m2p_forward.2} parent=27 // pred_fallthru
        _
    $region28: #{ddm_m2p_forward.2} parent=5 // pred_fallthru
      _
    %p2571 = scmp.le.s32.totalorder 2, %s8
    // Predicated region
    $region44: #{ddm_m2p_forward.2} parent=5 // pred_check
      %p2572 = pneg %p2571
    $region45: #{ddm_m2p_forward.2} parent=5 // pred_check_branch
      %2574 = sbr.rel (%p2572) target = $region47
    $region46: #{ddm_m2p_forward.2} parent=5 // pred_region
      %s2575 = ssub.s32 %s8, 2
      // Predicated region
      $region48: #{ddm_m2p_forward.2} parent=46 // pred_check
        %p2576 = pneg %p101
      $region49: #{ddm_m2p_forward.2} parent=46 // pred_check_branch
        %2578 = sbr.rel (%p2576) target = $region51
      $region50: #{ddm_m2p_forward.2} parent=46 // pred_region
        %s2579 = smul.u32 16, %s19
        %p2580 = scmp.lt.s32.totalorder %s2579, 63
        %s2581 = scalar_select %p2580, %s2579, 63
        %s2582 = smul.addr %s2581, 8
        %s2583 = scalar_lea.vmem %s2, %s2582
      $region51: #{ddm_m2p_forward.2} parent=46 // pred_fallthru
        _
    $region47: #{ddm_m2p_forward.2} parent=5 // pred_fallthru
      _
  $region6: #{ddm_m2p_forward.2} parent=0 // loop_footer
    %s12 = sadd.s32 1, %s8
  $region7: #{ddm_m2p_forward.2} parent=0 // loop_footer_branch
    %7 = sbr.rel target = $region3
  $region8: #{ddm_m2p_forward.2} parent=0 // loop_exit
    _

// kernel: ddm_m2p_forward.3
$region0: #{ddm_m2p_forward.3}
  #allocation0 [shape = 'u32[]', space=smem, size = 0x4, offset = 0x4, fixed_abs, tag = 'smem constant byte address 0x4 - core index']
  #allocation1 [shape = 'u32[144,128]{1,0:T(1,128)}', space=vmem, size = 0x12000, scoped, tag = 'internal scratch']
  %s0 = inlined_call_operand.vmem [shape: f32[512,3], index: 0, kind: input, shape index: {}]
  %s1 = inlined_call_operand.vmem [shape: f32[3,128], index: 1, kind: input, shape index: {}]
  %s2 = inlined_call_operand.vmem [shape: f32[512,5], index: 2, kind: output, shape index: {0}]
  %s3 = inlined_call_operand.vmem [shape: s32[512,5], index: 3, kind: output, shape index: {1}]
  %4 = xla_tuple %s2, %s3
  %s5 = sld [smem:[#allocation0]]
  $region49: #{ddm_m2p_forward.3} parent=0
    _
  %s7 = ssub.s32 1, %s5
  %s8 = scalar_select 0, %s7, %s5
  loop: start=0, step=1, limit=6
  $region2: #{ddm_m2p_forward.3} parent=0 // loop_pre_header
    _
  $region3: #{ddm_m2p_forward.3} parent=0 // loop_header
    %s10 = sphi 0, %s14
    %p11 = scmp.ge.s32.totalorder %s10, 6
    %s20 = sphi 0, %s22
    %s23 = sphi 0, %s20
    %s24 = sphi 0, %s23
    %s40 = sphi 0, %s24
    %s44 = sphi 0, %s44
    %s46 = sphi 0, %s44
    %s47 = sphi 0, %s46
    %s61 = sphi 0, %s47
    %s67 = sphi 0, %s69
    %s70 = sphi 0, %s67
    %s71 = sphi 0, %s70
    %s87 = sphi 0, %s71
    %s93 = sphi 0, %s95
    %s96 = sphi 0, %s93
    %s97 = sphi 0, %s96
    %s113 = sphi 0, %s97
  $region4: #{ddm_m2p_forward.3} parent=0 // loop_header_branch
    %13 = sbr.rel (%p11) target = $region8
  $region5: #{ddm_m2p_forward.3} parent=0 // loop_body
    %s15 = ssub.s32 %s10, 1
    %s16 = ssub.s32 %s10, 2
    %s17 = sadd.s32 %s10, 1
    %s18 = ssub.s32 %s10, %s17
    %p19 = scmp.eq.s32.totalorder %s18, 0
    %s21 = sadd.s32 %s20, 1
    %s22 = scalar_select %p19, %s20, %s21
    %p25 = pneg %p19
    %p26 = scmp.eq.s32.totalorder %s10, 3
    %p27 = por %p25, %p26
    %p28 = scmp.ne.s32.totalorder %s20, %s23
    %p29 = scmp.eq.s32.totalorder %s10, 0
    %p30 = por %p28, %p29
    %p31 = scmp.ne.s32.totalorder %s20, %s23
    %p32 = scmp.eq.s32.totalorder %s15, 3
    %p33 = por %p31, %p32
    %p34 = scmp.ne.s32.totalorder %s23, %s24
    %p35 = scmp.eq.s32.totalorder %s15, 0
    %p36 = por %p34, %p35
    %p37 = scmp.ne.s32.totalorder %s23, %s24
    %p38 = scmp.eq.s32.totalorder %s16, 3
    %p39 = por %p37, %p38
    %p41 = scmp.ne.s32.totalorder %s24, %s40
    %p42 = scmp.eq.s32.totalorder %s16, 0
    %p43 = por %p41, %p42
    %s45 = sadd.s32 %s44, 1
    %p48 = scmp.eq.s32.totalorder %s10, 3
    %p49 = scmp.ne.s32.totalorder %s44, %s46
    %p50 = scmp.eq.s32.totalorder %s10, 0
    %p51 = por %p49, %p50
    %p52 = scmp.ne.s32.totalorder %s44, %s46
    %p53 = scmp.eq.s32.totalorder %s15, 3
    %p54 = por %p52, %p53
    %p55 = scmp.ne.s32.totalorder %s46, %s47
    %p56 = scmp.eq.s32.totalorder %s15, 0
    %p57 = por %p55, %p56
    %p58 = scmp.ne.s32.totalorder %s46, %s47
    %p59 = scmp.eq.s32.totalorder %s16, 3
    %p60 = por %p58, %p59
    %p62 = scmp.ne.s32.totalorder %s47, %s61
    %p63 = scmp.eq.s32.totalorder %s16, 0
    %p64 = por %p62, %p63
    %s65 = ssub.s32 %s10, %s17
    %p66 = scmp.eq.s32.totalorder %s65, 0
    %s68 = sadd.s32 %s67, 1
    %s69 = scalar_select %p66, %s67, %s68
    %p72 = pneg %p66
    %p73 = scmp.eq.s32.totalorder %s10, 3
    %p74 = por %p72, %p73
    %p75 = scmp.ne.s32.totalorder %s67, %s70
    %p76 = scmp.eq.s32.totalorder %s10, 0
    %p77 = por %p75, %p76
    %p78 = scmp.ne.s32.totalorder %s67, %s70
    %p79 = scmp.eq.s32.totalorder %s15, 3
    %p80 = por %p78, %p79
    %p81 = scmp.ne.s32.totalorder %s70, %s71
    %p82 = scmp.eq.s32.totalorder %s15, 0
    %p83 = por %p81, %p82
    %p84 = scmp.ne.s32.totalorder %s70, %s71
    %p85 = scmp.eq.s32.totalorder %s16, 3
    %p86 = por %p84, %p85
    %p88 = scmp.ne.s32.totalorder %s71, %s87
    %p89 = scmp.eq.s32.totalorder %s16, 0
    %p90 = por %p88, %p89
    %s91 = ssub.s32 %s10, %s17
    %p92 = scmp.eq.s32.totalorder %s91, 0
    %s94 = sadd.s32 %s93, 1
    %s95 = scalar_select %p92, %s93, %s94
    %p98 = pneg %p92
    %p99 = scmp.eq.s32.totalorder %s10, 3
    %p100 = por %p98, %p99
    %p101 = scmp.ne.s32.totalorder %s93, %s96
    %p102 = scmp.eq.s32.totalorder %s10, 0
    %p103 = por %p101, %p102
    %p104 = scmp.ne.s32.totalorder %s93, %s96
    %p105 = scmp.eq.s32.totalorder %s15, 3
    %p106 = por %p104, %p105
    %p107 = scmp.ne.s32.totalorder %s96, %s97
    %p108 = scmp.eq.s32.totalorder %s15, 0
    %p109 = por %p107, %p108
    %p110 = scmp.ne.s32.totalorder %s96, %s97
    %p111 = scmp.eq.s32.totalorder %s16, 3
    %p112 = por %p110, %p111
    %p114 = scmp.ne.s32.totalorder %s97, %s113
    %p115 = scmp.eq.s32.totalorder %s16, 0
    %p116 = por %p114, %p115
    %p117 = scmp.le.s32.totalorder 1, %s10
    %p118 = scmp.lt.s32.totalorder %s10, 5
    %p119 = pnand %p117, %p118
    %p120 = pneg %p119
    // Predicated region
    $region9: #{ddm_m2p_forward.3} parent=5 // pred_check
      _
    $region10: #{ddm_m2p_forward.3} parent=5 // pred_check_branch
      %122 = sbr.rel (%p119) target = $region12
    $region11: #{ddm_m2p_forward.3} parent=5 // pred_region
      %s123 = ssub.s32 %s10, 1
      // Predicated region
      $region13: #{ddm_m2p_forward.3} parent=11 // pred_check
        %p124 = pneg %p57
      $region14: #{ddm_m2p_forward.3} parent=11 // pred_check_branch
        %126 = sbr.rel (%p124) target = $region16
      $region15: #{ddm_m2p_forward.3} parent=11 // pred_region
        _
      $region16: #{ddm_m2p_forward.3} parent=11 // pred_fallthru
        _
    $region12: #{ddm_m2p_forward.3} parent=5 // pred_fallthru
      _
    %p127 = scmp.lt.s32.totalorder %s10, 4
    // Predicated region
    $region17: #{ddm_m2p_forward.3} parent=5 // pred_check
      %p128 = pneg %p127
    $region18: #{ddm_m2p_forward.3} parent=5 // pred_check_branch
      %130 = sbr.rel (%p128) target = $region20
    $region19: #{ddm_m2p_forward.3} parent=5 // pred_region
      // Predicated region
      $region21: #{ddm_m2p_forward.3} parent=19 // pred_check
        %p131 = pneg %p30
      $region22: #{ddm_m2p_forward.3} parent=19 // pred_check_branch
        %133 = sbr.rel (%p131) target = $region24
      $region23: #{ddm_m2p_forward.3} parent=19 // pred_region
        %s134 = smul.u32 16, %s10
        %p135 = scmp.lt.s32.totalorder %s134, 63
        %s136 = scalar_select %p135, %s134, 63
        %s137 = smul.addr %s136, 8
        %s138 = scalar_lea.vmem %s0, %s137
        %s139 = smul.u32 16, %s10
      $region24: #{ddm_m2p_forward.3} parent=19 // pred_fallthru
        _
    $region20: #{ddm_m2p_forward.3} parent=5 // pred_fallthru
      _
    %p140 = scmp.le.s32.totalorder 1, %s10
    %p141 = scmp.lt.s32.totalorder %s10, 5
    %p142 = pnand %p140, %p141
    %p143 = pneg %p142
    // Predicated region
    $region25: #{ddm_m2p_forward.3} parent=5 // pred_check
      _
    $region26: #{ddm_m2p_forward.3} parent=5 // pred_check_branch
      %145 = sbr.rel (%p142) target = $region28
    $region27: #{ddm_m2p_forward.3} parent=5 // pred_region
      %s146 = ssub.s32 %s10, 1
      %s147 = smul.u32 16, %s15
      %p148 = scmp.lt.s32.totalorder %s147, 63
      %s149 = scalar_select %p148, %s147, 63
      %s150 = smul.addr %s149, 8
      %s151 = scalar_lea.vmem %s0, %s150
      %p152 = pneg %p36
      %p153 = pneg %p33
      %p154 = pneg %p57
      %p155 = pneg %p54
      %p156 = pneg %p83
      %p157 = pneg %p80
      %s158 = smul.u32 16, %s15
      %p159 = scmp.lt.s32.totalorder %s158, 63
      %s160 = scalar_select %p159, %s158, 63
      %s161 = smul.addr %s160, 8
      %s162 = scalar_lea.vmem %s2, %s161
      %p163 = pneg %p109
      %p164 = pneg %p106
      %s165 = smul.u32 16, %s15
      %p166 = scmp.lt.s32.totalorder %s165, 63
      %s167 = scalar_select %p166, %s165, 63
      %s168 = smul.addr %s167, 8
      %s169 = scalar_lea.vmem %s3, %s168
      %s170 = smul.u32 16, %s15
      %p171 = scmp.lt.s32.totalorder %s170, 63
      %s172 = scalar_select %p171, %s170, 63
      %s173 = smul.addr %s172, 8
      %s174 = scalar_lea.vmem %s0, %s173
      %s175 = smul.u32 16, %s15
      %s176 = smul.u32 16, %s15
      %p177 = scmp.lt.s32.totalorder %s176, 63
      %s178 = scalar_select %p177, %s176, 63
      %s179 = smul.addr %s178, 8
      %s180 = scalar_lea.vmem %s2, %s179
      %s181 = smul.u32 16, %s15
      %s182 = smul.u32 16, %s15
      %p183 = scmp.lt.s32.totalorder %s182, 63
      %s184 = scalar_select %p183, %s182, 63
      %s185 = smul.addr %s184, 8
      %s186 = scalar_lea.vmem %s3, %s185
      %s187 = smul.u32 16, %s15
      %v188 = vld [vmem:[%s174] sm:$0xff]
      %v189 = vld [vmem:[%s174 + $0x8] sm:$0xff]
      %v190 = vld [vmem:[%s174 + $0x10] sm:$0xff]
      %v191 = vld [vmem:[%s174 + $0x18] sm:$0xff]
      %v192 = vld [vmem:[%s174 + $0x20] sm:$0xff]
      %v193 = vld [vmem:[%s174 + $0x28] sm:$0xff]
      %v194 = vld [vmem:[%s174 + $0x30] sm:$0xff]
      %v195 = vld [vmem:[%s174 + $0x38] sm:$0xff]
      %v196 = vld [vmem:[%s174 + $0x40] sm:$0xff]
      %v197 = vld [vmem:[%s174 + $0x48] sm:$0xff]
      %v198 = vld [vmem:[%s174 + $0x50] sm:$0xff]
      %v199 = vld [vmem:[%s174 + $0x58] sm:$0xff]
      %v200 = vld [vmem:[%s174 + $0x60] sm:$0xff]
      %v201 = vld [vmem:[%s174 + $0x68] sm:$0xff]
      %v202 = vld [vmem:[%s174 + $0x70] sm:$0xff]
      %v203 = vld [vmem:[%s174 + $0x78] sm:$0xff]
      %v204 = vld [vmem:[%s1] sm:$0x1]
      %v205 = vld [vmem:[%s1 + $0x1] sm:$0x1]
      %v206 = vld [vmem:[%s1 + $0x2] sm:$0x1]
      %208 = vset.pattern.permute.xlu0 0
      %209 = vperm.xlu0 %208, %v188
      %v210 = vpop.permute.xlu0 %209
      %213 = vset.pattern.permute.xlu0 0
      %214 = vperm.xlu0 %213, %v189
      %v215 = vpop.permute.xlu0 %214
      %218 = vset.pattern.permute.xlu0 0
      %219 = vperm.xlu0 %218, %v190
      %v220 = vpop.permute.xlu0 %219
      %223 = vset.pattern.permute.xlu0 0
      %224 = vperm.xlu0 %223, %v191
      %v225 = vpop.permute.xlu0 %224
      %228 = vset.pattern.permute.xlu0 0
      %229 = vperm.xlu0 %228, %v192
      %v230 = vpop.permute.xlu0 %229
      %233 = vset.pattern.permute.xlu0 0
      %234 = vperm.xlu0 %233, %v193
      %v235 = vpop.permute.xlu0 %234
      %238 = vset.pattern.permute.xlu0 0
      %239 = vperm.xlu0 %238, %v194
      %v240 = vpop.permute.xlu0 %239
      %243 = vset.pattern.permute.xlu0 0
      %244 = vperm.xlu0 %243, %v195
      %v245 = vpop.permute.xlu0 %244
      %248 = vset.pattern.permute.xlu0 0
      %249 = vperm.xlu0 %248, %v196
      %v250 = vpop.permute.xlu0 %249
      %253 = vset.pattern.permute.xlu0 0
      %254 = vperm.xlu0 %253, %v197
      %v255 = vpop.permute.xlu0 %254
      %258 = vset.pattern.permute.xlu0 0
      %259 = vperm.xlu0 %258, %v198
      %v260 = vpop.permute.xlu0 %259
      %263 = vset.pattern.permute.xlu0 0
      %264 = vperm.xlu0 %263, %v199
      %v265 = vpop.permute.xlu0 %264
      %268 = vset.pattern.permute.xlu0 0
      %269 = vperm.xlu0 %268, %v200
      %v270 = vpop.permute.xlu0 %269
      %273 = vset.pattern.permute.xlu0 0
      %274 = vperm.xlu0 %273, %v201
      %v275 = vpop.permute.xlu0 %274
      %278 = vset.pattern.permute.xlu0 0
      %279 = vperm.xlu0 %278, %v202
      %v280 = vpop.permute.xlu0 %279
      %283 = vset.pattern.permute.xlu0 0
      %284 = vperm.xlu0 %283, %v203
      %v285 = vpop.permute.xlu0 %284
      %v287 = vlaneseq
      %v288 = vshrl.u32 %v287, 7
      %v289 = vsub.s32 0, %v288
      %v290 = vrot.slane %v204, %v289
      %v291 = vsub.f32 %v210, %v290
      %v292 = vsub.f32 %v215, %v290
      %v293 = vsub.f32 %v220, %v290
      %v294 = vsub.f32 %v225, %v290
      %v295 = vsub.f32 %v230, %v290
      %v296 = vsub.f32 %v235, %v290
      %v297 = vsub.f32 %v240, %v290
      %v298 = vsub.f32 %v245, %v290
      %v299 = vsub.f32 %v250, %v290
      %v300 = vsub.f32 %v255, %v290
      %v301 = vsub.f32 %v260, %v290
      %v302 = vsub.f32 %v265, %v290
      %v303 = vsub.f32 %v270, %v290
      %v304 = vsub.f32 %v275, %v290
      %v305 = vsub.f32 %v280, %v290
      %v306 = vsub.f32 %v285, %v290
      %v307 = vmul.f32 %v291, %v291
      %v308 = vmul.f32 %v292, %v292
      %v309 = vmul.f32 %v293, %v293
      %v310 = vmul.f32 %v294, %v294
      %v311 = vmul.f32 %v295, %v295
      %v312 = vmul.f32 %v296, %v296
      %v313 = vmul.f32 %v297, %v297
      %v314 = vmul.f32 %v298, %v298
      %v315 = vmul.f32 %v299, %v299
      %v316 = vmul.f32 %v300, %v300
      %v317 = vmul.f32 %v301, %v301
      %v318 = vmul.f32 %v302, %v302
      %v319 = vmul.f32 %v303, %v303
      %v320 = vmul.f32 %v304, %v304
      %v321 = vmul.f32 %v305, %v305
      %v322 = vmul.f32 %v306, %v306
      %323 = vset.pattern.permute.xlu0 1
      %324 = vperm.xlu0 %323, %v188
      %v325 = vpop.permute.xlu0 %324
      %327 = vset.pattern.permute.xlu0 1
      %328 = vperm.xlu0 %327, %v189
      %v329 = vpop.permute.xlu0 %328
      %331 = vset.pattern.permute.xlu0 1
      %332 = vperm.xlu0 %331, %v190
      %v333 = vpop.permute.xlu0 %332
      %335 = vset.pattern.permute.xlu0 1
      %336 = vperm.xlu0 %335, %v191
      %v337 = vpop.permute.xlu0 %336
      %339 = vset.pattern.permute.xlu0 1
      %340 = vperm.xlu0 %339, %v192
      %v341 = vpop.permute.xlu0 %340
      %343 = vset.pattern.permute.xlu0 1
      %344 = vperm.xlu0 %343, %v193
      %v345 = vpop.permute.xlu0 %344
      %347 = vset.pattern.permute.xlu0 1
      %348 = vperm.xlu0 %347, %v194
      %v349 = vpop.permute.xlu0 %348
      %351 = vset.pattern.permute.xlu0 1
      %352 = vperm.xlu0 %351, %v195
      %v353 = vpop.permute.xlu0 %352
      %355 = vset.pattern.permute.xlu0 1
      %356 = vperm.xlu0 %355, %v196
      %v357 = vpop.permute.xlu0 %356
      %359 = vset.pattern.permute.xlu0 1
      %360 = vperm.xlu0 %359, %v197
      %v361 = vpop.permute.xlu0 %360
      %363 = vset.pattern.permute.xlu0 1
      %364 = vperm.xlu0 %363, %v198
      %v365 = vpop.permute.xlu0 %364
      %367 = vset.pattern.permute.xlu0 1
      %368 = vperm.xlu0 %367, %v199
      %v369 = vpop.permute.xlu0 %368
      %371 = vset.pattern.permute.xlu0 1
      %372 = vperm.xlu0 %371, %v200
      %v373 = vpop.permute.xlu0 %372
      %375 = vset.pattern.permute.xlu0 1
      %376 = vperm.xlu0 %375, %v201
      %v377 = vpop.permute.xlu0 %376
      %379 = vset.pattern.permute.xlu0 1
      %380 = vperm.xlu0 %379, %v202
      %v381 = vpop.permute.xlu0 %380
      %383 = vset.pattern.permute.xlu0 1
      %384 = vperm.xlu0 %383, %v203
      %v385 = vpop.permute.xlu0 %384
      %v387 = vlaneseq
      %v388 = vshrl.u32 %v387, 7
      %v389 = vsub.s32 0, %v388
      %v390 = vrot.slane %v205, %v389
      %v391 = vsub.f32 %v325, %v390
      %v392 = vsub.f32 %v329, %v390
      %v393 = vsub.f32 %v333, %v390
      %v394 = vsub.f32 %v337, %v390
      %v395 = vsub.f32 %v341, %v390
      %v396 = vsub.f32 %v345, %v390
      %v397 = vsub.f32 %v349, %v390
      %v398 = vsub.f32 %v353, %v390
      %v399 = vsub.f32 %v357, %v390
      %v400 = vsub.f32 %v361, %v390
      %v401 = vsub.f32 %v365, %v390
      %v402 = vsub.f32 %v369, %v390
      %v403 = vsub.f32 %v373, %v390
      %v404 = vsub.f32 %v377, %v390
      %v405 = vsub.f32 %v381, %v390
      %v406 = vsub.f32 %v385, %v390
      %v407 = vmul.f32 %v391, %v391
      %v408 = vmul.f32 %v392, %v392
      %v409 = vmul.f32 %v393, %v393
      %v410 = vmul.f32 %v394, %v394
      %v411 = vmul.f32 %v395, %v395
      %v412 = vmul.f32 %v396, %v396
      %v413 = vmul.f32 %v397, %v397
      %v414 = vmul.f32 %v398, %v398
      %v415 = vmul.f32 %v399, %v399
      %v416 = vmul.f32 %v400, %v400
      %v417 = vmul.f32 %v401, %v401
      %v418 = vmul.f32 %v402, %v402
      %v419 = vmul.f32 %v403, %v403
      %v420 = vmul.f32 %v404, %v404
      %v421 = vmul.f32 %v405, %v405
      %v422 = vmul.f32 %v406, %v406
      %v423 = vadd.f32 %v307, %v407
      %v424 = vadd.f32 %v308, %v408
      %v425 = vadd.f32 %v309, %v409
      %v426 = vadd.f32 %v310, %v410
      %v427 = vadd.f32 %v311, %v411
      %v428 = vadd.f32 %v312, %v412
      %v429 = vadd.f32 %v313, %v413
      %v430 = vadd.f32 %v314, %v414
      %v431 = vadd.f32 %v315, %v415
      %v432 = vadd.f32 %v316, %v416
      %v433 = vadd.f32 %v317, %v417
      %v434 = vadd.f32 %v318, %v418
      %v435 = vadd.f32 %v319, %v419
      %v436 = vadd.f32 %v320, %v420
      %v437 = vadd.f32 %v321, %v421
      %v438 = vadd.f32 %v322, %v422
      %439 = vset.pattern.permute.xlu0 2
      %440 = vperm.xlu0 %439, %v188
      %v441 = vpop.permute.xlu0 %440
      %443 = vset.pattern.permute.xlu0 2
      %444 = vperm.xlu0 %443, %v189
      %v445 = vpop.permute.xlu0 %444
      %447 = vset.pattern.permute.xlu0 2
      %448 = vperm.xlu0 %447, %v190
      %v449 = vpop.permute.xlu0 %448
      %451 = vset.pattern.permute.xlu0 2
      %452 = vperm.xlu0 %451, %v191
      %v453 = vpop.permute.xlu0 %452
      %455 = vset.pattern.permute.xlu0 2
      %456 = vperm.xlu0 %455, %v192
      %v457 = vpop.permute.xlu0 %456
      %459 = vset.pattern.permute.xlu0 2
      %460 = vperm.xlu0 %459, %v193
      %v461 = vpop.permute.xlu0 %460
      %463 = vset.pattern.permute.xlu0 2
      %464 = vperm.xlu0 %463, %v194
      %v465 = vpop.permute.xlu0 %464
      %467 = vset.pattern.permute.xlu0 2
      %468 = vperm.xlu0 %467, %v195
      %v469 = vpop.permute.xlu0 %468
      %471 = vset.pattern.permute.xlu0 2
      %472 = vperm.xlu0 %471, %v196
      %v473 = vpop.permute.xlu0 %472
      %475 = vset.pattern.permute.xlu0 2
      %476 = vperm.xlu0 %475, %v197
      %v477 = vpop.permute.xlu0 %476
      %479 = vset.pattern.permute.xlu0 2
      %480 = vperm.xlu0 %479, %v198
      %v481 = vpop.permute.xlu0 %480
      %483 = vset.pattern.permute.xlu0 2
      %484 = vperm.xlu0 %483, %v199
      %v485 = vpop.permute.xlu0 %484
      %487 = vset.pattern.permute.xlu0 2
      %488 = vperm.xlu0 %487, %v200
      %v489 = vpop.permute.xlu0 %488
      %491 = vset.pattern.permute.xlu0 2
      %492 = vperm.xlu0 %491, %v201
      %v493 = vpop.permute.xlu0 %492
      %495 = vset.pattern.permute.xlu0 2
      %496 = vperm.xlu0 %495, %v202
      %v497 = vpop.permute.xlu0 %496
      %499 = vset.pattern.permute.xlu0 2
      %500 = vperm.xlu0 %499, %v203
      %v501 = vpop.permute.xlu0 %500
      %v503 = vlaneseq
      %v504 = vshrl.u32 %v503, 7
      %v505 = vsub.s32 0, %v504
      %v506 = vrot.slane %v206, %v505
      %v507 = vsub.f32 %v441, %v506
      %v508 = vsub.f32 %v445, %v506
      %v509 = vsub.f32 %v449, %v506
      %v510 = vsub.f32 %v453, %v506
      %v511 = vsub.f32 %v457, %v506
      %v512 = vsub.f32 %v461, %v506
      %v513 = vsub.f32 %v465, %v506
      %v514 = vsub.f32 %v469, %v506
      %v515 = vsub.f32 %v473, %v506
      %v516 = vsub.f32 %v477, %v506
      %v517 = vsub.f32 %v481, %v506
      %v518 = vsub.f32 %v485, %v506
      %v519 = vsub.f32 %v489, %v506
      %v520 = vsub.f32 %v493, %v506
      %v521 = vsub.f32 %v497, %v506
      %v522 = vsub.f32 %v501, %v506
      %v523 = vmul.f32 %v507, %v507
      %v524 = vmul.f32 %v508, %v508
      %v525 = vmul.f32 %v509, %v509
      %v526 = vmul.f32 %v510, %v510
      %v527 = vmul.f32 %v511, %v511
      %v528 = vmul.f32 %v512, %v512
      %v529 = vmul.f32 %v513, %v513
      %v530 = vmul.f32 %v514, %v514
      %v531 = vmul.f32 %v515, %v515
      %v532 = vmul.f32 %v516, %v516
      %v533 = vmul.f32 %v517, %v517
      %v534 = vmul.f32 %v518, %v518
      %v535 = vmul.f32 %v519, %v519
      %v536 = vmul.f32 %v520, %v520
      %v537 = vmul.f32 %v521, %v521
      %v538 = vmul.f32 %v522, %v522
      %v539 = vadd.f32 %v423, %v523
      %v540 = vadd.f32 %v424, %v524
      %v541 = vadd.f32 %v425, %v525
      %v542 = vadd.f32 %v426, %v526
      %v543 = vadd.f32 %v427, %v527
      %v544 = vadd.f32 %v428, %v528
      %v545 = vadd.f32 %v429, %v529
      %v546 = vadd.f32 %v430, %v530
      %v547 = vadd.f32 %v431, %v531
      %v548 = vadd.f32 %v432, %v532
      %v549 = vadd.f32 %v433, %v533
      %v550 = vadd.f32 %v434, %v534
      %v551 = vadd.f32 %v435, %v535
      %v552 = vadd.f32 %v436, %v536
      %v553 = vadd.f32 %v437, %v537
      %v554 = vadd.f32 %v438, %v538
      %v555 = vlaneseq
      %v556 = vand.u32 %v555, 127
      %557 = vmin.xlane.f32.xlu0 %v539
      %v558 = vpop.xlane.xlu0 %557
      %559 = vmin.xlane.f32.xlu0 %v540
      %v560 = vpop.xlane.xlu0 %559
      %561 = vmin.xlane.f32.xlu0 %v541
      %v562 = vpop.xlane.xlu0 %561
      %563 = vmin.xlane.f32.xlu0 %v542
      %v564 = vpop.xlane.xlu0 %563
      %565 = vmin.xlane.f32.xlu0 %v543
      %v566 = vpop.xlane.xlu0 %565
      %567 = vmin.xlane.f32.xlu0 %v544
      %v568 = vpop.xlane.xlu0 %567
      %569 = vmin.xlane.f32.xlu0 %v545
      %v570 = vpop.xlane.xlu0 %569
      %571 = vmin.xlane.f32.xlu0 %v546
      %v572 = vpop.xlane.xlu0 %571
      %573 = vmin.xlane.f32.xlu0 %v547
      %v574 = vpop.xlane.xlu0 %573
      %575 = vmin.xlane.f32.xlu0 %v548
      %v576 = vpop.xlane.xlu0 %575
      %577 = vmin.xlane.f32.xlu0 %v549
      %v578 = vpop.xlane.xlu0 %577
      %579 = vmin.xlane.f32.xlu0 %v550
      %v580 = vpop.xlane.xlu0 %579
      %581 = vmin.xlane.f32.xlu0 %v551
      %v582 = vpop.xlane.xlu0 %581
      %583 = vmin.xlane.f32.xlu0 %v552
      %v584 = vpop.xlane.xlu0 %583
      %585 = vmin.xlane.f32.xlu0 %v553
      %v586 = vpop.xlane.xlu0 %585
      %587 = vmin.xlane.f32.xlu0 %v554
      %v588 = vpop.xlane.xlu0 %587
      %vm589 = vcmp.le.f32.partialorder %v539, %v558
      %vm590 = vcmp.le.f32.partialorder inf, %v558
      %vm591 = vcmp.le.f32.partialorder %v540, %v560
      %vm592 = vcmp.le.f32.partialorder inf, %v560
      %vm593 = vcmp.le.f32.partialorder %v541, %v562
      %vm594 = vcmp.le.f32.partialorder inf, %v562
      %vm595 = vcmp.le.f32.partialorder %v542, %v564
      %vm596 = vcmp.le.f32.partialorder inf, %v564
      %vm597 = vcmp.le.f32.partialorder %v543, %v566
      %vm598 = vcmp.le.f32.partialorder inf, %v566
      %vm599 = vcmp.le.f32.partialorder %v544, %v568
      %vm600 = vcmp.le.f32.partialorder inf, %v568
      %vm601 = vcmp.le.f32.partialorder %v545, %v570
      %vm602 = vcmp.le.f32.partialorder inf, %v570
      %vm603 = vcmp.le.f32.partialorder %v546, %v572
      %vm604 = vcmp.le.f32.partialorder inf, %v572
      %vm605 = vcmp.le.f32.partialorder %v547, %v574
      %vm606 = vcmp.le.f32.partialorder inf, %v574
      %vm607 = vcmp.le.f32.partialorder %v548, %v576
      %vm608 = vcmp.le.f32.partialorder inf, %v576
      %vm609 = vcmp.le.f32.partialorder %v549, %v578
      %vm610 = vcmp.le.f32.partialorder inf, %v578
      %vm611 = vcmp.le.f32.partialorder %v550, %v580
      %vm612 = vcmp.le.f32.partialorder inf, %v580
      %vm613 = vcmp.le.f32.partialorder %v551, %v582
      %vm614 = vcmp.le.f32.partialorder inf, %v582
      %vm615 = vcmp.le.f32.partialorder %v552, %v584
      %vm616 = vcmp.le.f32.partialorder inf, %v584
      %vm617 = vcmp.le.f32.partialorder %v553, %v586
      %vm618 = vcmp.le.f32.partialorder inf, %v586
      %vm619 = vcmp.le.f32.partialorder %v554, %v588
      %vm620 = vcmp.le.f32.partialorder inf, %v588
      %v621 = vsel %vm589, %v556, 1073741824
      %v622 = vsel %vm590, 0, 1073741824
      %v623 = vsel %vm591, %v556, 1073741824
      %v624 = vsel %vm592, 0, 1073741824
      %v625 = vsel %vm593, %v556, 1073741824
      %v626 = vsel %vm594, 0, 1073741824
      %v627 = vsel %vm595, %v556, 1073741824
      %v628 = vsel %vm596, 0, 1073741824
      %v629 = vsel %vm597, %v556, 1073741824
      %v630 = vsel %vm598, 0, 1073741824
      %v631 = vsel %vm599, %v556, 1073741824
      %v632 = vsel %vm600, 0, 1073741824
      %v633 = vsel %vm601, %v556, 1073741824
      %v634 = vsel %vm602, 0, 1073741824
      %v635 = vsel %vm603, %v556, 1073741824
      %v636 = vsel %vm604, 0, 1073741824
      %v637 = vsel %vm605, %v556, 1073741824
      %v638 = vsel %vm606, 0, 1073741824
      %v639 = vsel %vm607, %v556, 1073741824
      %v640 = vsel %vm608, 0, 1073741824
      %v641 = vsel %vm609, %v556, 1073741824
      %v642 = vsel %vm610, 0, 1073741824
      %v643 = vsel %vm611, %v556, 1073741824
      %v644 = vsel %vm612, 0, 1073741824
      %v645 = vsel %vm613, %v556, 1073741824
      %v646 = vsel %vm614, 0, 1073741824
      %v647 = vsel %vm615, %v556, 1073741824
      %v648 = vsel %vm616, 0, 1073741824
      %v649 = vsel %vm617, %v556, 1073741824
      %v650 = vsel %vm618, 0, 1073741824
      %v651 = vsel %vm619, %v556, 1073741824
      %v652 = vsel %vm620, 0, 1073741824
      %vm653 = vcmask 39936
      %v654 = vsel %vm653, %v622, 2147483647
      %vm655 = vcmp.lt.s32.totalorder %v621, %v654
      %v656 = vsel %vm655, %v621, %v654
      %v657 = vand.u32 %v656, 65535
      %v658 = vshra.s32 %v656, 16
      %v659 = vcvt.s32.f32 %v657
      %v660 = vcvt.s32.f32 %v658
      %661 = vmin.xlane.f32.xlu0 %v660
      %v662 = vpop.xlane.xlu0 %661
      %vm663 = vcmp.eq.f32.partialorder %v660, %v662
      %v664 = vsel %vm663, %v659, inf
      %665 = vmin.xlane.f32.xlu0 %v664
      %v666 = vpop.xlane.xlu0 %665
      %v667 = vcvt.f32.s32 %v666
      %v668 = vcvt.f32.s32 %v662
      %v669 = vshll.u32 %v668, 16
      %v670 = vadd.s32 %v669, %v667
      %v671 = vsel %vm653, %v624, 2147483647
      %vm672 = vcmp.lt.s32.totalorder %v623, %v671
      %v673 = vsel %vm672, %v623, %v671
      %v674 = vand.u32 %v673, 65535
      %v675 = vshra.s32 %v673, 16
      %v676 = vcvt.s32.f32 %v674
      %v677 = vcvt.s32.f32 %v675
      %678 = vmin.xlane.f32.xlu0 %v677
      %v679 = vpop.xlane.xlu0 %678
      %vm680 = vcmp.eq.f32.partialorder %v677, %v679
      %v681 = vsel %vm680, %v676, inf
      %682 = vmin.xlane.f32.xlu0 %v681
      %v683 = vpop.xlane.xlu0 %682
      %v684 = vcvt.f32.s32 %v683
      %v685 = vcvt.f32.s32 %v679
      %v686 = vshll.u32 %v685, 16
      %v687 = vadd.s32 %v686, %v684
      %v688 = vsel %vm653, %v626, 2147483647
      %vm689 = vcmp.lt.s32.totalorder %v625, %v688
      %v690 = vsel %vm689, %v625, %v688
      %v691 = vand.u32 %v690, 65535
      %v692 = vshra.s32 %v690, 16
      %v693 = vcvt.s32.f32 %v691
      %v694 = vcvt.s32.f32 %v692
      %695 = vmin.xlane.f32.xlu0 %v694
      %v696 = vpop.xlane.xlu0 %695
      %vm697 = vcmp.eq.f32.partialorder %v694, %v696
      %v698 = vsel %vm697, %v693, inf
      %699 = vmin.xlane.f32.xlu0 %v698
      %v700 = vpop.xlane.xlu0 %699
      %v701 = vcvt.f32.s32 %v700
      %v702 = vcvt.f32.s32 %v696
      %v703 = vshll.u32 %v702, 16
      %v704 = vadd.s32 %v703, %v701
      %v705 = vsel %vm653, %v628, 2147483647
      %vm706 = vcmp.lt.s32.totalorder %v627, %v705
      %v707 = vsel %vm706, %v627, %v705
      %v708 = vand.u32 %v707, 65535
      %v709 = vshra.s32 %v707, 16
      %v710 = vcvt.s32.f32 %v708
      %v711 = vcvt.s32.f32 %v709
      %712 = vmin.xlane.f32.xlu0 %v711
      %v713 = vpop.xlane.xlu0 %712
      %vm714 = vcmp.eq.f32.partialorder %v711, %v713
      %v715 = vsel %vm714, %v710, inf
      %716 = vmin.xlane.f32.xlu0 %v715
      %v717 = vpop.xlane.xlu0 %716
      %v718 = vcvt.f32.s32 %v717
      %v719 = vcvt.f32.s32 %v713
      %v720 = vshll.u32 %v719, 16
      %v721 = vadd.s32 %v720, %v718
      %v722 = vsel %vm653, %v630, 2147483647
      %vm723 = vcmp.lt.s32.totalorder %v629, %v722
      %v724 = vsel %vm723, %v629, %v722
      %v725 = vand.u32 %v724, 65535
      %v726 = vshra.s32 %v724, 16
      %v727 = vcvt.s32.f32 %v725
      %v728 = vcvt.s32.f32 %v726
      %729 = vmin.xlane.f32.xlu0 %v728
      %v730 = vpop.xlane.xlu0 %729
      %vm731 = vcmp.eq.f32.partialorder %v728, %v730
      %v732 = vsel %vm731, %v727, inf
      %733 = vmin.xlane.f32.xlu0 %v732
      %v734 = vpop.xlane.xlu0 %733
      %v735 = vcvt.f32.s32 %v734
      %v736 = vcvt.f32.s32 %v730
      %v737 = vshll.u32 %v736, 16
      %v738 = vadd.s32 %v737, %v735
      %v739 = vsel %vm653, %v632, 2147483647
      %vm740 = vcmp.lt.s32.totalorder %v631, %v739
      %v741 = vsel %vm740, %v631, %v739
      %v742 = vand.u32 %v741, 65535
      %v743 = vshra.s32 %v741, 16
      %v744 = vcvt.s32.f32 %v742
      %v745 = vcvt.s32.f32 %v743
      %746 = vmin.xlane.f32.xlu0 %v745
      %v747 = vpop.xlane.xlu0 %746
      %vm748 = vcmp.eq.f32.partialorder %v745, %v747
      %v749 = vsel %vm748, %v744, inf
      %750 = vmin.xlane.f32.xlu0 %v749
      %v751 = vpop.xlane.xlu0 %750
      %v752 = vcvt.f32.s32 %v751
      %v753 = vcvt.f32.s32 %v747
      %v754 = vshll.u32 %v753, 16
      %v755 = vadd.s32 %v754, %v752
      %v756 = vsel %vm653, %v634, 2147483647
      %vm757 = vcmp.lt.s32.totalorder %v633, %v756
      %v758 = vsel %vm757, %v633, %v756
      %v759 = vand.u32 %v758, 65535
      %v760 = vshra.s32 %v758, 16
      %v761 = vcvt.s32.f32 %v759
      %v762 = vcvt.s32.f32 %v760
      %763 = vmin.xlane.f32.xlu0 %v762
      %v764 = vpop.xlane.xlu0 %763
      %vm765 = vcmp.eq.f32.partialorder %v762, %v764
      %v766 = vsel %vm765, %v761, inf
      %767 = vmin.xlane.f32.xlu0 %v766
      %v768 = vpop.xlane.xlu0 %767
      %v769 = vcvt.f32.s32 %v768
      %v770 = vcvt.f32.s32 %v764
      %v771 = vshll.u32 %v770, 16
      %v772 = vadd.s32 %v771, %v769
      %v773 = vsel %vm653, %v636, 2147483647
      %vm774 = vcmp.lt.s32.totalorder %v635, %v773
      %v775 = vsel %vm774, %v635, %v773
      %v776 = vand.u32 %v775, 65535
      %v777 = vshra.s32 %v775, 16
      %v778 = vcvt.s32.f32 %v776
      %v779 = vcvt.s32.f32 %v777
      %780 = vmin.xlane.f32.xlu0 %v779
      %v781 = vpop.xlane.xlu0 %780
      %vm782 = vcmp.eq.f32.partialorder %v779, %v781
      %v783 = vsel %vm782, %v778, inf
      %784 = vmin.xlane.f32.xlu0 %v783
      %v785 = vpop.xlane.xlu0 %784
      %v786 = vcvt.f32.s32 %v785
      %v787 = vcvt.f32.s32 %v781
      %v788 = vshll.u32 %v787, 16
      %v789 = vadd.s32 %v788, %v786
      %v790 = vsel %vm653, %v638, 2147483647
      %vm791 = vcmp.lt.s32.totalorder %v637, %v790
      %v792 = vsel %vm791, %v637, %v790
      %v793 = vand.u32 %v792, 65535
      %v794 = vshra.s32 %v792, 16
      %v795 = vcvt.s32.f32 %v793
      %v796 = vcvt.s32.f32 %v794
      %797 = vmin.xlane.f32.xlu0 %v796
      %v798 = vpop.xlane.xlu0 %797
      %vm799 = vcmp.eq.f32.partialorder %v796, %v798
      %v800 = vsel %vm799, %v795, inf
      %801 = vmin.xlane.f32.xlu0 %v800
      %v802 = vpop.xlane.xlu0 %801
      %v803 = vcvt.f32.s32 %v802
      %v804 = vcvt.f32.s32 %v798
      %v805 = vshll.u32 %v804, 16
      %v806 = vadd.s32 %v805, %v803
      %v807 = vsel %vm653, %v640, 2147483647
      %vm808 = vcmp.lt.s32.totalorder %v639, %v807
      %v809 = vsel %vm808, %v639, %v807
      %v810 = vand.u32 %v809, 65535
      %v811 = vshra.s32 %v809, 16
      %v812 = vcvt.s32.f32 %v810
      %v813 = vcvt.s32.f32 %v811
      %814 = vmin.xlane.f32.xlu0 %v813
      %v815 = vpop.xlane.xlu0 %814
      %vm816 = vcmp.eq.f32.partialorder %v813, %v815
      %v817 = vsel %vm816, %v812, inf
      %818 = vmin.xlane.f32.xlu0 %v817
      %v819 = vpop.xlane.xlu0 %818
      %v820 = vcvt.f32.s32 %v819
      %v821 = vcvt.f32.s32 %v815
      %v822 = vshll.u32 %v821, 16
      %v823 = vadd.s32 %v822, %v820
      %v824 = vsel %vm653, %v642, 2147483647
      %vm825 = vcmp.lt.s32.totalorder %v641, %v824
      %v826 = vsel %vm825, %v641, %v824
      %v827 = vand.u32 %v826, 65535
      %v828 = vshra.s32 %v826, 16
      %v829 = vcvt.s32.f32 %v827
      %v830 = vcvt.s32.f32 %v828
      %831 = vmin.xlane.f32.xlu0 %v830
      %v832 = vpop.xlane.xlu0 %831
      %vm833 = vcmp.eq.f32.partialorder %v830, %v832
      %v834 = vsel %vm833, %v829, inf
      %835 = vmin.xlane.f32.xlu0 %v834
      %v836 = vpop.xlane.xlu0 %835
      %v837 = vcvt.f32.s32 %v836
      %v838 = vcvt.f32.s32 %v832
      %v839 = vshll.u32 %v838, 16
      %v840 = vadd.s32 %v839, %v837
      %v841 = vsel %vm653, %v644, 2147483647
      %vm842 = vcmp.lt.s32.totalorder %v643, %v841
      %v843 = vsel %vm842, %v643, %v841
      %v844 = vand.u32 %v843, 65535
      %v845 = vshra.s32 %v843, 16
      %v846 = vcvt.s32.f32 %v844
      %v847 = vcvt.s32.f32 %v845
      %848 = vmin.xlane.f32.xlu0 %v847
      %v849 = vpop.xlane.xlu0 %848
      %vm850 = vcmp.eq.f32.partialorder %v847, %v849
      %v851 = vsel %vm850, %v846, inf
      %852 = vmin.xlane.f32.xlu0 %v851
      %v853 = vpop.xlane.xlu0 %852
      %v854 = vcvt.f32.s32 %v853
      %v855 = vcvt.f32.s32 %v849
      %v856 = vshll.u32 %v855, 16
      %v857 = vadd.s32 %v856, %v854
      %v858 = vsel %vm653, %v646, 2147483647
      %vm859 = vcmp.lt.s32.totalorder %v645, %v858
      %v860 = vsel %vm859, %v645, %v858
      %v861 = vand.u32 %v860, 65535
      %v862 = vshra.s32 %v860, 16
      %v863 = vcvt.s32.f32 %v861
      %v864 = vcvt.s32.f32 %v862
      %865 = vmin.xlane.f32.xlu0 %v864
      %v866 = vpop.xlane.xlu0 %865
      %vm867 = vcmp.eq.f32.partialorder %v864, %v866
      %v868 = vsel %vm867, %v863, inf
      %869 = vmin.xlane.f32.xlu0 %v868
      %v870 = vpop.xlane.xlu0 %869
      %v871 = vcvt.f32.s32 %v870
      %v872 = vcvt.f32.s32 %v866
      %v873 = vshll.u32 %v872, 16
      %v874 = vadd.s32 %v873, %v871
      %v875 = vsel %vm653, %v648, 2147483647
      %vm876 = vcmp.lt.s32.totalorder %v647, %v875
      %v877 = vsel %vm876, %v647, %v875
      %v878 = vand.u32 %v877, 65535
      %v879 = vshra.s32 %v877, 16
      %v880 = vcvt.s32.f32 %v878
      %v881 = vcvt.s32.f32 %v879
      %882 = vmin.xlane.f32.xlu0 %v881
      %v883 = vpop.xlane.xlu0 %882
      %vm884 = vcmp.eq.f32.partialorder %v881, %v883
      %v885 = vsel %vm884, %v880, inf
      %886 = vmin.xlane.f32.xlu0 %v885
      %v887 = vpop.xlane.xlu0 %886
      %v888 = vcvt.f32.s32 %v887
      %v889 = vcvt.f32.s32 %v883
      %v890 = vshll.u32 %v889, 16
      %v891 = vadd.s32 %v890, %v888
      %v892 = vsel %vm653, %v650, 2147483647
      %vm893 = vcmp.lt.s32.totalorder %v649, %v892
      %v894 = vsel %vm893, %v649, %v892
      %v895 = vand.u32 %v894, 65535
      %v896 = vshra.s32 %v894, 16
      %v897 = vcvt.s32.f32 %v895
      %v898 = vcvt.s32.f32 %v896
      %899 = vmin.xlane.f32.xlu0 %v898
      %v900 = vpop.xlane.xlu0 %899
      %vm901 = vcmp.eq.f32.partialorder %v898, %v900
      %v902 = vsel %vm901, %v897, inf
      %903 = vmin.xlane.f32.xlu0 %v902
      %v904 = vpop.xlane.xlu0 %903
      %v905 = vcvt.f32.s32 %v904
      %v906 = vcvt.f32.s32 %v900
      %v907 = vshll.u32 %v906, 16
      %v908 = vadd.s32 %v907, %v905
      %v909 = vsel %vm653, %v652, 2147483647
      %vm910 = vcmp.lt.s32.totalorder %v651, %v909
      %v911 = vsel %vm910, %v651, %v909
      %v912 = vand.u32 %v911, 65535
      %v913 = vshra.s32 %v911, 16
      %v914 = vcvt.s32.f32 %v912
      %v915 = vcvt.s32.f32 %v913
      %916 = vmin.xlane.f32.xlu0 %v915
      %v917 = vpop.xlane.xlu0 %916
      %vm918 = vcmp.eq.f32.partialorder %v915, %v917
      %v919 = vsel %vm918, %v914, inf
      %920 = vmin.xlane.f32.xlu0 %v919
      %v921 = vpop.xlane.xlu0 %920
      %v922 = vcvt.f32.s32 %v921
      %v923 = vcvt.f32.s32 %v917
      %v924 = vshll.u32 %v923, 16
      %v925 = vadd.s32 %v924, %v922
      %vm926 = vcmp.eq.s32.totalorder %v556, %v670
      %vm927 = vcmp.eq.s32.totalorder %v556, %v687
      %vm928 = vcmp.eq.s32.totalorder %v556, %v704
      %vm929 = vcmp.eq.s32.totalorder %v556, %v721
      %vm930 = vcmp.eq.s32.totalorder %v556, %v738
      %vm931 = vcmp.eq.s32.totalorder %v556, %v755
      %vm932 = vcmp.eq.s32.totalorder %v556, %v772
      %vm933 = vcmp.eq.s32.totalorder %v556, %v789
      %vm934 = vcmp.eq.s32.totalorder %v556, %v806
      %vm935 = vcmp.eq.s32.totalorder %v556, %v823
      %vm936 = vcmp.eq.s32.totalorder %v556, %v840
      %vm937 = vcmp.eq.s32.totalorder %v556, %v857
      %vm938 = vcmp.eq.s32.totalorder %v556, %v874
      %vm939 = vcmp.eq.s32.totalorder %v556, %v891
      %vm940 = vcmp.eq.s32.totalorder %v556, %v908
      %vm941 = vcmp.eq.s32.totalorder %v556, %v925
      %v942 = vsel %vm926, inf, %v539
      %v943 = vsel %vm927, inf, %v540
      %v944 = vsel %vm928, inf, %v541
      %v945 = vsel %vm929, inf, %v542
      %v946 = vsel %vm930, inf, %v543
      %v947 = vsel %vm931, inf, %v544
      %v948 = vsel %vm932, inf, %v545
      %v949 = vsel %vm933, inf, %v546
      %v950 = vsel %vm934, inf, %v547
      %v951 = vsel %vm935, inf, %v548
      %v952 = vsel %vm936, inf, %v549
      %v953 = vsel %vm937, inf, %v550
      %v954 = vsel %vm938, inf, %v551
      %v955 = vsel %vm939, inf, %v552
      %v956 = vsel %vm940, inf, %v553
      %v957 = vsel %vm941, inf, %v554
      %958 = vmin.xlane.f32.xlu0 %v942
      %v959 = vpop.xlane.xlu0 %958
      %960 = vmin.xlane.f32.xlu0 %v943
      %v961 = vpop.xlane.xlu0 %960
      %962 = vmin.xlane.f32.xlu0 %v944
      %v963 = vpop.xlane.xlu0 %962
      %964 = vmin.xlane.f32.xlu0 %v945
      %v965 = vpop.xlane.xlu0 %964
      %966 = vmin.xlane.f32.xlu0 %v946
      %v967 = vpop.xlane.xlu0 %966
      %968 = vmin.xlane.f32.xlu0 %v947
      %v969 = vpop.xlane.xlu0 %968
      %970 = vmin.xlane.f32.xlu0 %v948
      %v971 = vpop.xlane.xlu0 %970
      %972 = vmin.xlane.f32.xlu0 %v949
      %v973 = vpop.xlane.xlu0 %972
      %974 = vmin.xlane.f32.xlu0 %v950
      %v975 = vpop.xlane.xlu0 %974
      %976 = vmin.xlane.f32.xlu0 %v951
      %v977 = vpop.xlane.xlu0 %976
      %978 = vmin.xlane.f32.xlu0 %v952
      %v979 = vpop.xlane.xlu0 %978
      %980 = vmin.xlane.f32.xlu0 %v953
      %v981 = vpop.xlane.xlu0 %980
      %982 = vmin.xlane.f32.xlu0 %v954
      %v983 = vpop.xlane.xlu0 %982
      %984 = vmin.xlane.f32.xlu0 %v955
      %v985 = vpop.xlane.xlu0 %984
      %986 = vmin.xlane.f32.xlu0 %v956
      %v987 = vpop.xlane.xlu0 %986
      %988 = vmin.xlane.f32.xlu0 %v957
      %v989 = vpop.xlane.xlu0 %988
      %vm990 = vcmp.le.f32.partialorder %v942, %v959
      %vm991 = vcmp.le.f32.partialorder inf, %v959
      %vm992 = vcmp.le.f32.partialorder %v943, %v961
      %vm993 = vcmp.le.f32.partialorder inf, %v961
      %vm994 = vcmp.le.f32.partialorder %v944, %v963
      %vm995 = vcmp.le.f32.partialorder inf, %v963
      %vm996 = vcmp.le.f32.partialorder %v945, %v965
      %vm997 = vcmp.le.f32.partialorder inf, %v965
      %vm998 = vcmp.le.f32.partialorder %v946, %v967
      %vm999 = vcmp.le.f32.partialorder inf, %v967
      %vm1000 = vcmp.le.f32.partialorder %v947, %v969
      %vm1001 = vcmp.le.f32.partialorder inf, %v969
      %vm1002 = vcmp.le.f32.partialorder %v948, %v971
      %vm1003 = vcmp.le.f32.partialorder inf, %v971
      %vm1004 = vcmp.le.f32.partialorder %v949, %v973
      %vm1005 = vcmp.le.f32.partialorder inf, %v973
      %vm1006 = vcmp.le.f32.partialorder %v950, %v975
      %vm1007 = vcmp.le.f32.partialorder inf, %v975
      %vm1008 = vcmp.le.f32.partialorder %v951, %v977
      %vm1009 = vcmp.le.f32.partialorder inf, %v977
      %vm1010 = vcmp.le.f32.partialorder %v952, %v979
      %vm1011 = vcmp.le.f32.partialorder inf, %v979
      %vm1012 = vcmp.le.f32.partialorder %v953, %v981
      %vm1013 = vcmp.le.f32.partialorder inf, %v981
      %vm1014 = vcmp.le.f32.partialorder %v954, %v983
      %vm1015 = vcmp.le.f32.partialorder inf, %v983
      %vm1016 = vcmp.le.f32.partialorder %v955, %v985
      %vm1017 = vcmp.le.f32.partialorder inf, %v985
      %vm1018 = vcmp.le.f32.partialorder %v956, %v987
      %vm1019 = vcmp.le.f32.partialorder inf, %v987
      %vm1020 = vcmp.le.f32.partialorder %v957, %v989
      %vm1021 = vcmp.le.f32.partialorder inf, %v989
      %v1022 = vsel %vm990, %v556, 1073741824
      %v1023 = vsel %vm991, 0, 1073741824
      %v1024 = vsel %vm992, %v556, 1073741824
      %v1025 = vsel %vm993, 0, 1073741824
      %v1026 = vsel %vm994, %v556, 1073741824
      %v1027 = vsel %vm995, 0, 1073741824
      %v1028 = vsel %vm996, %v556, 1073741824
      %v1029 = vsel %vm997, 0, 1073741824
      %v1030 = vsel %vm998, %v556, 1073741824
      %v1031 = vsel %vm999, 0, 1073741824
      %v1032 = vsel %vm1000, %v556, 1073741824
      %v1033 = vsel %vm1001, 0, 1073741824
      %v1034 = vsel %vm1002, %v556, 1073741824
      %v1035 = vsel %vm1003, 0, 1073741824
      %v1036 = vsel %vm1004, %v556, 1073741824
      %v1037 = vsel %vm1005, 0, 1073741824
      %v1038 = vsel %vm1006, %v556, 1073741824
      %v1039 = vsel %vm1007, 0, 1073741824
      %v1040 = vsel %vm1008, %v556, 1073741824
      %v1041 = vsel %vm1009, 0, 1073741824
      %v1042 = vsel %vm1010, %v556, 1073741824
      %v1043 = vsel %vm1011, 0, 1073741824
      %v1044 = vsel %vm1012, %v556, 1073741824
      %v1045 = vsel %vm1013, 0, 1073741824
      %v1046 = vsel %vm1014, %v556, 1073741824
      %v1047 = vsel %vm1015, 0, 1073741824
      %v1048 = vsel %vm1016, %v556, 1073741824
      %v1049 = vsel %vm1017, 0, 1073741824
      %v1050 = vsel %vm1018, %v556, 1073741824
      %v1051 = vsel %vm1019, 0, 1073741824
      %v1052 = vsel %vm1020, %v556, 1073741824
      %v1053 = vsel %vm1021, 0, 1073741824
      %v1054 = vsel %vm653, %v1023, 2147483647
      %vm1055 = vcmp.lt.s32.totalorder %v1022, %v1054
      %v1056 = vsel %vm1055, %v1022, %v1054
      %v1057 = vand.u32 %v1056, 65535
      %v1058 = vshra.s32 %v1056, 16
      %v1059 = vcvt.s32.f32 %v1057
      %v1060 = vcvt.s32.f32 %v1058
      %1061 = vmin.xlane.f32.xlu0 %v1060
      %v1062 = vpop.xlane.xlu0 %1061
      %vm1063 = vcmp.eq.f32.partialorder %v1060, %v1062
      %v1064 = vsel %vm1063, %v1059, inf
      %1065 = vmin.xlane.f32.xlu0 %v1064
      %v1066 = vpop.xlane.xlu0 %1065
      %v1067 = vcvt.f32.s32 %v1066
      %v1068 = vcvt.f32.s32 %v1062
      %v1069 = vshll.u32 %v1068, 16
      %v1070 = vadd.s32 %v1069, %v1067
      %v1071 = vsel %vm653, %v1025, 2147483647
      %vm1072 = vcmp.lt.s32.totalorder %v1024, %v1071
      %v1073 = vsel %vm1072, %v1024, %v1071
      %v1074 = vand.u32 %v1073, 65535
      %v1075 = vshra.s32 %v1073, 16
      %v1076 = vcvt.s32.f32 %v1074
      %v1077 = vcvt.s32.f32 %v1075
      %1078 = vmin.xlane.f32.xlu0 %v1077
      %v1079 = vpop.xlane.xlu0 %1078
      %vm1080 = vcmp.eq.f32.partialorder %v1077, %v1079
      %v1081 = vsel %vm1080, %v1076, inf
      %1082 = vmin.xlane.f32.xlu0 %v1081
      %v1083 = vpop.xlane.xlu0 %1082
      %v1084 = vcvt.f32.s32 %v1083
      %v1085 = vcvt.f32.s32 %v1079
      %v1086 = vshll.u32 %v1085, 16
      %v1087 = vadd.s32 %v1086, %v1084
      %v1088 = vsel %vm653, %v1027, 2147483647
      %vm1089 = vcmp.lt.s32.totalorder %v1026, %v1088
      %v1090 = vsel %vm1089, %v1026, %v1088
      %v1091 = vand.u32 %v1090, 65535
      %v1092 = vshra.s32 %v1090, 16
      %v1093 = vcvt.s32.f32 %v1091
      %v1094 = vcvt.s32.f32 %v1092
      %1095 = vmin.xlane.f32.xlu0 %v1094
      %v1096 = vpop.xlane.xlu0 %1095
      %vm1097 = vcmp.eq.f32.partialorder %v1094, %v1096
      %v1098 = vsel %vm1097, %v1093, inf
      %1099 = vmin.xlane.f32.xlu0 %v1098
      %v1100 = vpop.xlane.xlu0 %1099
      %v1101 = vcvt.f32.s32 %v1100
      %v1102 = vcvt.f32.s32 %v1096
      %v1103 = vshll.u32 %v1102, 16
      %v1104 = vadd.s32 %v1103, %v1101
      %v1105 = vsel %vm653, %v1029, 2147483647
      %vm1106 = vcmp.lt.s32.totalorder %v1028, %v1105
      %v1107 = vsel %vm1106, %v1028, %v1105
      %v1108 = vand.u32 %v1107, 65535
      %v1109 = vshra.s32 %v1107, 16
      %v1110 = vcvt.s32.f32 %v1108
      %v1111 = vcvt.s32.f32 %v1109
      %1112 = vmin.xlane.f32.xlu0 %v1111
      %v1113 = vpop.xlane.xlu0 %1112
      %vm1114 = vcmp.eq.f32.partialorder %v1111, %v1113
      %v1115 = vsel %vm1114, %v1110, inf
      %1116 = vmin.xlane.f32.xlu0 %v1115
      %v1117 = vpop.xlane.xlu0 %1116
      %v1118 = vcvt.f32.s32 %v1117
      %v1119 = vcvt.f32.s32 %v1113
      %v1120 = vshll.u32 %v1119, 16
      %v1121 = vadd.s32 %v1120, %v1118
      %v1122 = vsel %vm653, %v1031, 2147483647
      %vm1123 = vcmp.lt.s32.totalorder %v1030, %v1122
      %v1124 = vsel %vm1123, %v1030, %v1122
      %v1125 = vand.u32 %v1124, 65535
      %v1126 = vshra.s32 %v1124, 16
      %v1127 = vcvt.s32.f32 %v1125
      %v1128 = vcvt.s32.f32 %v1126
      %1129 = vmin.xlane.f32.xlu0 %v1128
      %v1130 = vpop.xlane.xlu0 %1129
      %vm1131 = vcmp.eq.f32.partialorder %v1128, %v1130
      %v1132 = vsel %vm1131, %v1127, inf
      %1133 = vmin.xlane.f32.xlu0 %v1132
      %v1134 = vpop.xlane.xlu0 %1133
      %v1135 = vcvt.f32.s32 %v1134
      %v1136 = vcvt.f32.s32 %v1130
      %v1137 = vshll.u32 %v1136, 16
      %v1138 = vadd.s32 %v1137, %v1135
      %v1139 = vsel %vm653, %v1033, 2147483647
      %vm1140 = vcmp.lt.s32.totalorder %v1032, %v1139
      %v1141 = vsel %vm1140, %v1032, %v1139
      %v1142 = vand.u32 %v1141, 65535
      %v1143 = vshra.s32 %v1141, 16
      %v1144 = vcvt.s32.f32 %v1142
      %v1145 = vcvt.s32.f32 %v1143
      %1146 = vmin.xlane.f32.xlu0 %v1145
      %v1147 = vpop.xlane.xlu0 %1146
      %vm1148 = vcmp.eq.f32.partialorder %v1145, %v1147
      %v1149 = vsel %vm1148, %v1144, inf
      %1150 = vmin.xlane.f32.xlu0 %v1149
      %v1151 = vpop.xlane.xlu0 %1150
      %v1152 = vcvt.f32.s32 %v1151
      %v1153 = vcvt.f32.s32 %v1147
      %v1154 = vshll.u32 %v1153, 16
      %v1155 = vadd.s32 %v1154, %v1152
      %v1156 = vsel %vm653, %v1035, 2147483647
      %vm1157 = vcmp.lt.s32.totalorder %v1034, %v1156
      %v1158 = vsel %vm1157, %v1034, %v1156
      %v1159 = vand.u32 %v1158, 65535
      %v1160 = vshra.s32 %v1158, 16
      %v1161 = vcvt.s32.f32 %v1159
      %v1162 = vcvt.s32.f32 %v1160
      %1163 = vmin.xlane.f32.xlu0 %v1162
      %v1164 = vpop.xlane.xlu0 %1163
      %vm1165 = vcmp.eq.f32.partialorder %v1162, %v1164
      %v1166 = vsel %vm1165, %v1161, inf
      %1167 = vmin.xlane.f32.xlu0 %v1166
      %v1168 = vpop.xlane.xlu0 %1167
      %v1169 = vcvt.f32.s32 %v1168
      %v1170 = vcvt.f32.s32 %v1164
      %v1171 = vshll.u32 %v1170, 16
      %v1172 = vadd.s32 %v1171, %v1169
      %v1173 = vsel %vm653, %v1037, 2147483647
      %vm1174 = vcmp.lt.s32.totalorder %v1036, %v1173
      %v1175 = vsel %vm1174, %v1036, %v1173
      %v1176 = vand.u32 %v1175, 65535
      %v1177 = vshra.s32 %v1175, 16
      %v1178 = vcvt.s32.f32 %v1176
      %v1179 = vcvt.s32.f32 %v1177
      %1180 = vmin.xlane.f32.xlu0 %v1179
      %v1181 = vpop.xlane.xlu0 %1180
      %vm1182 = vcmp.eq.f32.partialorder %v1179, %v1181
      %v1183 = vsel %vm1182, %v1178, inf
      %1184 = vmin.xlane.f32.xlu0 %v1183
      %v1185 = vpop.xlane.xlu0 %1184
      %v1186 = vcvt.f32.s32 %v1185
      %v1187 = vcvt.f32.s32 %v1181
      %v1188 = vshll.u32 %v1187, 16
      %v1189 = vadd.s32 %v1188, %v1186
      %v1190 = vsel %vm653, %v1039, 2147483647
      %vm1191 = vcmp.lt.s32.totalorder %v1038, %v1190
      %v1192 = vsel %vm1191, %v1038, %v1190
      %v1193 = vand.u32 %v1192, 65535
      %v1194 = vshra.s32 %v1192, 16
      %v1195 = vcvt.s32.f32 %v1193
      %v1196 = vcvt.s32.f32 %v1194
      %1197 = vmin.xlane.f32.xlu0 %v1196
      %v1198 = vpop.xlane.xlu0 %1197
      %vm1199 = vcmp.eq.f32.partialorder %v1196, %v1198
      %v1200 = vsel %vm1199, %v1195, inf
      %1201 = vmin.xlane.f32.xlu0 %v1200
      %v1202 = vpop.xlane.xlu0 %1201
      %v1203 = vcvt.f32.s32 %v1202
      %v1204 = vcvt.f32.s32 %v1198
      %v1205 = vshll.u32 %v1204, 16
      %v1206 = vadd.s32 %v1205, %v1203
      %v1207 = vsel %vm653, %v1041, 2147483647
      %vm1208 = vcmp.lt.s32.totalorder %v1040, %v1207
      %v1209 = vsel %vm1208, %v1040, %v1207
      %v1210 = vand.u32 %v1209, 65535
      %v1211 = vshra.s32 %v1209, 16
      %v1212 = vcvt.s32.f32 %v1210
      %v1213 = vcvt.s32.f32 %v1211
      %1214 = vmin.xlane.f32.xlu0 %v1213
      %v1215 = vpop.xlane.xlu0 %1214
      %vm1216 = vcmp.eq.f32.partialorder %v1213, %v1215
      %v1217 = vsel %vm1216, %v1212, inf
      %1218 = vmin.xlane.f32.xlu0 %v1217
      %v1219 = vpop.xlane.xlu0 %1218
      %v1220 = vcvt.f32.s32 %v1219
      %v1221 = vcvt.f32.s32 %v1215
      %v1222 = vshll.u32 %v1221, 16
      %v1223 = vadd.s32 %v1222, %v1220
      %v1224 = vsel %vm653, %v1043, 2147483647
      %vm1225 = vcmp.lt.s32.totalorder %v1042, %v1224
      %v1226 = vsel %vm1225, %v1042, %v1224
      %v1227 = vand.u32 %v1226, 65535
      %v1228 = vshra.s32 %v1226, 16
      %v1229 = vcvt.s32.f32 %v1227
      %v1230 = vcvt.s32.f32 %v1228
      %1231 = vmin.xlane.f32.xlu0 %v1230
      %v1232 = vpop.xlane.xlu0 %1231
      %vm1233 = vcmp.eq.f32.partialorder %v1230, %v1232
      %v1234 = vsel %vm1233, %v1229, inf
      %1235 = vmin.xlane.f32.xlu0 %v1234
      %v1236 = vpop.xlane.xlu0 %1235
      %v1237 = vcvt.f32.s32 %v1236
      %v1238 = vcvt.f32.s32 %v1232
      %v1239 = vshll.u32 %v1238, 16
      %v1240 = vadd.s32 %v1239, %v1237
      %v1241 = vsel %vm653, %v1045, 2147483647
      %vm1242 = vcmp.lt.s32.totalorder %v1044, %v1241
      %v1243 = vsel %vm1242, %v1044, %v1241
      %v1244 = vand.u32 %v1243, 65535
      %v1245 = vshra.s32 %v1243, 16
      %v1246 = vcvt.s32.f32 %v1244
      %v1247 = vcvt.s32.f32 %v1245
      %1248 = vmin.xlane.f32.xlu0 %v1247
      %v1249 = vpop.xlane.xlu0 %1248
      %vm1250 = vcmp.eq.f32.partialorder %v1247, %v1249
      %v1251 = vsel %vm1250, %v1246, inf
      %1252 = vmin.xlane.f32.xlu0 %v1251
      %v1253 = vpop.xlane.xlu0 %1252
      %v1254 = vcvt.f32.s32 %v1253
      %v1255 = vcvt.f32.s32 %v1249
      %v1256 = vshll.u32 %v1255, 16
      %v1257 = vadd.s32 %v1256, %v1254
      %v1258 = vsel %vm653, %v1047, 2147483647
      %vm1259 = vcmp.lt.s32.totalorder %v1046, %v1258
      %v1260 = vsel %vm1259, %v1046, %v1258
      %v1261 = vand.u32 %v1260, 65535
      %v1262 = vshra.s32 %v1260, 16
      %v1263 = vcvt.s32.f32 %v1261
      %v1264 = vcvt.s32.f32 %v1262
      %1265 = vmin.xlane.f32.xlu0 %v1264
      %v1266 = vpop.xlane.xlu0 %1265
      %vm1267 = vcmp.eq.f32.partialorder %v1264, %v1266
      %v1268 = vsel %vm1267, %v1263, inf
      %1269 = vmin.xlane.f32.xlu0 %v1268
      %v1270 = vpop.xlane.xlu0 %1269
      %v1271 = vcvt.f32.s32 %v1270
      %v1272 = vcvt.f32.s32 %v1266
      %v1273 = vshll.u32 %v1272, 16
      %v1274 = vadd.s32 %v1273, %v1271
      %v1275 = vsel %vm653, %v1049, 2147483647
      %vm1276 = vcmp.lt.s32.totalorder %v1048, %v1275
      %v1277 = vsel %vm1276, %v1048, %v1275
      %v1278 = vand.u32 %v1277, 65535
      %v1279 = vshra.s32 %v1277, 16
      %v1280 = vcvt.s32.f32 %v1278
      %v1281 = vcvt.s32.f32 %v1279
      %1282 = vmin.xlane.f32.xlu0 %v1281
      %v1283 = vpop.xlane.xlu0 %1282
      %vm1284 = vcmp.eq.f32.partialorder %v1281, %v1283
      %v1285 = vsel %vm1284, %v1280, inf
      %1286 = vmin.xlane.f32.xlu0 %v1285
      %v1287 = vpop.xlane.xlu0 %1286
      %v1288 = vcvt.f32.s32 %v1287
      %v1289 = vcvt.f32.s32 %v1283
      %v1290 = vshll.u32 %v1289, 16
      %v1291 = vadd.s32 %v1290, %v1288
      %v1292 = vsel %vm653, %v1051, 2147483647
      %vm1293 = vcmp.lt.s32.totalorder %v1050, %v1292
      %v1294 = vsel %vm1293, %v1050, %v1292
      %v1295 = vand.u32 %v1294, 65535
      %v1296 = vshra.s32 %v1294, 16
      %v1297 = vcvt.s32.f32 %v1295
      %v1298 = vcvt.s32.f32 %v1296
      %1299 = vmin.xlane.f32.xlu0 %v1298
      %v1300 = vpop.xlane.xlu0 %1299
      %vm1301 = vcmp.eq.f32.partialorder %v1298, %v1300
      %v1302 = vsel %vm1301, %v1297, inf
      %1303 = vmin.xlane.f32.xlu0 %v1302
      %v1304 = vpop.xlane.xlu0 %1303
      %v1305 = vcvt.f32.s32 %v1304
      %v1306 = vcvt.f32.s32 %v1300
      %v1307 = vshll.u32 %v1306, 16
      %v1308 = vadd.s32 %v1307, %v1305
      %v1309 = vsel %vm653, %v1053, 2147483647
      %vm1310 = vcmp.lt.s32.totalorder %v1052, %v1309
      %v1311 = vsel %vm1310, %v1052, %v1309
      %v1312 = vand.u32 %v1311, 65535
      %v1313 = vshra.s32 %v1311, 16
      %v1314 = vcvt.s32.f32 %v1312
      %v1315 = vcvt.s32.f32 %v1313
      %1316 = vmin.xlane.f32.xlu0 %v1315
      %v1317 = vpop.xlane.xlu0 %1316
      %vm1318 = vcmp.eq.f32.partialorder %v1315, %v1317
      %v1319 = vsel %vm1318, %v1314, inf
      %1320 = vmin.xlane.f32.xlu0 %v1319
      %v1321 = vpop.xlane.xlu0 %1320
      %v1322 = vcvt.f32.s32 %v1321
      %v1323 = vcvt.f32.s32 %v1317
      %v1324 = vshll.u32 %v1323, 16
      %v1325 = vadd.s32 %v1324, %v1322
      %vm1326 = vcmp.eq.s32.totalorder %v556, %v1070
      %vm1327 = vcmp.eq.s32.totalorder %v556, %v1087
      %vm1328 = vcmp.eq.s32.totalorder %v556, %v1104
      %vm1329 = vcmp.eq.s32.totalorder %v556, %v1121
      %vm1330 = vcmp.eq.s32.totalorder %v556, %v1138
      %vm1331 = vcmp.eq.s32.totalorder %v556, %v1155
      %vm1332 = vcmp.eq.s32.totalorder %v556, %v1172
      %vm1333 = vcmp.eq.s32.totalorder %v556, %v1189
      %vm1334 = vcmp.eq.s32.totalorder %v556, %v1206
      %vm1335 = vcmp.eq.s32.totalorder %v556, %v1223
      %vm1336 = vcmp.eq.s32.totalorder %v556, %v1240
      %vm1337 = vcmp.eq.s32.totalorder %v556, %v1257
      %vm1338 = vcmp.eq.s32.totalorder %v556, %v1274
      %vm1339 = vcmp.eq.s32.totalorder %v556, %v1291
      %vm1340 = vcmp.eq.s32.totalorder %v556, %v1308
      %vm1341 = vcmp.eq.s32.totalorder %v556, %v1325
      %v1342 = vsel %vm1326, inf, %v942
      %v1343 = vsel %vm1327, inf, %v943
      %v1344 = vsel %vm1328, inf, %v944
      %v1345 = vsel %vm1329, inf, %v945
      %v1346 = vsel %vm1330, inf, %v946
      %v1347 = vsel %vm1331, inf, %v947
      %v1348 = vsel %vm1332, inf, %v948
      %v1349 = vsel %vm1333, inf, %v949
      %v1350 = vsel %vm1334, inf, %v950
      %v1351 = vsel %vm1335, inf, %v951
      %v1352 = vsel %vm1336, inf, %v952
      %v1353 = vsel %vm1337, inf, %v953
      %v1354 = vsel %vm1338, inf, %v954
      %v1355 = vsel %vm1339, inf, %v955
      %v1356 = vsel %vm1340, inf, %v956
      %v1357 = vsel %vm1341, inf, %v957
      %1358 = vmin.xlane.f32.xlu0 %v1342
      %v1359 = vpop.xlane.xlu0 %1358
      %1360 = vmin.xlane.f32.xlu0 %v1343
      %v1361 = vpop.xlane.xlu0 %1360
      %1362 = vmin.xlane.f32.xlu0 %v1344
      %v1363 = vpop.xlane.xlu0 %1362
      %1364 = vmin.xlane.f32.xlu0 %v1345
      %v1365 = vpop.xlane.xlu0 %1364
      %1366 = vmin.xlane.f32.xlu0 %v1346
      %v1367 = vpop.xlane.xlu0 %1366
      %1368 = vmin.xlane.f32.xlu0 %v1347
      %v1369 = vpop.xlane.xlu0 %1368
      %1370 = vmin.xlane.f32.xlu0 %v1348
      %v1371 = vpop.xlane.xlu0 %1370
      %1372 = vmin.xlane.f32.xlu0 %v1349
      %v1373 = vpop.xlane.xlu0 %1372
      %1374 = vmin.xlane.f32.xlu0 %v1350
      %v1375 = vpop.xlane.xlu0 %1374
      %1376 = vmin.xlane.f32.xlu0 %v1351
      %v1377 = vpop.xlane.xlu0 %1376
      %1378 = vmin.xlane.f32.xlu0 %v1352
      %v1379 = vpop.xlane.xlu0 %1378
      %1380 = vmin.xlane.f32.xlu0 %v1353
      %v1381 = vpop.xlane.xlu0 %1380
      %1382 = vmin.xlane.f32.xlu0 %v1354
      %v1383 = vpop.xlane.xlu0 %1382
      %1384 = vmin.xlane.f32.xlu0 %v1355
      %v1385 = vpop.xlane.xlu0 %1384
      %1386 = vmin.xlane.f32.xlu0 %v1356
      %v1387 = vpop.xlane.xlu0 %1386
      %1388 = vmin.xlane.f32.xlu0 %v1357
      %v1389 = vpop.xlane.xlu0 %1388
      %vm1390 = vcmp.le.f32.partialorder %v1342, %v1359
      %vm1391 = vcmp.le.f32.partialorder inf, %v1359
      %vm1392 = vcmp.le.f32.partialorder %v1343, %v1361
      %vm1393 = vcmp.le.f32.partialorder inf, %v1361
      %vm1394 = vcmp.le.f32.partialorder %v1344, %v1363
      %vm1395 = vcmp.le.f32.partialorder inf, %v1363
      %vm1396 = vcmp.le.f32.partialorder %v1345, %v1365
      %vm1397 = vcmp.le.f32.partialorder inf, %v1365
      %vm1398 = vcmp.le.f32.partialorder %v1346, %v1367
      %vm1399 = vcmp.le.f32.partialorder inf, %v1367
      %vm1400 = vcmp.le.f32.partialorder %v1347, %v1369
      %vm1401 = vcmp.le.f32.partialorder inf, %v1369
      %vm1402 = vcmp.le.f32.partialorder %v1348, %v1371
      %vm1403 = vcmp.le.f32.partialorder inf, %v1371
      %vm1404 = vcmp.le.f32.partialorder %v1349, %v1373
      %vm1405 = vcmp.le.f32.partialorder inf, %v1373
      %vm1406 = vcmp.le.f32.partialorder %v1350, %v1375
      %vm1407 = vcmp.le.f32.partialorder inf, %v1375
      %vm1408 = vcmp.le.f32.partialorder %v1351, %v1377
      %vm1409 = vcmp.le.f32.partialorder inf, %v1377
      %vm1410 = vcmp.le.f32.partialorder %v1352, %v1379
      %vm1411 = vcmp.le.f32.partialorder inf, %v1379
      %vm1412 = vcmp.le.f32.partialorder %v1353, %v1381
      %vm1413 = vcmp.le.f32.partialorder inf, %v1381
      %vm1414 = vcmp.le.f32.partialorder %v1354, %v1383
      %vm1415 = vcmp.le.f32.partialorder inf, %v1383
      %vm1416 = vcmp.le.f32.partialorder %v1355, %v1385
      %vm1417 = vcmp.le.f32.partialorder inf, %v1385
      %vm1418 = vcmp.le.f32.partialorder %v1356, %v1387
      %vm1419 = vcmp.le.f32.partialorder inf, %v1387
      %vm1420 = vcmp.le.f32.partialorder %v1357, %v1389
      %vm1421 = vcmp.le.f32.partialorder inf, %v1389
      %v1422 = vsel %vm1390, %v556, 1073741824
      %v1423 = vsel %vm1391, 0, 1073741824
      %v1424 = vsel %vm1392, %v556, 1073741824
      %v1425 = vsel %vm1393, 0, 1073741824
      %v1426 = vsel %vm1394, %v556, 1073741824
      %v1427 = vsel %vm1395, 0, 1073741824
      %v1428 = vsel %vm1396, %v556, 1073741824
      %v1429 = vsel %vm1397, 0, 1073741824
      %v1430 = vsel %vm1398, %v556, 1073741824
      %v1431 = vsel %vm1399, 0, 1073741824
      %v1432 = vsel %vm1400, %v556, 1073741824
      %v1433 = vsel %vm1401, 0, 1073741824
      %v1434 = vsel %vm1402, %v556, 1073741824
      %v1435 = vsel %vm1403, 0, 1073741824
      %v1436 = vsel %vm1404, %v556, 1073741824
      %v1437 = vsel %vm1405, 0, 1073741824
      %v1438 = vsel %vm1406, %v556, 1073741824
      %v1439 = vsel %vm1407, 0, 1073741824
      %v1440 = vsel %vm1408, %v556, 1073741824
      %v1441 = vsel %vm1409, 0, 1073741824
      %v1442 = vsel %vm1410, %v556, 1073741824
      %v1443 = vsel %vm1411, 0, 1073741824
      %v1444 = vsel %vm1412, %v556, 1073741824
      %v1445 = vsel %vm1413, 0, 1073741824
      %v1446 = vsel %vm1414, %v556, 1073741824
      %v1447 = vsel %vm1415, 0, 1073741824
      %v1448 = vsel %vm1416, %v556, 1073741824
      %v1449 = vsel %vm1417, 0, 1073741824
      %v1450 = vsel %vm1418, %v556, 1073741824
      %v1451 = vsel %vm1419, 0, 1073741824
      %v1452 = vsel %vm1420, %v556, 1073741824
      %v1453 = vsel %vm1421, 0, 1073741824
      %v1454 = vsel %vm653, %v1423, 2147483647
      %vm1455 = vcmp.lt.s32.totalorder %v1422, %v1454
      %v1456 = vsel %vm1455, %v1422, %v1454
      %v1457 = vand.u32 %v1456, 65535
      %v1458 = vshra.s32 %v1456, 16
      %v1459 = vcvt.s32.f32 %v1457
      %v1460 = vcvt.s32.f32 %v1458
      %1461 = vmin.xlane.f32.xlu0 %v1460
      %v1462 = vpop.xlane.xlu0 %1461
      %vm1463 = vcmp.eq.f32.partialorder %v1460, %v1462
      %v1464 = vsel %vm1463, %v1459, inf
      %1465 = vmin.xlane.f32.xlu0 %v1464
      %v1466 = vpop.xlane.xlu0 %1465
      %v1467 = vcvt.f32.s32 %v1466
      %v1468 = vcvt.f32.s32 %v1462
      %v1469 = vshll.u32 %v1468, 16
      %v1470 = vadd.s32 %v1469, %v1467
      %v1471 = vsel %vm653, %v1425, 2147483647
      %vm1472 = vcmp.lt.s32.totalorder %v1424, %v1471
      %v1473 = vsel %vm1472, %v1424, %v1471
      %v1474 = vand.u32 %v1473, 65535
      %v1475 = vshra.s32 %v1473, 16
      %v1476 = vcvt.s32.f32 %v1474
      %v1477 = vcvt.s32.f32 %v1475
      %1478 = vmin.xlane.f32.xlu0 %v1477
      %v1479 = vpop.xlane.xlu0 %1478
      %vm1480 = vcmp.eq.f32.partialorder %v1477, %v1479
      %v1481 = vsel %vm1480, %v1476, inf
      %1482 = vmin.xlane.f32.xlu0 %v1481
      %v1483 = vpop.xlane.xlu0 %1482
      %v1484 = vcvt.f32.s32 %v1483
      %v1485 = vcvt.f32.s32 %v1479
      %v1486 = vshll.u32 %v1485, 16
      %v1487 = vadd.s32 %v1486, %v1484
      %v1488 = vsel %vm653, %v1427, 2147483647
      %vm1489 = vcmp.lt.s32.totalorder %v1426, %v1488
      %v1490 = vsel %vm1489, %v1426, %v1488
      %v1491 = vand.u32 %v1490, 65535
      %v1492 = vshra.s32 %v1490, 16
      %v1493 = vcvt.s32.f32 %v1491
      %v1494 = vcvt.s32.f32 %v1492
      %1495 = vmin.xlane.f32.xlu0 %v1494
      %v1496 = vpop.xlane.xlu0 %1495
      %vm1497 = vcmp.eq.f32.partialorder %v1494, %v1496
      %v1498 = vsel %vm1497, %v1493, inf
      %1499 = vmin.xlane.f32.xlu0 %v1498
      %v1500 = vpop.xlane.xlu0 %1499
      %v1501 = vcvt.f32.s32 %v1500
      %v1502 = vcvt.f32.s32 %v1496
      %v1503 = vshll.u32 %v1502, 16
      %v1504 = vadd.s32 %v1503, %v1501
      %v1505 = vsel %vm653, %v1429, 2147483647
      %vm1506 = vcmp.lt.s32.totalorder %v1428, %v1505
      %v1507 = vsel %vm1506, %v1428, %v1505
      %v1508 = vand.u32 %v1507, 65535
      %v1509 = vshra.s32 %v1507, 16
      %v1510 = vcvt.s32.f32 %v1508
      %v1511 = vcvt.s32.f32 %v1509
      %1512 = vmin.xlane.f32.xlu0 %v1511
      %v1513 = vpop.xlane.xlu0 %1512
      %vm1514 = vcmp.eq.f32.partialorder %v1511, %v1513
      %v1515 = vsel %vm1514, %v1510, inf
      %1516 = vmin.xlane.f32.xlu0 %v1515
      %v1517 = vpop.xlane.xlu0 %1516
      %v1518 = vcvt.f32.s32 %v1517
      %v1519 = vcvt.f32.s32 %v1513
      %v1520 = vshll.u32 %v1519, 16
      %v1521 = vadd.s32 %v1520, %v1518
      %v1522 = vsel %vm653, %v1431, 2147483647
      %vm1523 = vcmp.lt.s32.totalorder %v1430, %v1522
      %v1524 = vsel %vm1523, %v1430, %v1522
      %v1525 = vand.u32 %v1524, 65535
      %v1526 = vshra.s32 %v1524, 16
      %v1527 = vcvt.s32.f32 %v1525
      %v1528 = vcvt.s32.f32 %v1526
      %1529 = vmin.xlane.f32.xlu0 %v1528
      %v1530 = vpop.xlane.xlu0 %1529
      %vm1531 = vcmp.eq.f32.partialorder %v1528, %v1530
      %v1532 = vsel %vm1531, %v1527, inf
      %1533 = vmin.xlane.f32.xlu0 %v1532
      %v1534 = vpop.xlane.xlu0 %1533
      %v1535 = vcvt.f32.s32 %v1534
      %v1536 = vcvt.f32.s32 %v1530
      %v1537 = vshll.u32 %v1536, 16
      %v1538 = vadd.s32 %v1537, %v1535
      %v1539 = vsel %vm653, %v1433, 2147483647
      %vm1540 = vcmp.lt.s32.totalorder %v1432, %v1539
      %v1541 = vsel %vm1540, %v1432, %v1539
      %v1542 = vand.u32 %v1541, 65535
      %v1543 = vshra.s32 %v1541, 16
      %v1544 = vcvt.s32.f32 %v1542
      %v1545 = vcvt.s32.f32 %v1543
      %1546 = vmin.xlane.f32.xlu0 %v1545
      %v1547 = vpop.xlane.xlu0 %1546
      %vm1548 = vcmp.eq.f32.partialorder %v1545, %v1547
      %v1549 = vsel %vm1548, %v1544, inf
      %1550 = vmin.xlane.f32.xlu0 %v1549
      %v1551 = vpop.xlane.xlu0 %1550
      %v1552 = vcvt.f32.s32 %v1551
      %v1553 = vcvt.f32.s32 %v1547
      %v1554 = vshll.u32 %v1553, 16
      %v1555 = vadd.s32 %v1554, %v1552
      %v1556 = vsel %vm653, %v1435, 2147483647
      %vm1557 = vcmp.lt.s32.totalorder %v1434, %v1556
      %v1558 = vsel %vm1557, %v1434, %v1556
      %v1559 = vand.u32 %v1558, 65535
      %v1560 = vshra.s32 %v1558, 16
      %v1561 = vcvt.s32.f32 %v1559
      %v1562 = vcvt.s32.f32 %v1560
      %1563 = vmin.xlane.f32.xlu0 %v1562
      %v1564 = vpop.xlane.xlu0 %1563
      %vm1565 = vcmp.eq.f32.partialorder %v1562, %v1564
      %v1566 = vsel %vm1565, %v1561, inf
      %1567 = vmin.xlane.f32.xlu0 %v1566
      %v1568 = vpop.xlane.xlu0 %1567
      %v1569 = vcvt.f32.s32 %v1568
      %v1570 = vcvt.f32.s32 %v1564
      %v1571 = vshll.u32 %v1570, 16
      %v1572 = vadd.s32 %v1571, %v1569
      %v1573 = vsel %vm653, %v1437, 2147483647
      %vm1574 = vcmp.lt.s32.totalorder %v1436, %v1573
      %v1575 = vsel %vm1574, %v1436, %v1573
      %v1576 = vand.u32 %v1575, 65535
      %v1577 = vshra.s32 %v1575, 16
      %v1578 = vcvt.s32.f32 %v1576
      %v1579 = vcvt.s32.f32 %v1577
      %1580 = vmin.xlane.f32.xlu0 %v1579
      %v1581 = vpop.xlane.xlu0 %1580
      %vm1582 = vcmp.eq.f32.partialorder %v1579, %v1581
      %v1583 = vsel %vm1582, %v1578, inf
      %1584 = vmin.xlane.f32.xlu0 %v1583
      %v1585 = vpop.xlane.xlu0 %1584
      %v1586 = vcvt.f32.s32 %v1585
      %v1587 = vcvt.f32.s32 %v1581
      %v1588 = vshll.u32 %v1587, 16
      %v1589 = vadd.s32 %v1588, %v1586
      %v1590 = vsel %vm653, %v1439, 2147483647
      %vm1591 = vcmp.lt.s32.totalorder %v1438, %v1590
      %v1592 = vsel %vm1591, %v1438, %v1590
      %v1593 = vand.u32 %v1592, 65535
      %v1594 = vshra.s32 %v1592, 16
      %v1595 = vcvt.s32.f32 %v1593
      %v1596 = vcvt.s32.f32 %v1594
      %1597 = vmin.xlane.f32.xlu0 %v1596
      %v1598 = vpop.xlane.xlu0 %1597
      %vm1599 = vcmp.eq.f32.partialorder %v1596, %v1598
      %v1600 = vsel %vm1599, %v1595, inf
      %1601 = vmin.xlane.f32.xlu0 %v1600
      %v1602 = vpop.xlane.xlu0 %1601
      %v1603 = vcvt.f32.s32 %v1602
      %v1604 = vcvt.f32.s32 %v1598
      %v1605 = vshll.u32 %v1604, 16
      %v1606 = vadd.s32 %v1605, %v1603
      %v1607 = vsel %vm653, %v1441, 2147483647
      %vm1608 = vcmp.lt.s32.totalorder %v1440, %v1607
      %v1609 = vsel %vm1608, %v1440, %v1607
      %v1610 = vand.u32 %v1609, 65535
      %v1611 = vshra.s32 %v1609, 16
      %v1612 = vcvt.s32.f32 %v1610
      %v1613 = vcvt.s32.f32 %v1611
      %1614 = vmin.xlane.f32.xlu0 %v1613
      %v1615 = vpop.xlane.xlu0 %1614
      %vm1616 = vcmp.eq.f32.partialorder %v1613, %v1615
      %v1617 = vsel %vm1616, %v1612, inf
      %1618 = vmin.xlane.f32.xlu0 %v1617
      %v1619 = vpop.xlane.xlu0 %1618
      %v1620 = vcvt.f32.s32 %v1619
      %v1621 = vcvt.f32.s32 %v1615
      %v1622 = vshll.u32 %v1621, 16
      %v1623 = vadd.s32 %v1622, %v1620
      %v1624 = vsel %vm653, %v1443, 2147483647
      %vm1625 = vcmp.lt.s32.totalorder %v1442, %v1624
      %v1626 = vsel %vm1625, %v1442, %v1624
      %v1627 = vand.u32 %v1626, 65535
      %v1628 = vshra.s32 %v1626, 16
      %v1629 = vcvt.s32.f32 %v1627
      %v1630 = vcvt.s32.f32 %v1628
      %1631 = vmin.xlane.f32.xlu0 %v1630
      %v1632 = vpop.xlane.xlu0 %1631
      %vm1633 = vcmp.eq.f32.partialorder %v1630, %v1632
      %v1634 = vsel %vm1633, %v1629, inf
      %1635 = vmin.xlane.f32.xlu0 %v1634
      %v1636 = vpop.xlane.xlu0 %1635
      %v1637 = vcvt.f32.s32 %v1636
      %v1638 = vcvt.f32.s32 %v1632
      %v1639 = vshll.u32 %v1638, 16
      %v1640 = vadd.s32 %v1639, %v1637
      %v1641 = vsel %vm653, %v1445, 2147483647
      %vm1642 = vcmp.lt.s32.totalorder %v1444, %v1641
      %v1643 = vsel %vm1642, %v1444, %v1641
      %v1644 = vand.u32 %v1643, 65535
      %v1645 = vshra.s32 %v1643, 16
      %v1646 = vcvt.s32.f32 %v1644
      %v1647 = vcvt.s32.f32 %v1645
      %1648 = vmin.xlane.f32.xlu0 %v1647
      %v1649 = vpop.xlane.xlu0 %1648
      %vm1650 = vcmp.eq.f32.partialorder %v1647, %v1649
      %v1651 = vsel %vm1650, %v1646, inf
      %1652 = vmin.xlane.f32.xlu0 %v1651
      %v1653 = vpop.xlane.xlu0 %1652
      %v1654 = vcvt.f32.s32 %v1653
      %v1655 = vcvt.f32.s32 %v1649
      %v1656 = vshll.u32 %v1655, 16
      %v1657 = vadd.s32 %v1656, %v1654
      %v1658 = vsel %vm653, %v1447, 2147483647
      %vm1659 = vcmp.lt.s32.totalorder %v1446, %v1658
      %v1660 = vsel %vm1659, %v1446, %v1658
      %v1661 = vand.u32 %v1660, 65535
      %v1662 = vshra.s32 %v1660, 16
      %v1663 = vcvt.s32.f32 %v1661
      %v1664 = vcvt.s32.f32 %v1662
      %1665 = vmin.xlane.f32.xlu0 %v1664
      %v1666 = vpop.xlane.xlu0 %1665
      %vm1667 = vcmp.eq.f32.partialorder %v1664, %v1666
      %v1668 = vsel %vm1667, %v1663, inf
      %1669 = vmin.xlane.f32.xlu0 %v1668
      %v1670 = vpop.xlane.xlu0 %1669
      %v1671 = vcvt.f32.s32 %v1670
      %v1672 = vcvt.f32.s32 %v1666
      %v1673 = vshll.u32 %v1672, 16
      %v1674 = vadd.s32 %v1673, %v1671
      %v1675 = vsel %vm653, %v1449, 2147483647
      %vm1676 = vcmp.lt.s32.totalorder %v1448, %v1675
      %v1677 = vsel %vm1676, %v1448, %v1675
      %v1678 = vand.u32 %v1677, 65535
      %v1679 = vshra.s32 %v1677, 16
      %v1680 = vcvt.s32.f32 %v1678
      %v1681 = vcvt.s32.f32 %v1679
      %1682 = vmin.xlane.f32.xlu0 %v1681
      %v1683 = vpop.xlane.xlu0 %1682
      %vm1684 = vcmp.eq.f32.partialorder %v1681, %v1683
      %v1685 = vsel %vm1684, %v1680, inf
      %1686 = vmin.xlane.f32.xlu0 %v1685
      %v1687 = vpop.xlane.xlu0 %1686
      %v1688 = vcvt.f32.s32 %v1687
      %v1689 = vcvt.f32.s32 %v1683
      %v1690 = vshll.u32 %v1689, 16
      %v1691 = vadd.s32 %v1690, %v1688
      %v1692 = vsel %vm653, %v1451, 2147483647
      %vm1693 = vcmp.lt.s32.totalorder %v1450, %v1692
      %v1694 = vsel %vm1693, %v1450, %v1692
      %v1695 = vand.u32 %v1694, 65535
      %v1696 = vshra.s32 %v1694, 16
      %v1697 = vcvt.s32.f32 %v1695
      %v1698 = vcvt.s32.f32 %v1696
      %1699 = vmin.xlane.f32.xlu0 %v1698
      %v1700 = vpop.xlane.xlu0 %1699
      %vm1701 = vcmp.eq.f32.partialorder %v1698, %v1700
      %v1702 = vsel %vm1701, %v1697, inf
      %1703 = vmin.xlane.f32.xlu0 %v1702
      %v1704 = vpop.xlane.xlu0 %1703
      %v1705 = vcvt.f32.s32 %v1704
      %v1706 = vcvt.f32.s32 %v1700
      %v1707 = vshll.u32 %v1706, 16
      %v1708 = vadd.s32 %v1707, %v1705
      %v1709 = vsel %vm653, %v1453, 2147483647
      %vm1710 = vcmp.lt.s32.totalorder %v1452, %v1709
      %v1711 = vsel %vm1710, %v1452, %v1709
      %v1712 = vand.u32 %v1711, 65535
      %v1713 = vshra.s32 %v1711, 16
      %v1714 = vcvt.s32.f32 %v1712
      %v1715 = vcvt.s32.f32 %v1713
      %1716 = vmin.xlane.f32.xlu0 %v1715
      %v1717 = vpop.xlane.xlu0 %1716
      %vm1718 = vcmp.eq.f32.partialorder %v1715, %v1717
      %v1719 = vsel %vm1718, %v1714, inf
      %1720 = vmin.xlane.f32.xlu0 %v1719
      %v1721 = vpop.xlane.xlu0 %1720
      %v1722 = vcvt.f32.s32 %v1721
      %v1723 = vcvt.f32.s32 %v1717
      %v1724 = vshll.u32 %v1723, 16
      %v1725 = vadd.s32 %v1724, %v1722
      %vm1726 = vcmp.eq.s32.totalorder %v556, %v1470
      %vm1727 = vcmp.eq.s32.totalorder %v556, %v1487
      %vm1728 = vcmp.eq.s32.totalorder %v556, %v1504
      %vm1729 = vcmp.eq.s32.totalorder %v556, %v1521
      %vm1730 = vcmp.eq.s32.totalorder %v556, %v1538
      %vm1731 = vcmp.eq.s32.totalorder %v556, %v1555
      %vm1732 = vcmp.eq.s32.totalorder %v556, %v1572
      %vm1733 = vcmp.eq.s32.totalorder %v556, %v1589
      %vm1734 = vcmp.eq.s32.totalorder %v556, %v1606
      %vm1735 = vcmp.eq.s32.totalorder %v556, %v1623
      %vm1736 = vcmp.eq.s32.totalorder %v556, %v1640
      %vm1737 = vcmp.eq.s32.totalorder %v556, %v1657
      %vm1738 = vcmp.eq.s32.totalorder %v556, %v1674
      %vm1739 = vcmp.eq.s32.totalorder %v556, %v1691
      %vm1740 = vcmp.eq.s32.totalorder %v556, %v1708
      %vm1741 = vcmp.eq.s32.totalorder %v556, %v1725
      %v1742 = vsel %vm1726, inf, %v1342
      %v1743 = vsel %vm1727, inf, %v1343
      %v1744 = vsel %vm1728, inf, %v1344
      %v1745 = vsel %vm1729, inf, %v1345
      %v1746 = vsel %vm1730, inf, %v1346
      %v1747 = vsel %vm1731, inf, %v1347
      %v1748 = vsel %vm1732, inf, %v1348
      %v1749 = vsel %vm1733, inf, %v1349
      %v1750 = vsel %vm1734, inf, %v1350
      %v1751 = vsel %vm1735, inf, %v1351
      %v1752 = vsel %vm1736, inf, %v1352
      %v1753 = vsel %vm1737, inf, %v1353
      %v1754 = vsel %vm1738, inf, %v1354
      %v1755 = vsel %vm1739, inf, %v1355
      %v1756 = vsel %vm1740, inf, %v1356
      %v1757 = vsel %vm1741, inf, %v1357
      %1758 = vmin.xlane.f32.xlu0 %v1742
      %v1759 = vpop.xlane.xlu0 %1758
      %1760 = vmin.xlane.f32.xlu0 %v1743
      %v1761 = vpop.xlane.xlu0 %1760
      %1762 = vmin.xlane.f32.xlu0 %v1744
      %v1763 = vpop.xlane.xlu0 %1762
      %1764 = vmin.xlane.f32.xlu0 %v1745
      %v1765 = vpop.xlane.xlu0 %1764
      %1766 = vmin.xlane.f32.xlu0 %v1746
      %v1767 = vpop.xlane.xlu0 %1766
      %1768 = vmin.xlane.f32.xlu0 %v1747
      %v1769 = vpop.xlane.xlu0 %1768
      %1770 = vmin.xlane.f32.xlu0 %v1748
      %v1771 = vpop.xlane.xlu0 %1770
      %1772 = vmin.xlane.f32.xlu0 %v1749
      %v1773 = vpop.xlane.xlu0 %1772
      %1774 = vmin.xlane.f32.xlu0 %v1750
      %v1775 = vpop.xlane.xlu0 %1774
      %1776 = vmin.xlane.f32.xlu0 %v1751
      %v1777 = vpop.xlane.xlu0 %1776
      %1778 = vmin.xlane.f32.xlu0 %v1752
      %v1779 = vpop.xlane.xlu0 %1778
      %1780 = vmin.xlane.f32.xlu0 %v1753
      %v1781 = vpop.xlane.xlu0 %1780
      %1782 = vmin.xlane.f32.xlu0 %v1754
      %v1783 = vpop.xlane.xlu0 %1782
      %1784 = vmin.xlane.f32.xlu0 %v1755
      %v1785 = vpop.xlane.xlu0 %1784
      %1786 = vmin.xlane.f32.xlu0 %v1756
      %v1787 = vpop.xlane.xlu0 %1786
      %1788 = vmin.xlane.f32.xlu0 %v1757
      %v1789 = vpop.xlane.xlu0 %1788
      %vm1790 = vcmp.le.f32.partialorder %v1742, %v1759
      %vm1791 = vcmp.le.f32.partialorder inf, %v1759
      %vm1792 = vcmp.le.f32.partialorder %v1743, %v1761
      %vm1793 = vcmp.le.f32.partialorder inf, %v1761
      %vm1794 = vcmp.le.f32.partialorder %v1744, %v1763
      %vm1795 = vcmp.le.f32.partialorder inf, %v1763
      %vm1796 = vcmp.le.f32.partialorder %v1745, %v1765
      %vm1797 = vcmp.le.f32.partialorder inf, %v1765
      %vm1798 = vcmp.le.f32.partialorder %v1746, %v1767
      %vm1799 = vcmp.le.f32.partialorder inf, %v1767
      %vm1800 = vcmp.le.f32.partialorder %v1747, %v1769
      %vm1801 = vcmp.le.f32.partialorder inf, %v1769
      %vm1802 = vcmp.le.f32.partialorder %v1748, %v1771
      %vm1803 = vcmp.le.f32.partialorder inf, %v1771
      %vm1804 = vcmp.le.f32.partialorder %v1749, %v1773
      %vm1805 = vcmp.le.f32.partialorder inf, %v1773
      %vm1806 = vcmp.le.f32.partialorder %v1750, %v1775
      %vm1807 = vcmp.le.f32.partialorder inf, %v1775
      %vm1808 = vcmp.le.f32.partialorder %v1751, %v1777
      %vm1809 = vcmp.le.f32.partialorder inf, %v1777
      %vm1810 = vcmp.le.f32.partialorder %v1752, %v1779
      %vm1811 = vcmp.le.f32.partialorder inf, %v1779
      %vm1812 = vcmp.le.f32.partialorder %v1753, %v1781
      %vm1813 = vcmp.le.f32.partialorder inf, %v1781
      %vm1814 = vcmp.le.f32.partialorder %v1754, %v1783
      %vm1815 = vcmp.le.f32.partialorder inf, %v1783
      %vm1816 = vcmp.le.f32.partialorder %v1755, %v1785
      %vm1817 = vcmp.le.f32.partialorder inf, %v1785
      %vm1818 = vcmp.le.f32.partialorder %v1756, %v1787
      %vm1819 = vcmp.le.f32.partialorder inf, %v1787
      %vm1820 = vcmp.le.f32.partialorder %v1757, %v1789
      %vm1821 = vcmp.le.f32.partialorder inf, %v1789
      %v1822 = vsel %vm1790, %v556, 1073741824
      %v1823 = vsel %vm1791, 0, 1073741824
      %v1824 = vsel %vm1792, %v556, 1073741824
      %v1825 = vsel %vm1793, 0, 1073741824
      %v1826 = vsel %vm1794, %v556, 1073741824
      %v1827 = vsel %vm1795, 0, 1073741824
      %v1828 = vsel %vm1796, %v556, 1073741824
      %v1829 = vsel %vm1797, 0, 1073741824
      %v1830 = vsel %vm1798, %v556, 1073741824
      %v1831 = vsel %vm1799, 0, 1073741824
      %v1832 = vsel %vm1800, %v556, 1073741824
      %v1833 = vsel %vm1801, 0, 1073741824
      %v1834 = vsel %vm1802, %v556, 1073741824
      %v1835 = vsel %vm1803, 0, 1073741824
      %v1836 = vsel %vm1804, %v556, 1073741824
      %v1837 = vsel %vm1805, 0, 1073741824
      %v1838 = vsel %vm1806, %v556, 1073741824
      %v1839 = vsel %vm1807, 0, 1073741824
      %v1840 = vsel %vm1808, %v556, 1073741824
      %v1841 = vsel %vm1809, 0, 1073741824
      %v1842 = vsel %vm1810, %v556, 1073741824
      %v1843 = vsel %vm1811, 0, 1073741824
      %v1844 = vsel %vm1812, %v556, 1073741824
      %v1845 = vsel %vm1813, 0, 1073741824
      %v1846 = vsel %vm1814, %v556, 1073741824
      %v1847 = vsel %vm1815, 0, 1073741824
      %v1848 = vsel %vm1816, %v556, 1073741824
      %v1849 = vsel %vm1817, 0, 1073741824
      %v1850 = vsel %vm1818, %v556, 1073741824
      %v1851 = vsel %vm1819, 0, 1073741824
      %v1852 = vsel %vm1820, %v556, 1073741824
      %v1853 = vsel %vm1821, 0, 1073741824
      %v1854 = vsel %vm653, %v1823, 2147483647
      %vm1855 = vcmp.lt.s32.totalorder %v1822, %v1854
      %v1856 = vsel %vm1855, %v1822, %v1854
      %v1857 = vand.u32 %v1856, 65535
      %v1858 = vshra.s32 %v1856, 16
      %v1859 = vcvt.s32.f32 %v1857
      %v1860 = vcvt.s32.f32 %v1858
      %1861 = vmin.xlane.f32.xlu0 %v1860
      %v1862 = vpop.xlane.xlu0 %1861
      %vm1863 = vcmp.eq.f32.partialorder %v1860, %v1862
      %v1864 = vsel %vm1863, %v1859, inf
      %1865 = vmin.xlane.f32.xlu0 %v1864
      %v1866 = vpop.xlane.xlu0 %1865
      %v1867 = vcvt.f32.s32 %v1866
      %v1868 = vcvt.f32.s32 %v1862
      %v1869 = vshll.u32 %v1868, 16
      %v1870 = vadd.s32 %v1869, %v1867
      %v1871 = vsel %vm653, %v1825, 2147483647
      %vm1872 = vcmp.lt.s32.totalorder %v1824, %v1871
      %v1873 = vsel %vm1872, %v1824, %v1871
      %v1874 = vand.u32 %v1873, 65535
      %v1875 = vshra.s32 %v1873, 16
      %v1876 = vcvt.s32.f32 %v1874
      %v1877 = vcvt.s32.f32 %v1875
      %1878 = vmin.xlane.f32.xlu0 %v1877
      %v1879 = vpop.xlane.xlu0 %1878
      %vm1880 = vcmp.eq.f32.partialorder %v1877, %v1879
      %v1881 = vsel %vm1880, %v1876, inf
      %1882 = vmin.xlane.f32.xlu0 %v1881
      %v1883 = vpop.xlane.xlu0 %1882
      %v1884 = vcvt.f32.s32 %v1883
      %v1885 = vcvt.f32.s32 %v1879
      %v1886 = vshll.u32 %v1885, 16
      %v1887 = vadd.s32 %v1886, %v1884
      %v1888 = vsel %vm653, %v1827, 2147483647
      %vm1889 = vcmp.lt.s32.totalorder %v1826, %v1888
      %v1890 = vsel %vm1889, %v1826, %v1888
      %v1891 = vand.u32 %v1890, 65535
      %v1892 = vshra.s32 %v1890, 16
      %v1893 = vcvt.s32.f32 %v1891
      %v1894 = vcvt.s32.f32 %v1892
      %1895 = vmin.xlane.f32.xlu0 %v1894
      %v1896 = vpop.xlane.xlu0 %1895
      %vm1897 = vcmp.eq.f32.partialorder %v1894, %v1896
      %v1898 = vsel %vm1897, %v1893, inf
      %1899 = vmin.xlane.f32.xlu0 %v1898
      %v1900 = vpop.xlane.xlu0 %1899
      %v1901 = vcvt.f32.s32 %v1900
      %v1902 = vcvt.f32.s32 %v1896
      %v1903 = vshll.u32 %v1902, 16
      %v1904 = vadd.s32 %v1903, %v1901
      %v1905 = vsel %vm653, %v1829, 2147483647
      %vm1906 = vcmp.lt.s32.totalorder %v1828, %v1905
      %v1907 = vsel %vm1906, %v1828, %v1905
      %v1908 = vand.u32 %v1907, 65535
      %v1909 = vshra.s32 %v1907, 16
      %v1910 = vcvt.s32.f32 %v1908
      %v1911 = vcvt.s32.f32 %v1909
      %1912 = vmin.xlane.f32.xlu0 %v1911
      %v1913 = vpop.xlane.xlu0 %1912
      %vm1914 = vcmp.eq.f32.partialorder %v1911, %v1913
      %v1915 = vsel %vm1914, %v1910, inf
      %1916 = vmin.xlane.f32.xlu0 %v1915
      %v1917 = vpop.xlane.xlu0 %1916
      %v1918 = vcvt.f32.s32 %v1917
      %v1919 = vcvt.f32.s32 %v1913
      %v1920 = vshll.u32 %v1919, 16
      %v1921 = vadd.s32 %v1920, %v1918
      %v1922 = vsel %vm653, %v1831, 2147483647
      %vm1923 = vcmp.lt.s32.totalorder %v1830, %v1922
      %v1924 = vsel %vm1923, %v1830, %v1922
      %v1925 = vand.u32 %v1924, 65535
      %v1926 = vshra.s32 %v1924, 16
      %v1927 = vcvt.s32.f32 %v1925
      %v1928 = vcvt.s32.f32 %v1926
      %1929 = vmin.xlane.f32.xlu0 %v1928
      %v1930 = vpop.xlane.xlu0 %1929
      %vm1931 = vcmp.eq.f32.partialorder %v1928, %v1930
      %v1932 = vsel %vm1931, %v1927, inf
      %1933 = vmin.xlane.f32.xlu0 %v1932
      %v1934 = vpop.xlane.xlu0 %1933
      %v1935 = vcvt.f32.s32 %v1934
      %v1936 = vcvt.f32.s32 %v1930
      %v1937 = vshll.u32 %v1936, 16
      %v1938 = vadd.s32 %v1937, %v1935
      %v1939 = vsel %vm653, %v1833, 2147483647
      %vm1940 = vcmp.lt.s32.totalorder %v1832, %v1939
      %v1941 = vsel %vm1940, %v1832, %v1939
      %v1942 = vand.u32 %v1941, 65535
      %v1943 = vshra.s32 %v1941, 16
      %v1944 = vcvt.s32.f32 %v1942
      %v1945 = vcvt.s32.f32 %v1943
      %1946 = vmin.xlane.f32.xlu0 %v1945
      %v1947 = vpop.xlane.xlu0 %1946
      %vm1948 = vcmp.eq.f32.partialorder %v1945, %v1947
      %v1949 = vsel %vm1948, %v1944, inf
      %1950 = vmin.xlane.f32.xlu0 %v1949
      %v1951 = vpop.xlane.xlu0 %1950
      %v1952 = vcvt.f32.s32 %v1951
      %v1953 = vcvt.f32.s32 %v1947
      %v1954 = vshll.u32 %v1953, 16
      %v1955 = vadd.s32 %v1954, %v1952
      %v1956 = vsel %vm653, %v1835, 2147483647
      %vm1957 = vcmp.lt.s32.totalorder %v1834, %v1956
      %v1958 = vsel %vm1957, %v1834, %v1956
      %v1959 = vand.u32 %v1958, 65535
      %v1960 = vshra.s32 %v1958, 16
      %v1961 = vcvt.s32.f32 %v1959
      %v1962 = vcvt.s32.f32 %v1960
      %1963 = vmin.xlane.f32.xlu0 %v1962
      %v1964 = vpop.xlane.xlu0 %1963
      %vm1965 = vcmp.eq.f32.partialorder %v1962, %v1964
      %v1966 = vsel %vm1965, %v1961, inf
      %1967 = vmin.xlane.f32.xlu0 %v1966
      %v1968 = vpop.xlane.xlu0 %1967
      %v1969 = vcvt.f32.s32 %v1968
      %v1970 = vcvt.f32.s32 %v1964
      %v1971 = vshll.u32 %v1970, 16
      %v1972 = vadd.s32 %v1971, %v1969
      %v1973 = vsel %vm653, %v1837, 2147483647
      %vm1974 = vcmp.lt.s32.totalorder %v1836, %v1973
      %v1975 = vsel %vm1974, %v1836, %v1973
      %v1976 = vand.u32 %v1975, 65535
      %v1977 = vshra.s32 %v1975, 16
      %v1978 = vcvt.s32.f32 %v1976
      %v1979 = vcvt.s32.f32 %v1977
      %1980 = vmin.xlane.f32.xlu0 %v1979
      %v1981 = vpop.xlane.xlu0 %1980
      %vm1982 = vcmp.eq.f32.partialorder %v1979, %v1981
      %v1983 = vsel %vm1982, %v1978, inf
      %1984 = vmin.xlane.f32.xlu0 %v1983
      %v1985 = vpop.xlane.xlu0 %1984
      %v1986 = vcvt.f32.s32 %v1985
      %v1987 = vcvt.f32.s32 %v1981
      %v1988 = vshll.u32 %v1987, 16
      %v1989 = vadd.s32 %v1988, %v1986
      %v1990 = vsel %vm653, %v1839, 2147483647
      %vm1991 = vcmp.lt.s32.totalorder %v1838, %v1990
      %v1992 = vsel %vm1991, %v1838, %v1990
      %v1993 = vand.u32 %v1992, 65535
      %v1994 = vshra.s32 %v1992, 16
      %v1995 = vcvt.s32.f32 %v1993
      %v1996 = vcvt.s32.f32 %v1994
      %1997 = vmin.xlane.f32.xlu0 %v1996
      %v1998 = vpop.xlane.xlu0 %1997
      %vm1999 = vcmp.eq.f32.partialorder %v1996, %v1998
      %v2000 = vsel %vm1999, %v1995, inf
      %2001 = vmin.xlane.f32.xlu0 %v2000
      %v2002 = vpop.xlane.xlu0 %2001
      %v2003 = vcvt.f32.s32 %v2002
      %v2004 = vcvt.f32.s32 %v1998
      %v2005 = vshll.u32 %v2004, 16
      %v2006 = vadd.s32 %v2005, %v2003
      %v2007 = vsel %vm653, %v1841, 2147483647
      %vm2008 = vcmp.lt.s32.totalorder %v1840, %v2007
      %v2009 = vsel %vm2008, %v1840, %v2007
      %v2010 = vand.u32 %v2009, 65535
      %v2011 = vshra.s32 %v2009, 16
      %v2012 = vcvt.s32.f32 %v2010
      %v2013 = vcvt.s32.f32 %v2011
      %2014 = vmin.xlane.f32.xlu0 %v2013
      %v2015 = vpop.xlane.xlu0 %2014
      %vm2016 = vcmp.eq.f32.partialorder %v2013, %v2015
      %v2017 = vsel %vm2016, %v2012, inf
      %2018 = vmin.xlane.f32.xlu0 %v2017
      %v2019 = vpop.xlane.xlu0 %2018
      %v2020 = vcvt.f32.s32 %v2019
      %v2021 = vcvt.f32.s32 %v2015
      %v2022 = vshll.u32 %v2021, 16
      %v2023 = vadd.s32 %v2022, %v2020
      %v2024 = vsel %vm653, %v1843, 2147483647
      %vm2025 = vcmp.lt.s32.totalorder %v1842, %v2024
      %v2026 = vsel %vm2025, %v1842, %v2024
      %v2027 = vand.u32 %v2026, 65535
      %v2028 = vshra.s32 %v2026, 16
      %v2029 = vcvt.s32.f32 %v2027
      %v2030 = vcvt.s32.f32 %v2028
      %2031 = vmin.xlane.f32.xlu0 %v2030
      %v2032 = vpop.xlane.xlu0 %2031
      %vm2033 = vcmp.eq.f32.partialorder %v2030, %v2032
      %v2034 = vsel %vm2033, %v2029, inf
      %2035 = vmin.xlane.f32.xlu0 %v2034
      %v2036 = vpop.xlane.xlu0 %2035
      %v2037 = vcvt.f32.s32 %v2036
      %v2038 = vcvt.f32.s32 %v2032
      %v2039 = vshll.u32 %v2038, 16
      %v2040 = vadd.s32 %v2039, %v2037
      %v2041 = vsel %vm653, %v1845, 2147483647
      %vm2042 = vcmp.lt.s32.totalorder %v1844, %v2041
      %v2043 = vsel %vm2042, %v1844, %v2041
      %v2044 = vand.u32 %v2043, 65535
      %v2045 = vshra.s32 %v2043, 16
      %v2046 = vcvt.s32.f32 %v2044
      %v2047 = vcvt.s32.f32 %v2045
      %2048 = vmin.xlane.f32.xlu0 %v2047
      %v2049 = vpop.xlane.xlu0 %2048
      %vm2050 = vcmp.eq.f32.partialorder %v2047, %v2049
      %v2051 = vsel %vm2050, %v2046, inf
      %2052 = vmin.xlane.f32.xlu0 %v2051
      %v2053 = vpop.xlane.xlu0 %2052
      %v2054 = vcvt.f32.s32 %v2053
      %v2055 = vcvt.f32.s32 %v2049
      %v2056 = vshll.u32 %v2055, 16
      %v2057 = vadd.s32 %v2056, %v2054
      %v2058 = vsel %vm653, %v1847, 2147483647
      %vm2059 = vcmp.lt.s32.totalorder %v1846, %v2058
      %v2060 = vsel %vm2059, %v1846, %v2058
      %v2061 = vand.u32 %v2060, 65535
      %v2062 = vshra.s32 %v2060, 16
      %v2063 = vcvt.s32.f32 %v2061
      %v2064 = vcvt.s32.f32 %v2062
      %2065 = vmin.xlane.f32.xlu0 %v2064
      %v2066 = vpop.xlane.xlu0 %2065
      %vm2067 = vcmp.eq.f32.partialorder %v2064, %v2066
      %v2068 = vsel %vm2067, %v2063, inf
      %2069 = vmin.xlane.f32.xlu0 %v2068
      %v2070 = vpop.xlane.xlu0 %2069
      %v2071 = vcvt.f32.s32 %v2070
      %v2072 = vcvt.f32.s32 %v2066
      %v2073 = vshll.u32 %v2072, 16
      %v2074 = vadd.s32 %v2073, %v2071
      %v2075 = vsel %vm653, %v1849, 2147483647
      %vm2076 = vcmp.lt.s32.totalorder %v1848, %v2075
      %v2077 = vsel %vm2076, %v1848, %v2075
      %v2078 = vand.u32 %v2077, 65535
      %v2079 = vshra.s32 %v2077, 16
      %v2080 = vcvt.s32.f32 %v2078
      %v2081 = vcvt.s32.f32 %v2079
      %2082 = vmin.xlane.f32.xlu0 %v2081
      %v2083 = vpop.xlane.xlu0 %2082
      %vm2084 = vcmp.eq.f32.partialorder %v2081, %v2083
      %v2085 = vsel %vm2084, %v2080, inf
      %2086 = vmin.xlane.f32.xlu0 %v2085
      %v2087 = vpop.xlane.xlu0 %2086
      %v2088 = vcvt.f32.s32 %v2087
      %v2089 = vcvt.f32.s32 %v2083
      %v2090 = vshll.u32 %v2089, 16
      %v2091 = vadd.s32 %v2090, %v2088
      %v2092 = vsel %vm653, %v1851, 2147483647
      %vm2093 = vcmp.lt.s32.totalorder %v1850, %v2092
      %v2094 = vsel %vm2093, %v1850, %v2092
      %v2095 = vand.u32 %v2094, 65535
      %v2096 = vshra.s32 %v2094, 16
      %v2097 = vcvt.s32.f32 %v2095
      %v2098 = vcvt.s32.f32 %v2096
      %2099 = vmin.xlane.f32.xlu0 %v2098
      %v2100 = vpop.xlane.xlu0 %2099
      %vm2101 = vcmp.eq.f32.partialorder %v2098, %v2100
      %v2102 = vsel %vm2101, %v2097, inf
      %2103 = vmin.xlane.f32.xlu0 %v2102
      %v2104 = vpop.xlane.xlu0 %2103
      %v2105 = vcvt.f32.s32 %v2104
      %v2106 = vcvt.f32.s32 %v2100
      %v2107 = vshll.u32 %v2106, 16
      %v2108 = vadd.s32 %v2107, %v2105
      %v2109 = vsel %vm653, %v1853, 2147483647
      %vm2110 = vcmp.lt.s32.totalorder %v1852, %v2109
      %v2111 = vsel %vm2110, %v1852, %v2109
      %v2112 = vand.u32 %v2111, 65535
      %v2113 = vshra.s32 %v2111, 16
      %v2114 = vcvt.s32.f32 %v2112
      %v2115 = vcvt.s32.f32 %v2113
      %2116 = vmin.xlane.f32.xlu0 %v2115
      %v2117 = vpop.xlane.xlu0 %2116
      %vm2118 = vcmp.eq.f32.partialorder %v2115, %v2117
      %v2119 = vsel %vm2118, %v2114, inf
      %2120 = vmin.xlane.f32.xlu0 %v2119
      %v2121 = vpop.xlane.xlu0 %2120
      %v2122 = vcvt.f32.s32 %v2121
      %v2123 = vcvt.f32.s32 %v2117
      %v2124 = vshll.u32 %v2123, 16
      %v2125 = vadd.s32 %v2124, %v2122
      %vm2126 = vcmp.eq.s32.totalorder %v556, %v1870
      %vm2127 = vcmp.eq.s32.totalorder %v556, %v1887
      %vm2128 = vcmp.eq.s32.totalorder %v556, %v1904
      %vm2129 = vcmp.eq.s32.totalorder %v556, %v1921
      %vm2130 = vcmp.eq.s32.totalorder %v556, %v1938
      %vm2131 = vcmp.eq.s32.totalorder %v556, %v1955
      %vm2132 = vcmp.eq.s32.totalorder %v556, %v1972
      %vm2133 = vcmp.eq.s32.totalorder %v556, %v1989
      %vm2134 = vcmp.eq.s32.totalorder %v556, %v2006
      %vm2135 = vcmp.eq.s32.totalorder %v556, %v2023
      %vm2136 = vcmp.eq.s32.totalorder %v556, %v2040
      %vm2137 = vcmp.eq.s32.totalorder %v556, %v2057
      %vm2138 = vcmp.eq.s32.totalorder %v556, %v2074
      %vm2139 = vcmp.eq.s32.totalorder %v556, %v2091
      %vm2140 = vcmp.eq.s32.totalorder %v556, %v2108
      %vm2141 = vcmp.eq.s32.totalorder %v556, %v2125
      %v2142 = vsel %vm2126, inf, %v1742
      %v2143 = vsel %vm2127, inf, %v1743
      %v2144 = vsel %vm2128, inf, %v1744
      %v2145 = vsel %vm2129, inf, %v1745
      %v2146 = vsel %vm2130, inf, %v1746
      %v2147 = vsel %vm2131, inf, %v1747
      %v2148 = vsel %vm2132, inf, %v1748
      %v2149 = vsel %vm2133, inf, %v1749
      %v2150 = vsel %vm2134, inf, %v1750
      %v2151 = vsel %vm2135, inf, %v1751
      %v2152 = vsel %vm2136, inf, %v1752
      %v2153 = vsel %vm2137, inf, %v1753
      %v2154 = vsel %vm2138, inf, %v1754
      %v2155 = vsel %vm2139, inf, %v1755
      %v2156 = vsel %vm2140, inf, %v1756
      %v2157 = vsel %vm2141, inf, %v1757
      %2158 = vmin.xlane.f32.xlu0 %v2142
      %v2159 = vpop.xlane.xlu0 %2158
      %2160 = vmin.xlane.f32.xlu0 %v2143
      %v2161 = vpop.xlane.xlu0 %2160
      %2162 = vmin.xlane.f32.xlu0 %v2144
      %v2163 = vpop.xlane.xlu0 %2162
      %2164 = vmin.xlane.f32.xlu0 %v2145
      %v2165 = vpop.xlane.xlu0 %2164
      %2166 = vmin.xlane.f32.xlu0 %v2146
      %v2167 = vpop.xlane.xlu0 %2166
      %2168 = vmin.xlane.f32.xlu0 %v2147
      %v2169 = vpop.xlane.xlu0 %2168
      %2170 = vmin.xlane.f32.xlu0 %v2148
      %v2171 = vpop.xlane.xlu0 %2170
      %2172 = vmin.xlane.f32.xlu0 %v2149
      %v2173 = vpop.xlane.xlu0 %2172
      %2174 = vmin.xlane.f32.xlu0 %v2150
      %v2175 = vpop.xlane.xlu0 %2174
      %2176 = vmin.xlane.f32.xlu0 %v2151
      %v2177 = vpop.xlane.xlu0 %2176
      %2178 = vmin.xlane.f32.xlu0 %v2152
      %v2179 = vpop.xlane.xlu0 %2178
      %2180 = vmin.xlane.f32.xlu0 %v2153
      %v2181 = vpop.xlane.xlu0 %2180
      %2182 = vmin.xlane.f32.xlu0 %v2154
      %v2183 = vpop.xlane.xlu0 %2182
      %2184 = vmin.xlane.f32.xlu0 %v2155
      %v2185 = vpop.xlane.xlu0 %2184
      %2186 = vmin.xlane.f32.xlu0 %v2156
      %v2187 = vpop.xlane.xlu0 %2186
      %2188 = vmin.xlane.f32.xlu0 %v2157
      %v2189 = vpop.xlane.xlu0 %2188
      %vm2190 = vcmp.le.f32.partialorder %v2142, %v2159
      %vm2191 = vcmp.le.f32.partialorder inf, %v2159
      %vm2192 = vcmp.le.f32.partialorder %v2143, %v2161
      %vm2193 = vcmp.le.f32.partialorder inf, %v2161
      %vm2194 = vcmp.le.f32.partialorder %v2144, %v2163
      %vm2195 = vcmp.le.f32.partialorder inf, %v2163
      %vm2196 = vcmp.le.f32.partialorder %v2145, %v2165
      %vm2197 = vcmp.le.f32.partialorder inf, %v2165
      %vm2198 = vcmp.le.f32.partialorder %v2146, %v2167
      %vm2199 = vcmp.le.f32.partialorder inf, %v2167
      %vm2200 = vcmp.le.f32.partialorder %v2147, %v2169
      %vm2201 = vcmp.le.f32.partialorder inf, %v2169
      %vm2202 = vcmp.le.f32.partialorder %v2148, %v2171
      %vm2203 = vcmp.le.f32.partialorder inf, %v2171
      %vm2204 = vcmp.le.f32.partialorder %v2149, %v2173
      %vm2205 = vcmp.le.f32.partialorder inf, %v2173
      %vm2206 = vcmp.le.f32.partialorder %v2150, %v2175
      %vm2207 = vcmp.le.f32.partialorder inf, %v2175
      %vm2208 = vcmp.le.f32.partialorder %v2151, %v2177
      %vm2209 = vcmp.le.f32.partialorder inf, %v2177
      %vm2210 = vcmp.le.f32.partialorder %v2152, %v2179
      %vm2211 = vcmp.le.f32.partialorder inf, %v2179
      %vm2212 = vcmp.le.f32.partialorder %v2153, %v2181
      %vm2213 = vcmp.le.f32.partialorder inf, %v2181
      %vm2214 = vcmp.le.f32.partialorder %v2154, %v2183
      %vm2215 = vcmp.le.f32.partialorder inf, %v2183
      %vm2216 = vcmp.le.f32.partialorder %v2155, %v2185
      %vm2217 = vcmp.le.f32.partialorder inf, %v2185
      %vm2218 = vcmp.le.f32.partialorder %v2156, %v2187
      %vm2219 = vcmp.le.f32.partialorder inf, %v2187
      %vm2220 = vcmp.le.f32.partialorder %v2157, %v2189
      %vm2221 = vcmp.le.f32.partialorder inf, %v2189
      %v2222 = vsel %vm2190, %v556, 1073741824
      %v2223 = vsel %vm2191, 0, 1073741824
      %v2224 = vsel %vm2192, %v556, 1073741824
      %v2225 = vsel %vm2193, 0, 1073741824
      %v2226 = vsel %vm2194, %v556, 1073741824
      %v2227 = vsel %vm2195, 0, 1073741824
      %v2228 = vsel %vm2196, %v556, 1073741824
      %v2229 = vsel %vm2197, 0, 1073741824
      %v2230 = vsel %vm2198, %v556, 1073741824
      %v2231 = vsel %vm2199, 0, 1073741824
      %v2232 = vsel %vm2200, %v556, 1073741824
      %v2233 = vsel %vm2201, 0, 1073741824
      %v2234 = vsel %vm2202, %v556, 1073741824
      %v2235 = vsel %vm2203, 0, 1073741824
      %v2236 = vsel %vm2204, %v556, 1073741824
      %v2237 = vsel %vm2205, 0, 1073741824
      %v2238 = vsel %vm2206, %v556, 1073741824
      %v2239 = vsel %vm2207, 0, 1073741824
      %v2240 = vsel %vm2208, %v556, 1073741824
      %v2241 = vsel %vm2209, 0, 1073741824
      %v2242 = vsel %vm2210, %v556, 1073741824
      %v2243 = vsel %vm2211, 0, 1073741824
      %v2244 = vsel %vm2212, %v556, 1073741824
      %v2245 = vsel %vm2213, 0, 1073741824
      %v2246 = vsel %vm2214, %v556, 1073741824
      %v2247 = vsel %vm2215, 0, 1073741824
      %v2248 = vsel %vm2216, %v556, 1073741824
      %v2249 = vsel %vm2217, 0, 1073741824
      %v2250 = vsel %vm2218, %v556, 1073741824
      %v2251 = vsel %vm2219, 0, 1073741824
      %v2252 = vsel %vm2220, %v556, 1073741824
      %v2253 = vsel %vm2221, 0, 1073741824
      %v2254 = vsel %vm653, %v2223, 2147483647
      %vm2255 = vcmp.lt.s32.totalorder %v2222, %v2254
      %v2256 = vsel %vm2255, %v2222, %v2254
      %v2257 = vand.u32 %v2256, 65535
      %v2258 = vshra.s32 %v2256, 16
      %v2259 = vcvt.s32.f32 %v2257
      %v2260 = vcvt.s32.f32 %v2258
      %2261 = vmin.xlane.f32.xlu0 %v2260
      %v2262 = vpop.xlane.xlu0 %2261
      %vm2263 = vcmp.eq.f32.partialorder %v2260, %v2262
      %v2264 = vsel %vm2263, %v2259, inf
      %2265 = vmin.xlane.f32.xlu0 %v2264
      %v2266 = vpop.xlane.xlu0 %2265
      %v2267 = vcvt.f32.s32 %v2266
      %v2268 = vcvt.f32.s32 %v2262
      %v2269 = vshll.u32 %v2268, 16
      %v2270 = vadd.s32 %v2269, %v2267
      %v2271 = vsel %vm653, %v2225, 2147483647
      %vm2272 = vcmp.lt.s32.totalorder %v2224, %v2271
      %v2273 = vsel %vm2272, %v2224, %v2271
      %v2274 = vand.u32 %v2273, 65535
      %v2275 = vshra.s32 %v2273, 16
      %v2276 = vcvt.s32.f32 %v2274
      %v2277 = vcvt.s32.f32 %v2275
      %2278 = vmin.xlane.f32.xlu0 %v2277
      %v2279 = vpop.xlane.xlu0 %2278
      %vm2280 = vcmp.eq.f32.partialorder %v2277, %v2279
      %v2281 = vsel %vm2280, %v2276, inf
      %2282 = vmin.xlane.f32.xlu0 %v2281
      %v2283 = vpop.xlane.xlu0 %2282
      %v2284 = vcvt.f32.s32 %v2283
      %v2285 = vcvt.f32.s32 %v2279
      %v2286 = vshll.u32 %v2285, 16
      %v2287 = vadd.s32 %v2286, %v2284
      %v2288 = vsel %vm653, %v2227, 2147483647
      %vm2289 = vcmp.lt.s32.totalorder %v2226, %v2288
      %v2290 = vsel %vm2289, %v2226, %v2288
      %v2291 = vand.u32 %v2290, 65535
      %v2292 = vshra.s32 %v2290, 16
      %v2293 = vcvt.s32.f32 %v2291
      %v2294 = vcvt.s32.f32 %v2292
      %2295 = vmin.xlane.f32.xlu0 %v2294
      %v2296 = vpop.xlane.xlu0 %2295
      %vm2297 = vcmp.eq.f32.partialorder %v2294, %v2296
      %v2298 = vsel %vm2297, %v2293, inf
      %2299 = vmin.xlane.f32.xlu0 %v2298
      %v2300 = vpop.xlane.xlu0 %2299
      %v2301 = vcvt.f32.s32 %v2300
      %v2302 = vcvt.f32.s32 %v2296
      %v2303 = vshll.u32 %v2302, 16
      %v2304 = vadd.s32 %v2303, %v2301
      %v2305 = vsel %vm653, %v2229, 2147483647
      %vm2306 = vcmp.lt.s32.totalorder %v2228, %v2305
      %v2307 = vsel %vm2306, %v2228, %v2305
      %v2308 = vand.u32 %v2307, 65535
      %v2309 = vshra.s32 %v2307, 16
      %v2310 = vcvt.s32.f32 %v2308
      %v2311 = vcvt.s32.f32 %v2309
      %2312 = vmin.xlane.f32.xlu0 %v2311
      %v2313 = vpop.xlane.xlu0 %2312
      %vm2314 = vcmp.eq.f32.partialorder %v2311, %v2313
      %v2315 = vsel %vm2314, %v2310, inf
      %2316 = vmin.xlane.f32.xlu0 %v2315
      %v2317 = vpop.xlane.xlu0 %2316
      %v2318 = vcvt.f32.s32 %v2317
      %v2319 = vcvt.f32.s32 %v2313
      %v2320 = vshll.u32 %v2319, 16
      %v2321 = vadd.s32 %v2320, %v2318
      %v2322 = vsel %vm653, %v2231, 2147483647
      %vm2323 = vcmp.lt.s32.totalorder %v2230, %v2322
      %v2324 = vsel %vm2323, %v2230, %v2322
      %v2325 = vand.u32 %v2324, 65535
      %v2326 = vshra.s32 %v2324, 16
      %v2327 = vcvt.s32.f32 %v2325
      %v2328 = vcvt.s32.f32 %v2326
      %2329 = vmin.xlane.f32.xlu0 %v2328
      %v2330 = vpop.xlane.xlu0 %2329
      %vm2331 = vcmp.eq.f32.partialorder %v2328, %v2330
      %v2332 = vsel %vm2331, %v2327, inf
      %2333 = vmin.xlane.f32.xlu0 %v2332
      %v2334 = vpop.xlane.xlu0 %2333
      %v2335 = vcvt.f32.s32 %v2334
      %v2336 = vcvt.f32.s32 %v2330
      %v2337 = vshll.u32 %v2336, 16
      %v2338 = vadd.s32 %v2337, %v2335
      %v2339 = vsel %vm653, %v2233, 2147483647
      %vm2340 = vcmp.lt.s32.totalorder %v2232, %v2339
      %v2341 = vsel %vm2340, %v2232, %v2339
      %v2342 = vand.u32 %v2341, 65535
      %v2343 = vshra.s32 %v2341, 16
      %v2344 = vcvt.s32.f32 %v2342
      %v2345 = vcvt.s32.f32 %v2343
      %2346 = vmin.xlane.f32.xlu0 %v2345
      %v2347 = vpop.xlane.xlu0 %2346
      %vm2348 = vcmp.eq.f32.partialorder %v2345, %v2347
      %v2349 = vsel %vm2348, %v2344, inf
      %2350 = vmin.xlane.f32.xlu0 %v2349
      %v2351 = vpop.xlane.xlu0 %2350
      %v2352 = vcvt.f32.s32 %v2351
      %v2353 = vcvt.f32.s32 %v2347
      %v2354 = vshll.u32 %v2353, 16
      %v2355 = vadd.s32 %v2354, %v2352
      %v2356 = vsel %vm653, %v2235, 2147483647
      %vm2357 = vcmp.lt.s32.totalorder %v2234, %v2356
      %v2358 = vsel %vm2357, %v2234, %v2356
      %v2359 = vand.u32 %v2358, 65535
      %v2360 = vshra.s32 %v2358, 16
      %v2361 = vcvt.s32.f32 %v2359
      %v2362 = vcvt.s32.f32 %v2360
      %2363 = vmin.xlane.f32.xlu0 %v2362
      %v2364 = vpop.xlane.xlu0 %2363
      %vm2365 = vcmp.eq.f32.partialorder %v2362, %v2364
      %v2366 = vsel %vm2365, %v2361, inf
      %2367 = vmin.xlane.f32.xlu0 %v2366
      %v2368 = vpop.xlane.xlu0 %2367
      %v2369 = vcvt.f32.s32 %v2368
      %v2370 = vcvt.f32.s32 %v2364
      %v2371 = vshll.u32 %v2370, 16
      %v2372 = vadd.s32 %v2371, %v2369
      %v2373 = vsel %vm653, %v2237, 2147483647
      %vm2374 = vcmp.lt.s32.totalorder %v2236, %v2373
      %v2375 = vsel %vm2374, %v2236, %v2373
      %v2376 = vand.u32 %v2375, 65535
      %v2377 = vshra.s32 %v2375, 16
      %v2378 = vcvt.s32.f32 %v2376
      %v2379 = vcvt.s32.f32 %v2377
      %2380 = vmin.xlane.f32.xlu0 %v2379
      %v2381 = vpop.xlane.xlu0 %2380
      %vm2382 = vcmp.eq.f32.partialorder %v2379, %v2381
      %v2383 = vsel %vm2382, %v2378, inf
      %2384 = vmin.xlane.f32.xlu0 %v2383
      %v2385 = vpop.xlane.xlu0 %2384
      %v2386 = vcvt.f32.s32 %v2385
      %v2387 = vcvt.f32.s32 %v2381
      %v2388 = vshll.u32 %v2387, 16
      %v2389 = vadd.s32 %v2388, %v2386
      %v2390 = vsel %vm653, %v2239, 2147483647
      %vm2391 = vcmp.lt.s32.totalorder %v2238, %v2390
      %v2392 = vsel %vm2391, %v2238, %v2390
      %v2393 = vand.u32 %v2392, 65535
      %v2394 = vshra.s32 %v2392, 16
      %v2395 = vcvt.s32.f32 %v2393
      %v2396 = vcvt.s32.f32 %v2394
      %2397 = vmin.xlane.f32.xlu0 %v2396
      %v2398 = vpop.xlane.xlu0 %2397
      %vm2399 = vcmp.eq.f32.partialorder %v2396, %v2398
      %v2400 = vsel %vm2399, %v2395, inf
      %2401 = vmin.xlane.f32.xlu0 %v2400
      %v2402 = vpop.xlane.xlu0 %2401
      %v2403 = vcvt.f32.s32 %v2402
      %v2404 = vcvt.f32.s32 %v2398
      %v2405 = vshll.u32 %v2404, 16
      %v2406 = vadd.s32 %v2405, %v2403
      %v2407 = vsel %vm653, %v2241, 2147483647
      %vm2408 = vcmp.lt.s32.totalorder %v2240, %v2407
      %v2409 = vsel %vm2408, %v2240, %v2407
      %v2410 = vand.u32 %v2409, 65535
      %v2411 = vshra.s32 %v2409, 16
      %v2412 = vcvt.s32.f32 %v2410
      %v2413 = vcvt.s32.f32 %v2411
      %2414 = vmin.xlane.f32.xlu0 %v2413
      %v2415 = vpop.xlane.xlu0 %2414
      %vm2416 = vcmp.eq.f32.partialorder %v2413, %v2415
      %v2417 = vsel %vm2416, %v2412, inf
      %2418 = vmin.xlane.f32.xlu0 %v2417
      %v2419 = vpop.xlane.xlu0 %2418
      %v2420 = vcvt.f32.s32 %v2419
      %v2421 = vcvt.f32.s32 %v2415
      %v2422 = vshll.u32 %v2421, 16
      %v2423 = vadd.s32 %v2422, %v2420
      %v2424 = vsel %vm653, %v2243, 2147483647
      %vm2425 = vcmp.lt.s32.totalorder %v2242, %v2424
      %v2426 = vsel %vm2425, %v2242, %v2424
      %v2427 = vand.u32 %v2426, 65535
      %v2428 = vshra.s32 %v2426, 16
      %v2429 = vcvt.s32.f32 %v2427
      %v2430 = vcvt.s32.f32 %v2428
      %2431 = vmin.xlane.f32.xlu0 %v2430
      %v2432 = vpop.xlane.xlu0 %2431
      %vm2433 = vcmp.eq.f32.partialorder %v2430, %v2432
      %v2434 = vsel %vm2433, %v2429, inf
      %2435 = vmin.xlane.f32.xlu0 %v2434
      %v2436 = vpop.xlane.xlu0 %2435
      %v2437 = vcvt.f32.s32 %v2436
      %v2438 = vcvt.f32.s32 %v2432
      %v2439 = vshll.u32 %v2438, 16
      %v2440 = vadd.s32 %v2439, %v2437
      %v2441 = vsel %vm653, %v2245, 2147483647
      %vm2442 = vcmp.lt.s32.totalorder %v2244, %v2441
      %v2443 = vsel %vm2442, %v2244, %v2441
      %v2444 = vand.u32 %v2443, 65535
      %v2445 = vshra.s32 %v2443, 16
      %v2446 = vcvt.s32.f32 %v2444
      %v2447 = vcvt.s32.f32 %v2445
      %2448 = vmin.xlane.f32.xlu0 %v2447
      %v2449 = vpop.xlane.xlu0 %2448
      %vm2450 = vcmp.eq.f32.partialorder %v2447, %v2449
      %v2451 = vsel %vm2450, %v2446, inf
      %2452 = vmin.xlane.f32.xlu0 %v2451
      %v2453 = vpop.xlane.xlu0 %2452
      %v2454 = vcvt.f32.s32 %v2453
      %v2455 = vcvt.f32.s32 %v2449
      %v2456 = vshll.u32 %v2455, 16
      %v2457 = vadd.s32 %v2456, %v2454
      %v2458 = vsel %vm653, %v2247, 2147483647
      %vm2459 = vcmp.lt.s32.totalorder %v2246, %v2458
      %v2460 = vsel %vm2459, %v2246, %v2458
      %v2461 = vand.u32 %v2460, 65535
      %v2462 = vshra.s32 %v2460, 16
      %v2463 = vcvt.s32.f32 %v2461
      %v2464 = vcvt.s32.f32 %v2462
      %2465 = vmin.xlane.f32.xlu0 %v2464
      %v2466 = vpop.xlane.xlu0 %2465
      %vm2467 = vcmp.eq.f32.partialorder %v2464, %v2466
      %v2468 = vsel %vm2467, %v2463, inf
      %2469 = vmin.xlane.f32.xlu0 %v2468
      %v2470 = vpop.xlane.xlu0 %2469
      %v2471 = vcvt.f32.s32 %v2470
      %v2472 = vcvt.f32.s32 %v2466
      %v2473 = vshll.u32 %v2472, 16
      %v2474 = vadd.s32 %v2473, %v2471
      %v2475 = vsel %vm653, %v2249, 2147483647
      %vm2476 = vcmp.lt.s32.totalorder %v2248, %v2475
      %v2477 = vsel %vm2476, %v2248, %v2475
      %v2478 = vand.u32 %v2477, 65535
      %v2479 = vshra.s32 %v2477, 16
      %v2480 = vcvt.s32.f32 %v2478
      %v2481 = vcvt.s32.f32 %v2479
      %2482 = vmin.xlane.f32.xlu0 %v2481
      %v2483 = vpop.xlane.xlu0 %2482
      %vm2484 = vcmp.eq.f32.partialorder %v2481, %v2483
      %v2485 = vsel %vm2484, %v2480, inf
      %2486 = vmin.xlane.f32.xlu0 %v2485
      %v2487 = vpop.xlane.xlu0 %2486
      %v2488 = vcvt.f32.s32 %v2487
      %v2489 = vcvt.f32.s32 %v2483
      %v2490 = vshll.u32 %v2489, 16
      %v2491 = vadd.s32 %v2490, %v2488
      %v2492 = vsel %vm653, %v2251, 2147483647
      %vm2493 = vcmp.lt.s32.totalorder %v2250, %v2492
      %v2494 = vsel %vm2493, %v2250, %v2492
      %v2495 = vand.u32 %v2494, 65535
      %v2496 = vshra.s32 %v2494, 16
      %v2497 = vcvt.s32.f32 %v2495
      %v2498 = vcvt.s32.f32 %v2496
      %2499 = vmin.xlane.f32.xlu0 %v2498
      %v2500 = vpop.xlane.xlu0 %2499
      %vm2501 = vcmp.eq.f32.partialorder %v2498, %v2500
      %v2502 = vsel %vm2501, %v2497, inf
      %2503 = vmin.xlane.f32.xlu0 %v2502
      %v2504 = vpop.xlane.xlu0 %2503
      %v2505 = vcvt.f32.s32 %v2504
      %v2506 = vcvt.f32.s32 %v2500
      %v2507 = vshll.u32 %v2506, 16
      %v2508 = vadd.s32 %v2507, %v2505
      %v2509 = vsel %vm653, %v2253, 2147483647
      %vm2510 = vcmp.lt.s32.totalorder %v2252, %v2509
      %v2511 = vsel %vm2510, %v2252, %v2509
      %v2512 = vand.u32 %v2511, 65535
      %v2513 = vshra.s32 %v2511, 16
      %v2514 = vcvt.s32.f32 %v2512
      %v2515 = vcvt.s32.f32 %v2513
      %2516 = vmin.xlane.f32.xlu0 %v2515
      %v2517 = vpop.xlane.xlu0 %2516
      %vm2518 = vcmp.eq.f32.partialorder %v2515, %v2517
      %v2519 = vsel %vm2518, %v2514, inf
      %2520 = vmin.xlane.f32.xlu0 %v2519
      %v2521 = vpop.xlane.xlu0 %2520
      %v2522 = vcvt.f32.s32 %v2521
      %v2523 = vcvt.f32.s32 %v2517
      %v2524 = vshll.u32 %v2523, 16
      %v2525 = vadd.s32 %v2524, %v2522
      %vm2526 = vcmask 7168
      %v2527 = vsel %vm2526, %v558, %v959
      %v2528 = vsel %vm2526, %v560, %v961
      %v2529 = vsel %vm2526, %v562, %v963
      %v2530 = vsel %vm2526, %v564, %v965
      %v2531 = vsel %vm2526, %v566, %v967
      %v2532 = vsel %vm2526, %v568, %v969
      %v2533 = vsel %vm2526, %v570, %v971
      %v2534 = vsel %vm2526, %v572, %v973
      %v2535 = vsel %vm2526, %v574, %v975
      %v2536 = vsel %vm2526, %v576, %v977
      %v2537 = vsel %vm2526, %v578, %v979
      %v2538 = vsel %vm2526, %v580, %v981
      %v2539 = vsel %vm2526, %v582, %v983
      %v2540 = vsel %vm2526, %v584, %v985
      %v2541 = vsel %vm2526, %v586, %v987
      %v2542 = vsel %vm2526, %v588, %v989
      %vm2543 = vcmask 15360
      %v2544 = vsel %vm2543, %v2527, %v1359
      %v2545 = vsel %vm2543, %v2528, %v1361
      %v2546 = vsel %vm2543, %v2529, %v1363
      %v2547 = vsel %vm2543, %v2530, %v1365
      %v2548 = vsel %vm2543, %v2531, %v1367
      %v2549 = vsel %vm2543, %v2532, %v1369
      %v2550 = vsel %vm2543, %v2533, %v1371
      %v2551 = vsel %vm2543, %v2534, %v1373
      %v2552 = vsel %vm2543, %v2535, %v1375
      %v2553 = vsel %vm2543, %v2536, %v1377
      %v2554 = vsel %vm2543, %v2537, %v1379
      %v2555 = vsel %vm2543, %v2538, %v1381
      %v2556 = vsel %vm2543, %v2539, %v1383
      %v2557 = vsel %vm2543, %v2540, %v1385
      %v2558 = vsel %vm2543, %v2541, %v1387
      %v2559 = vsel %vm2543, %v2542, %v1389
      %vm2560 = vcmask 23552
      %v2561 = vsel %vm2560, %v2544, %v1759
      %v2562 = vsel %vm2560, %v2545, %v1761
      %v2563 = vsel %vm2560, %v2546, %v1763
      %v2564 = vsel %vm2560, %v2547, %v1765
      %v2565 = vsel %vm2560, %v2548, %v1767
      %v2566 = vsel %vm2560, %v2549, %v1769
      %v2567 = vsel %vm2560, %v2550, %v1771
      %v2568 = vsel %vm2560, %v2551, %v1773
      %v2569 = vsel %vm2560, %v2552, %v1775
      %v2570 = vsel %vm2560, %v2553, %v1777
      %v2571 = vsel %vm2560, %v2554, %v1779
      %v2572 = vsel %vm2560, %v2555, %v1781
      %v2573 = vsel %vm2560, %v2556, %v1783
      %v2574 = vsel %vm2560, %v2557, %v1785
      %v2575 = vsel %vm2560, %v2558, %v1787
      %v2576 = vsel %vm2560, %v2559, %v1789
      %vm2577 = vcmask 31744
      %v2578 = vsel %vm2577, %v2561, %v2159
      %v2579 = vsel %vm2577, %v2562, %v2161
      %v2580 = vsel %vm2577, %v2563, %v2163
      %v2581 = vsel %vm2577, %v2564, %v2165
      %v2582 = vsel %vm2577, %v2565, %v2167
      %v2583 = vsel %vm2577, %v2566, %v2169
      %v2584 = vsel %vm2577, %v2567, %v2171
      %v2585 = vsel %vm2577, %v2568, %v2173
      %v2586 = vsel %vm2577, %v2569, %v2175
      %v2587 = vsel %vm2577, %v2570, %v2177
      %v2588 = vsel %vm2577, %v2571, %v2179
      %v2589 = vsel %vm2577, %v2572, %v2181
      %v2590 = vsel %vm2577, %v2573, %v2183
      %v2591 = vsel %vm2577, %v2574, %v2185
      %v2592 = vsel %vm2577, %v2575, %v2187
      %v2593 = vsel %vm2577, %v2576, %v2189
      %v2594 = vsel %vm2526, %v670, %v1070
      %v2595 = vsel %vm2526, %v687, %v1087
      %v2596 = vsel %vm2526, %v704, %v1104
      %v2597 = vsel %vm2526, %v721, %v1121
      %v2598 = vsel %vm2526, %v738, %v1138
      %v2599 = vsel %vm2526, %v755, %v1155
      %v2600 = vsel %vm2526, %v772, %v1172
      %v2601 = vsel %vm2526, %v789, %v1189
      %v2602 = vsel %vm2526, %v806, %v1206
      %v2603 = vsel %vm2526, %v823, %v1223
      %v2604 = vsel %vm2526, %v840, %v1240
      %v2605 = vsel %vm2526, %v857, %v1257
      %v2606 = vsel %vm2526, %v874, %v1274
      %v2607 = vsel %vm2526, %v891, %v1291
      %v2608 = vsel %vm2526, %v908, %v1308
      %v2609 = vsel %vm2526, %v925, %v1325
      %v2610 = vsel %vm2543, %v2594, %v1470
      %v2611 = vsel %vm2543, %v2595, %v1487
      %v2612 = vsel %vm2543, %v2596, %v1504
      %v2613 = vsel %vm2543, %v2597, %v1521
      %v2614 = vsel %vm2543, %v2598, %v1538
      %v2615 = vsel %vm2543, %v2599, %v1555
      %v2616 = vsel %vm2543, %v2600, %v1572
      %v2617 = vsel %vm2543, %v2601, %v1589
      %v2618 = vsel %vm2543, %v2602, %v1606
      %v2619 = vsel %vm2543, %v2603, %v1623
      %v2620 = vsel %vm2543, %v2604, %v1640
      %v2621 = vsel %vm2543, %v2605, %v1657
      %v2622 = vsel %vm2543, %v2606, %v1674
      %v2623 = vsel %vm2543, %v2607, %v1691
      %v2624 = vsel %vm2543, %v2608, %v1708
      %v2625 = vsel %vm2543, %v2609, %v1725
      %v2626 = vsel %vm2560, %v2610, %v1870
      %v2627 = vsel %vm2560, %v2611, %v1887
      %v2628 = vsel %vm2560, %v2612, %v1904
      %v2629 = vsel %vm2560, %v2613, %v1921
      %v2630 = vsel %vm2560, %v2614, %v1938
      %v2631 = vsel %vm2560, %v2615, %v1955
      %v2632 = vsel %vm2560, %v2616, %v1972
      %v2633 = vsel %vm2560, %v2617, %v1989
      %v2634 = vsel %vm2560, %v2618, %v2006
      %v2635 = vsel %vm2560, %v2619, %v2023
      %v2636 = vsel %vm2560, %v2620, %v2040
      %v2637 = vsel %vm2560, %v2621, %v2057
      %v2638 = vsel %vm2560, %v2622, %v2074
      %v2639 = vsel %vm2560, %v2623, %v2091
      %v2640 = vsel %vm2560, %v2624, %v2108
      %v2641 = vsel %vm2560, %v2625, %v2125
      %v2642 = vsel %vm2577, %v2626, %v2270
      %v2643 = vsel %vm2577, %v2627, %v2287
      %v2644 = vsel %vm2577, %v2628, %v2304
      %v2645 = vsel %vm2577, %v2629, %v2321
      %v2646 = vsel %vm2577, %v2630, %v2338
      %v2647 = vsel %vm2577, %v2631, %v2355
      %v2648 = vsel %vm2577, %v2632, %v2372
      %v2649 = vsel %vm2577, %v2633, %v2389
      %v2650 = vsel %vm2577, %v2634, %v2406
      %v2651 = vsel %vm2577, %v2635, %v2423
      %v2652 = vsel %vm2577, %v2636, %v2440
      %v2653 = vsel %vm2577, %v2637, %v2457
      %v2654 = vsel %vm2577, %v2638, %v2474
      %v2655 = vsel %vm2577, %v2639, %v2491
      %v2656 = vsel %vm2577, %v2640, %v2508
      %v2657 = vsel %vm2577, %v2641, %v2525
      %2658 = vst.msk [vmem:[%s180] sm:$0xff] %vm653, %v2578
      %2659 = vst.msk [vmem:[%s180 + $0x8] sm:$0xff] %vm653, %v2579
      %2660 = vst.msk [vmem:[%s180 + $0x10] sm:$0xff] %vm653, %v2580
      %2661 = vst.msk [vmem:[%s180 + $0x18] sm:$0xff] %vm653, %v2581
      %2662 = vst.msk [vmem:[%s180 + $0x20] sm:$0xff] %vm653, %v2582
      %2663 = vst.msk [vmem:[%s180 + $0x28] sm:$0xff] %vm653, %v2583
      %2664 = vst.msk [vmem:[%s180 + $0x30] sm:$0xff] %vm653, %v2584
      %2665 = vst.msk [vmem:[%s180 + $0x38] sm:$0xff] %vm653, %v2585
      %2666 = vst.msk [vmem:[%s180 + $0x40] sm:$0xff] %vm653, %v2586
      %2667 = vst.msk [vmem:[%s180 + $0x48] sm:$0xff] %vm653, %v2587
      %2668 = vst.msk [vmem:[%s180 + $0x50] sm:$0xff] %vm653, %v2588
      %2669 = vst.msk [vmem:[%s180 + $0x58] sm:$0xff] %vm653, %v2589
      %2670 = vst.msk [vmem:[%s180 + $0x60] sm:$0xff] %vm653, %v2590
      %2671 = vst.msk [vmem:[%s180 + $0x68] sm:$0xff] %vm653, %v2591
      %2672 = vst.msk [vmem:[%s180 + $0x70] sm:$0xff] %vm653, %v2592
      %2673 = vst.msk [vmem:[%s180 + $0x78] sm:$0xff] %vm653, %v2593
      %2674 = vst.msk [vmem:[%s186] sm:$0xff] %vm653, %v2642
      %2675 = vst.msk [vmem:[%s186 + $0x8] sm:$0xff] %vm653, %v2643
      %2676 = vst.msk [vmem:[%s186 + $0x10] sm:$0xff] %vm653, %v2644
      %2677 = vst.msk [vmem:[%s186 + $0x18] sm:$0xff] %vm653, %v2645
      %2678 = vst.msk [vmem:[%s186 + $0x20] sm:$0xff] %vm653, %v2646
      %2679 = vst.msk [vmem:[%s186 + $0x28] sm:$0xff] %vm653, %v2647
      %2680 = vst.msk [vmem:[%s186 + $0x30] sm:$0xff] %vm653, %v2648
      %2681 = vst.msk [vmem:[%s186 + $0x38] sm:$0xff] %vm653, %v2649
      %2682 = vst.msk [vmem:[%s186 + $0x40] sm:$0xff] %vm653, %v2650
      %2683 = vst.msk [vmem:[%s186 + $0x48] sm:$0xff] %vm653, %v2651
      %2684 = vst.msk [vmem:[%s186 + $0x50] sm:$0xff] %vm653, %v2652
      %2685 = vst.msk [vmem:[%s186 + $0x58] sm:$0xff] %vm653, %v2653
      %2686 = vst.msk [vmem:[%s186 + $0x60] sm:$0xff] %vm653, %v2654
      %2687 = vst.msk [vmem:[%s186 + $0x68] sm:$0xff] %vm653, %v2655
      %2688 = vst.msk [vmem:[%s186 + $0x70] sm:$0xff] %vm653, %v2656
      %2689 = vst.msk [vmem:[%s186 + $0x78] sm:$0xff] %vm653, %v2657
      %s2690 = smul.u32 16, %s15
      %p2691 = scmp.lt.s32.totalorder %s2690, 63
      %s2692 = scalar_select %p2691, %s2690, 63
      %s2693 = smul.addr %s2692, 8
      %s2694 = scalar_lea.vmem %s2, %s2693
      %s2695 = smul.u32 16, %s15
      %p2696 = scmp.lt.s32.totalorder %s2695, 63
      %s2697 = scalar_select %p2696, %s2695, 63
      %s2698 = smul.addr %s2697, 8
      %s2699 = scalar_lea.vmem %s3, %s2698
      // Predicated region
      $region29: #{ddm_m2p_forward.3} parent=27 // pred_check
        %p2700 = pneg %p80
      $region30: #{ddm_m2p_forward.3} parent=27 // pred_check_branch
        %2702 = sbr.rel (%p2700) target = $region32
      $region31: #{ddm_m2p_forward.3} parent=27 // pred_region
        %s2703 = smul.u32 16, %s15
      $region32: #{ddm_m2p_forward.3} parent=27 // pred_fallthru
        _
      // Predicated region
      $region33: #{ddm_m2p_forward.3} parent=27 // pred_check
        %p2704 = pneg %p106
      $region34: #{ddm_m2p_forward.3} parent=27 // pred_check_branch
        %2706 = sbr.rel (%p2704) target = $region36
      $region35: #{ddm_m2p_forward.3} parent=27 // pred_region
        %s2707 = smul.u32 16, %s15
      $region36: #{ddm_m2p_forward.3} parent=27 // pred_fallthru
        _
    $region28: #{ddm_m2p_forward.3} parent=5 // pred_fallthru
      _
    %p2708 = scmp.le.s32.totalorder 2, %s10
    // Predicated region
    $region37: #{ddm_m2p_forward.3} parent=5 // pred_check
      %p2709 = pneg %p2708
    $region38: #{ddm_m2p_forward.3} parent=5 // pred_check_branch
      %2711 = sbr.rel (%p2709) target = $region40
    $region39: #{ddm_m2p_forward.3} parent=5 // pred_region
      %s2712 = ssub.s32 %s10, 2
      // Predicated region
      $region41: #{ddm_m2p_forward.3} parent=39 // pred_check
        %p2713 = pneg %p86
      $region42: #{ddm_m2p_forward.3} parent=39 // pred_check_branch
        %2715 = sbr.rel (%p2713) target = $region44
      $region43: #{ddm_m2p_forward.3} parent=39 // pred_region
        %s2716 = smul.u32 16, %s16
        %p2717 = scmp.lt.s32.totalorder %s2716, 63
        %s2718 = scalar_select %p2717, %s2716, 63
        %s2719 = smul.addr %s2718, 8
        %s2720 = scalar_lea.vmem %s2, %s2719
      $region44: #{ddm_m2p_forward.3} parent=39 // pred_fallthru
        _
      // Predicated region
      $region45: #{ddm_m2p_forward.3} parent=39 // pred_check
        %p2721 = pneg %p112
      $region46: #{ddm_m2p_forward.3} parent=39 // pred_check_branch
        %2723 = sbr.rel (%p2721) target = $region48
      $region47: #{ddm_m2p_forward.3} parent=39 // pred_region
        %s2724 = smul.u32 16, %s16
        %p2725 = scmp.lt.s32.totalorder %s2724, 63
        %s2726 = scalar_select %p2725, %s2724, 63
        %s2727 = smul.addr %s2726, 8
        %s2728 = scalar_lea.vmem %s3, %s2727
      $region48: #{ddm_m2p_forward.3} parent=39 // pred_fallthru
        _
    $region40: #{ddm_m2p_forward.3} parent=5 // pred_fallthru
      _
  $region6: #{ddm_m2p_forward.3} parent=0 // loop_footer
    %s14 = sadd.s32 1, %s10
  $region7: #{ddm_m2p_forward.3} parent=0 // loop_footer_branch
    %9 = sbr.rel target = $region3
  $region8: #{ddm_m2p_forward.3} parent=0 // loop_exit
    _

</llo_original>
